<compile_context>
chip_gen: v5e
topology: v5e:2x2
jax: 0.10.0
libtpu: 0.0.40
codegen_flags: <defaults>
</compile_context>

<pallas_src>
import functools
import math

import jax
import jax.numpy as jnp
from jax.experimental import pallas as pl
from jax.experimental.pallas import tpu as pltpu

WORD_DIM = 200      # hard-coded in the PyTorch module
WORD_DIM_PAD = 256  # lane-dense Cin (zero-padded columns; numerically exact)
HIDDEN = 512        # conv1 output channels (hard-coded)


# ----------------------------------------------------------------------------
# Kernel
# ----------------------------------------------------------------------------
def _fused_conv_kernel(x_ref, w1_ref, b1_ref, w2_ref, b2_ref, o_ref, *, t_valid):
    """One grid step: conv1(+ReLU) -> conv2 on a (block_b, T, Cin) batch block.

    x_ref : (BB, T, Cin)   bf16   (T is sublane-aligned, rows >= t_valid are 0)
    w1_ref: (3*Cin, H)     bf16   (tap-major: rows [k*Cin:(k+1)*Cin] = tap k)
    b1_ref: (1, H)         f32
    w2_ref: (3*H, E)       bf16
    b2_ref: (1, E)         f32
    o_ref : (BB, T, E)     out dtype
    """
    BB, T, Cin = x_ref.shape
    E = w2_ref.shape[-1]
    M = BB * T

    # Time index of each flattened row: marks the 'same'-padding boundaries so
    # the sublane rolls below never leak real data across sequence edges
    # (including across batch rows of the flattened view).
    row = jax.lax.broadcasted_iota(jnp.int32, (M, 1), 0)
    t_idx = row % T
    first = t_idx == 0
    last = t_idx == T - 1

    # ---- conv1 + ReLU : ONE MXU matmul over concatenated K = 3*Cin ---------
    x_bf = x_ref[...].reshape(M, Cin)          # trivial relayout: T % 8 == 0
    # Shift-by-one-time-step == sublane roll on the flattened (M, Cin) view.
    # Rolls are done in f32 (32-bit sublane rotate) and masked at the edges.
    # TODO(synk): roll the packed bf16 data directly once packed-dtype sublane
    #             rotate is guaranteed on all targets; saves the up/down casts.
    x32 = x_bf.astype(jnp.float32)
    x_prev = jnp.where(first, 0.0, pltpu.roll(x32, shift=1, axis=0)).astype(x_bf.dtype)
    x_next = jnp.where(last, 0.0, pltpu.roll(x32, shift=M - 1, axis=0)).astype(x_bf.dtype)
    x_cat = jnp.concatenate([x_prev, x_bf, x_next], axis=-1)         # (M, 3*Cin)

    h32 = jnp.dot(x_cat, w1_ref[...], preferred_element_type=jnp.float32) + b1_ref[...]
    h32 = jnp.maximum(h32, 0.0)

    # Zero rows past the true sequence length so conv2 sees the original
    # 'same' zero padding at the boundary (static no-op when t_valid == T).
    if t_valid < T:
        h32 = jnp.where(t_idx >= t_valid, 0.0, h32)

    # ---- conv2 : ONE MXU matmul over concatenated K = 3*H -------------------
    h_bf = h32.astype(jnp.bfloat16)
    h_prev = jnp.where(first, 0.0, pltpu.roll(h32, shift=1, axis=0)).astype(jnp.bfloat16)
    h_next = jnp.where(last, 0.0, pltpu.roll(h32, shift=M - 1, axis=0)).astype(jnp.bfloat16)
    h_cat = jnp.concatenate([h_prev, h_bf, h_next], axis=-1)         # (M, 3*H)

    y = jnp.dot(h_cat, w2_ref[...], preferred_element_type=jnp.float32) + b2_ref[...]
    o_ref[...] = y.reshape(BB, T, E).astype(o_ref.dtype)


# ----------------------------------------------------------------------------
# Wrapper: block sizing + pallas_call
# ----------------------------------------------------------------------------
def _vmem_bytes(block_b, t_p, cin, h, e, out_bytes):
    """Rough per-step VMEM footprint estimate (weights + I/O blocks + temps)."""
    m = block_b * t_p
    w_bytes = 2 * ((3 * cin * h + 3 * h * e) * 2 + (h + e) * 4)   # 2 pipeline bufs
    x_io = 2 * block_b * t_p * cin * 2                            # bf16 input, x2
    y_io = 2 * block_b * t_p * e * out_bytes                      # output, x2
    tmp = m * (3 * cin * 2 + 2 * cin * 4                          # x_cat + f32 rolls
               + 3 * h * 4 + 3 * h * 2                            # h32(+rolls) + h_cat
               + e * 4)                                           # f32 result pre-cast
    return w_bytes + x_io + y_io + tmp


def _choose_block_b(b, t_p, cin, h, e, out_bytes, budget=32 * 1024 * 1024):
    """Pick batch rows per grid step: M = block_b*T ~ 1024, VMEM-bounded,
    >= 2 grid steps when B allows, preferring an even step count (v7x)."""
    max_bb = 1
    for bb in range(1, b + 1):
        if _vmem_bytes(bb, t_p, cin, h, e, out_bytes) > budget:
            break
        max_bb = bb
    bb = max(1, min(max_bb, -(-1024 // t_p)))     # target ~1024 MXU rows
    if b >= 2:
        bb = min(bb, -(-b // 2))                  # keep >= 2 grid steps
    steps = -(-b // bb)
    if steps > 1 and steps % 2 == 1 and b > bb:   # prefer even steps (2 TCs on v7x)
        for cand in range(bb - 1, max(bb // 2, 0), -1):
            if (-(-b // cand)) % 2 == 0:
                bb = cand
                break
    return bb


def fused_text_conv(x, w1_flat, b1, w2_flat, b2, *, out_dtype=jnp.float32):
    """Fused conv1(+ReLU)+conv2 over the time axis (kernel=3, 'same' padding).

    x       : (B, T, Cin) bf16 (Cin already padded to a lane-dense width)
    w1_flat : (3*Cin, H)  bf16,  b1: (H,) f32
    w2_flat : (3*H, E)    bf16,  b2: (E,) f32
    returns (B, T, E) out_dtype, channels-last (lane-dense).
    """
    B, T, Cin = x.shape
    H = w1_flat.shape[-1]
    E = w2_flat.shape[-1]
    assert w1_flat.shape[0] == 3 * Cin and w2_flat.shape[0] == 3 * H

    out_bytes = jnp.dtype(out_dtype).itemsize
    T_p = -(-T // 8) * 8                          # sublane-aligned time
    block_b = _choose_block_b(B, T_p, Cin, H, E, out_bytes)
    B_pad = -(-B // block_b) * block_b

    # Only pad when shapes are irregular (no mandatory halo pad any more).
    if (B_pad, T_p) != (B, T):
        x = jnp.pad(x, ((0, B_pad - B), (0, T_p - T), (0, 0)))

    b1_2 = b1.reshape(1, H).astype(jnp.float32)
    b2_2 = b2.reshape(1, E).astype(jnp.float32)

    est = _vmem_bytes(block_b, T_p, Cin, H, E, out_bytes)
    vmem_limit = int(min(64 * 1024 * 1024, max(32 * 1024 * 1024, (est * 3) // 2)))

    kernel = functools.partial(_fused_conv_kernel, t_valid=T)

    # TODO(synk): mark the grid-invariant weight/bias specs pipeline_mode=
    #             pl.Buffered(1) to reclaim their second VMEM buffer.
    # TODO(synk): for very long sequences on v7x (64 MiB VMEM), add a time-tile
    #             grid axis with a +-1 halo instead of whole-sequence blocks.
    out = pl.pallas_call(
        kernel,
        out_shape=jax.ShapeDtypeStruct((B_pad, T_p, E), out_dtype),
        grid=(B_pad // block_b,),
        in_specs=[
            pl.BlockSpec((block_b, T_p, Cin), lambda i: (i, 0, 0)),
            pl.BlockSpec((3 * Cin, H), lambda i: (0, 0)),
            pl.BlockSpec((1, H), lambda i: (0, 0)),
            pl.BlockSpec((3 * H, E), lambda i: (0, 0)),
            pl.BlockSpec((1, E), lambda i: (0, 0)),
        ],
        out_specs=pl.BlockSpec((block_b, T_p, E), lambda i: (i, 0, 0)),
        compiler_params=pltpu.CompilerParams(
            dimension_semantics=("parallel",),
            vmem_limit_bytes=vmem_limit),
    )(x, w1_flat, b1_2, w2_flat, b2_2)

    if (B_pad, T_p) != (B, T):
        out = out[:B, :T]
    return out


# ----------------------------------------------------------------------------
# Module
# ----------------------------------------------------------------------------
class ConvTextEncoderPallas:
    """JAX/Pallas port of ConvTextEncoder (forward pass)."""

    def __init__(self, word_to_idx, embedding_dim=1024, key=None):
        if key is None:
            key = jax.random.PRNGKey(0)
        self.word_to_idx = word_to_idx
        self.n_vocabs = len(word_to_idx)
        self.embedding_dim = embedding_dim

        k_emb, k_w1, k_b1, k_w2, k_b2 = jax.random.split(key, 5)

        # nn.Embedding(n_vocabs, 200): N(0,1); columns 200..255 zero-padded.
        emb = jax.random.normal(k_emb, (self.n_vocabs, WORD_DIM), jnp.float32)
        self.embed = jnp.pad(emb, ((0, 0), (0, WORD_DIM_PAD - WORD_DIM)))

        # conv1: Conv2d(1, 512, (200,3)).  If loading real PyTorch weights:
        # torch_w[out, 0, cin, k] -> w[k, cin, out] (cross-correlation, NO flip).
        fan1 = 1 * WORD_DIM * 3
        bound1 = 1.0 / math.sqrt(fan1)
        w1 = jax.random.uniform(k_w1, (3, WORD_DIM, HIDDEN), jnp.float32,
                                -bound1, bound1)
        w1 = jnp.pad(w1, ((0, 0), (0, WORD_DIM_PAD - WORD_DIM), (0, 0)))
        # Tap-major (3*Cin, H) layout for the concat-K single matmul, bf16.
        self.w1_flat = w1.reshape(3 * WORD_DIM_PAD, HIDDEN).astype(jnp.bfloat16)
        self.b1 = jax.random.uniform(k_b1, (HIDDEN,), jnp.float32, -bound1, bound1)

        # conv2: Conv2d(512, E, (1,3)) -> (3*H, E) bf16, tap-major.
        fan2 = HIDDEN * 1 * 3
        bound2 = 1.0 / math.sqrt(fan2)
        w2 = jax.random.uniform(k_w2, (3, HIDDEN, embedding_dim), jnp.float32,
                                -bound2, bound2)
        self.w2_flat = w2.reshape(3 * HIDDEN, embedding_dim).astype(jnp.bfloat16)
        self.b2 = jax.random.uniform(k_b2, (embedding_dim,), jnp.float32,
                                     -bound2, bound2)

    def __call__(self, word_indices, *, channels_last=False, out_dtype=jnp.float32):
        # TODO(synk): the embedding gather could be fused into the conv kernel
        #             via PrefetchScalarGridSpec + pl.Element row indexing;
        #             kept as a single XLA gather here.
        x = self.embed[word_indices].astype(jnp.bfloat16)          # (B, T, 256)
        y = fused_text_conv(x, self.w1_flat, self.b1, self.w2_flat, self.b2,
                            out_dtype=out_dtype)                   # (B, T, E)
        if channels_last:
            return y   # lane-dense fast path; prefer when the consumer allows
        # Match the PyTorch output layout (B, embedding_dim, T).  If that
        # layout is mandatory, fold this transpose into the consumer instead.
        return jnp.transpose(y, (0, 2, 1))


# ----------------------------------------------------------------------------
# Pure-JAX reference (mirrors kernel numerics: bf16 inputs, f32 acc,
# hidden rounded to bf16 before conv2)
# ----------------------------------------------------------------------------
def _ref_forward(x_bf16, w1_flat, b1, w2_flat, b2):
    hi = jax.lax.Precision.HIGHEST
    x = x_bf16.astype(jnp.float32)
    B, T, Cin = x.shape
    H = w1_flat.shape[-1]
    E = w2_flat.shape[-1]
    w1 = w1_flat.astype(jnp.float32).reshape(3, Cin, H)
    w2 = w2_flat.astype(jnp.float32).reshape(3, H, E)

    xp = jnp.pad(x, ((0, 0), (1, 1), (0, 0)))
    h = b1
    for k in range(3):
        h = h + jnp.einsum("btc,cd->btd", xp[:, k:k + T], w1[k], precision=hi)
    h = jnp.maximum(h, 0.0).astype(jnp.bfloat16).astype(jnp.float32)

    hp = jnp.pad(h, ((0, 0), (1, 1), (0, 0)))
    y = b2
    for k in range(3):
        y = y + jnp.einsum("btc,cd->btd", hp[:, k:k + T], w2[k], precision=hi)
    return jnp.transpose(y, (0, 2, 1))


if __name__ == "__main__":
    vocab = ["w%d" % i for i in range(20)]
    word_to_idx = {w: i for i, w in enumerate(vocab)}
    E = 256

    model = ConvTextEncoderPallas(word_to_idx, embedding_dim=E,
                                  key=jax.random.PRNGKey(0))

    # Case 1: aligned shapes -> multi-row batch blocks, 2 parallel grid steps.
    B, T = 4, 8
    idx = jax.random.randint(jax.random.PRNGKey(1), (B, T), 0, len(vocab),
                             dtype=jnp.int32)
    out = jax.block_until_ready(model(idx))
    assert out.shape == (B, E, T), out.shape
    x_bf = model.embed[idx].astype(jnp.bfloat16)
    ref = _ref_forward(x_bf, model.w1_flat, model.b1, model.w2_flat, model.b2)
    err = float(jnp.max(jnp.abs(out - ref)))
    assert jnp.allclose(out, ref, atol=1e-2, rtol=1e-2), err

    # Case 2: ragged shapes (T % 8 != 0, B % block_b != 0) -> exercises the
    # in-kernel valid-length mask and the batch/time padding + slice paths.
    B2, T2 = 3, 7
    idx2 = jax.random.randint(jax.random.PRNGKey(2), (B2, T2), 0, len(vocab),
                              dtype=jnp.int32)
    out2 = jax.block_until_ready(model(idx2))
    assert out2.shape == (B2, E, T2), out2.shape
    x2_bf = model.embed[idx2].astype(jnp.bfloat16)
    ref2 = _ref_forward(x2_bf, model.w1_flat, model.b1, model.w2_flat, model.b2)
    err2 = float(jnp.max(jnp.abs(out2 - ref2)))
    assert jnp.allclose(out2, ref2, atol=1e-2, rtol=1e-2), err2

    print("KERNEL_OK")
</pallas_src>

<mosaic_0001>
module attributes {stable_mosaic.version = 11 : i64} {
  func.func @_fused_conv_kernel(%arg0: i32, %arg1: memref<2x8x256xbf16, #tpu.memory_space<vmem>>, %arg2: memref<768x512xbf16, #tpu.memory_space<vmem>>, %arg3: memref<1x512xf32, #tpu.memory_space<vmem>>, %arg4: memref<1536x256xbf16, #tpu.memory_space<vmem>>, %arg5: memref<1x256xf32, #tpu.memory_space<vmem>>, %arg6: memref<2x8x256xf32, #tpu.memory_space<vmem>>) attributes {dimension_semantics = [#tpu.dimension_semantics<parallel>], iteration_bounds = array<i64: 2>, scalar_prefetch = 0 : i64, scratch_operands = 0 : i64, tpu.core_type = #tpu.core_type<tc>, window_params = [{transform_indices = @transform_0, window_bounds = array<i64: 2, 8, 256>}, {pipeline_mode = #tpu.pipeline_mode<synchronous>, transform_indices = @transform_1, window_bounds = array<i64: 768, 512>}, {pipeline_mode = #tpu.pipeline_mode<synchronous>, transform_indices = @transform_2, window_bounds = array<i64: 1, 512>}, {pipeline_mode = #tpu.pipeline_mode<synchronous>, transform_indices = @transform_3, window_bounds = array<i64: 1536, 256>}, {pipeline_mode = #tpu.pipeline_mode<synchronous>, transform_indices = @transform_4, window_bounds = array<i64: 1, 256>}, {transform_indices = @transform_5, window_bounds = array<i64: 2, 8, 256>}]} {
    %0 = tpu.iota {dimensions = array<i32: 0>} : vector<16x1xi32>
    %c8_i32 = arith.constant 8 : i32
    %c0_i32 = arith.constant 0 : i32
    %1 = arith.cmpi eq, %c8_i32, %c0_i32 : i32
    %c1_i32 = arith.constant 1 : i32
    %2 = arith.select %1, %c1_i32, %c8_i32 : i32
    %3 = vector.broadcast %2 : i32 to vector<16x1xi32>
    %4 = arith.remsi %0, %3 : vector<16x1xi32>
    %c0_i32_0 = arith.constant 0 : i32
    %5 = vector.broadcast %c0_i32_0 : i32 to vector<16x1xi32>
    %6 = arith.cmpi ne, %4, %5 : vector<16x1xi32>
    %c0_i32_1 = arith.constant 0 : i32
    %7 = vector.broadcast %c0_i32_1 : i32 to vector<16x1xi32>
    %8 = arith.cmpi slt, %4, %7 : vector<16x1xi32>
    %c0_i32_2 = arith.constant 0 : i32
    %9 = arith.cmpi slt, %2, %c0_i32_2 : i32
    %10 = vector.broadcast %9 : i1 to vector<16x1xi1>
    %11 = vector.broadcast %10 : vector<16x1xi1> to vector<16x1xi1>
    %12 = arith.xori %8, %11 : vector<16x1xi1>
    %13 = arith.andi %12, %6 : vector<16x1xi1>
    %14 = vector.broadcast %2 : i32 to vector<16x1xi32>
    %15 = arith.addi %4, %14 : vector<16x1xi32>
    %16 = arith.select %13, %15, %4 : vector<16x1xi1>, vector<16x1xi32>
    %c0_i32_3 = arith.constant 0 : i32
    %17 = vector.broadcast %c0_i32_3 : i32 to vector<16x1xi32>
    %18 = arith.cmpi eq, %16, %17 : vector<16x1xi32>
    %c7_i32 = arith.constant 7 : i32
    %19 = vector.broadcast %c7_i32 : i32 to vector<16x1xi32>
    %20 = arith.cmpi eq, %16, %19 : vector<16x1xi32>
    %c0 = arith.constant 0 : index
    %c0_4 = arith.constant 0 : index
    %c0_5 = arith.constant 0 : index
    %21 = vector.load %arg1[%c0, %c0_4, %c0_5] : memref<2x8x256xbf16, #tpu.memory_space<vmem>>, vector<2x8x256xbf16>
    %22 = vector.shape_cast %21 : vector<2x8x256xbf16> to vector<16x256xbf16>
    %23 = arith.extf %22 : vector<16x256xbf16> to vector<16x256xf32>
    %c1_i32_6 = arith.constant 1 : i32
    %24 = tpu.dynamic_rotate %23 by %c1_i32_6 dim 0 : vector<16x256xf32>, i32 -> vector<16x256xf32>
    %cst = arith.constant 0.000000e+00 : f32
    %25 = vector.shape_cast %18 : vector<16x1xi1> to vector<16x1xi1>
    %26 = vector.broadcast %25 : vector<16x1xi1> to vector<16x256xi1>
    %27 = vector.broadcast %cst : f32 to vector<16x256xf32>
    %28 = arith.select %26, %27, %24 : vector<16x256xi1>, vector<16x256xf32>
    %29 = arith.truncf %28 : vector<16x256xf32> to vector<16x256xbf16>
    %c15_i32 = arith.constant 15 : i32
    %30 = tpu.dynamic_rotate %23 by %c15_i32 dim 0 : vector<16x256xf32>, i32 -> vector<16x256xf32>
    %cst_7 = arith.constant 0.000000e+00 : f32
    %31 = vector.shape_cast %20 : vector<16x1xi1> to vector<16x1xi1>
    %32 = vector.broadcast %31 : vector<16x1xi1> to vector<16x256xi1>
    %33 = vector.broadcast %cst_7 : f32 to vector<16x256xf32>
    %34 = arith.select %32, %33, %30 : vector<16x256xi1>, vector<16x256xf32>
    %35 = arith.truncf %34 : vector<16x256xf32> to vector<16x256xbf16>
    %36 = tpu.concatenate %29, %22, %35 in 1 : vector<16x256xbf16>, vector<16x256xbf16>, vector<16x256xbf16> -> vector<16x768xbf16>
    %c0_8 = arith.constant 0 : index
    %c0_9 = arith.constant 0 : index
    %37 = vector.load %arg2[%c0_8, %c0_9] : memref<768x512xbf16, #tpu.memory_space<vmem>>, vector<768x512xbf16>
    %cst_10 = arith.constant dense<0.000000e+00> : vector<16x512xf32>
    %38 = tpu.matmul %36, %37, %cst_10 {dimension_numbers = #tpu.dot_dimension_numbers<[1], [0], [0], [1], [0, 0, 1, 1], [], []>} : vector<16x768xbf16>, vector<768x512xbf16>, vector<16x512xf32> -> vector<16x512xf32>
    %c0_11 = arith.constant 0 : index
    %c0_12 = arith.constant 0 : index
    %39 = vector.load %arg3[%c0_11, %c0_12] : memref<1x512xf32, #tpu.memory_space<vmem>>, vector<1x512xf32>
    %40 = vector.broadcast %39 : vector<1x512xf32> to vector<16x512xf32>
    %41 = arith.addf %38, %40 : vector<16x512xf32>
    %cst_13 = arith.constant 0.000000e+00 : f32
    %42 = vector.broadcast %cst_13 : f32 to vector<16x512xf32>
    %43 = arith.maximumf %41, %42 : vector<16x512xf32>
    %44 = arith.truncf %43 : vector<16x512xf32> to vector<16x512xbf16>
    %c1_i32_14 = arith.constant 1 : i32
    %45 = tpu.dynamic_rotate %43 by %c1_i32_14 dim 0 : vector<16x512xf32>, i32 -> vector<16x512xf32>
    %cst_15 = arith.constant 0.000000e+00 : f32
    %46 = vector.shape_cast %18 : vector<16x1xi1> to vector<16x1xi1>
    %47 = vector.broadcast %46 : vector<16x1xi1> to vector<16x512xi1>
    %48 = vector.broadcast %cst_15 : f32 to vector<16x512xf32>
    %49 = arith.select %47, %48, %45 : vector<16x512xi1>, vector<16x512xf32>
    %50 = arith.truncf %49 : vector<16x512xf32> to vector<16x512xbf16>
    %c15_i32_16 = arith.constant 15 : i32
    %51 = tpu.dynamic_rotate %43 by %c15_i32_16 dim 0 : vector<16x512xf32>, i32 -> vector<16x512xf32>
    %cst_17 = arith.constant 0.000000e+00 : f32
    %52 = vector.shape_cast %20 : vector<16x1xi1> to vector<16x1xi1>
    %53 = vector.broadcast %52 : vector<16x1xi1> to vector<16x512xi1>
    %54 = vector.broadcast %cst_17 : f32 to vector<16x512xf32>
    %55 = arith.select %53, %54, %51 : vector<16x512xi1>, vector<16x512xf32>
    %56 = arith.truncf %55 : vector<16x512xf32> to vector<16x512xbf16>
    %57 = tpu.concatenate %50, %44, %56 in 1 : vector<16x512xbf16>, vector<16x512xbf16>, vector<16x512xbf16> -> vector<16x1536xbf16>
    %c0_18 = arith.constant 0 : index
    %c0_19 = arith.constant 0 : index
    %58 = vector.load %arg4[%c0_18, %c0_19] : memref<1536x256xbf16, #tpu.memory_space<vmem>>, vector<1536x256xbf16>
    %cst_20 = arith.constant dense<0.000000e+00> : vector<16x256xf32>
    %59 = tpu.matmul %57, %58, %cst_20 {dimension_numbers = #tpu.dot_dimension_numbers<[1], [0], [0], [1], [0, 0, 1, 1], [], []>} : vector<16x1536xbf16>, vector<1536x256xbf16>, vector<16x256xf32> -> vector<16x256xf32>
    %c0_21 = arith.constant 0 : index
    %c0_22 = arith.constant 0 : index
    %60 = vector.load %arg5[%c0_21, %c0_22] : memref<1x256xf32, #tpu.memory_space<vmem>>, vector<1x256xf32>
    %61 = vector.broadcast %60 : vector<1x256xf32> to vector<16x256xf32>
    %62 = arith.addf %59, %61 : vector<16x256xf32>
    %63 = vector.shape_cast %62 : vector<16x256xf32> to vector<2x8x256xf32>
    %c0_23 = arith.constant 0 : index
    %c0_24 = arith.constant 0 : index
    %c0_25 = arith.constant 0 : index
    %64 = vector.load %arg6[%c0_23, %c0_24, %c0_25] : memref<2x8x256xf32, #tpu.memory_space<vmem>>, vector<2x8x256xf32>
    tpu.vector_store %arg6[%c0_23, %c0_24, %c0_25], %63 {strides = array<i32>} : memref<2x8x256xf32, #tpu.memory_space<vmem>>, vector<2x8x256xf32>,
    return
  }
  func.func @transform_0(%arg0: i32) -> (i32, i32, i32) {
    %c0_i32 = arith.constant 0 : i32
    %c0_i32_0 = arith.constant 0 : i32
    %c0_i32_1 = arith.constant 0 : i32
    return %arg0, %c0_i32, %c0_i32_0 : i32, i32, i32
  }
  func.func @transform_1(%arg0: i32) -> (i32, i32) {
    %c0_i32 = arith.constant 0 : i32
    %c0_i32_0 = arith.constant 0 : i32
    %c0_i32_1 = arith.constant 0 : i32
    return %c0_i32, %c0_i32_0 : i32, i32
  }
  func.func @transform_2(%arg0: i32) -> (i32, i32) {
    %c0_i32 = arith.constant 0 : i32
    %c0_i32_0 = arith.constant 0 : i32
    %c0_i32_1 = arith.constant 0 : i32
    return %c0_i32, %c0_i32_0 : i32, i32
  }
  func.func @transform_3(%arg0: i32) -> (i32, i32) {
    %c0_i32 = arith.constant 0 : i32
    %c0_i32_0 = arith.constant 0 : i32
    %c0_i32_1 = arith.constant 0 : i32
    return %c0_i32, %c0_i32_0 : i32, i32
  }
  func.func @transform_4(%arg0: i32) -> (i32, i32) {
    %c0_i32 = arith.constant 0 : i32
    %c0_i32_0 = arith.constant 0 : i32
    %c0_i32_1 = arith.constant 0 : i32
    return %c0_i32, %c0_i32_0 : i32, i32
  }
  func.func @transform_5(%arg0: i32) -> (i32, i32, i32) {
    %c0_i32 = arith.constant 0 : i32
    %c0_i32_0 = arith.constant 0 : i32
    %c0_i32_1 = arith.constant 0 : i32
    return %arg0, %c0_i32, %c0_i32_0 : i32, i32, i32
  }
}

</mosaic_0001>

<llo_original>
// kernel: tpu_custom_call.1
$region0: #{tpu_custom_call.1}
  #allocation0 [shape = 'u32[]', space=smem, size = 0x4, offset = 0x4, fixed_abs, tag = 'smem constant byte address 0x4 - core index']
  #allocation1 [shape = 'u32[72,128]{1,0:T(1,128)}', space=vmem, size = 0x9000, scoped, tag = 'internal scratch']
  %s0 = inlined_call_operand.hbm [shape: bf16[4,8,256], index: 0, kind: input, shape index: {}]
  %s1 = inlined_call_operand.hbm [shape: bf16[768,512], index: 1, kind: input, shape index: {}]
  %s2 = inlined_call_operand.hbm [shape: f32[1,512], index: 2, kind: input, shape index: {}]
  %s3 = inlined_call_operand.hbm [shape: bf16[1536,256], index: 3, kind: input, shape index: {}]
  %s4 = inlined_call_operand.vmem [shape: f32[1,256], index: 4, kind: input, shape index: {}]
  %s5 = inlined_call_operand.hbm [shape: f32[4,8,256], index: 5, kind: output, shape index: {}]
  %s6 = sld [smem:[#allocation0]]
  $region69: #{tpu_custom_call.1} parent=0
    _
  %s8 = ssub.s32 1, %s6
  %s9 = scalar_select 0, %s8, %s6
  $region1: #{tpu_custom_call.1} parent=0
    #allocation2 [shape = 'u8[16384]{0}', space=vmem, size = 0x4000, scoped, tag = 'input window, operand 0']
    #allocation3 [shape = 's32[2]{0}', space=sflag, size = 0x8, scoped, tag = 'scoped memory for tpu_custom_call.1']
    #allocation4 [shape = 's32[2]{0}', space=sflag, size = 0x8, scoped, tag = 'scoped memory for tpu_custom_call.1']
    #allocation5 [shape = 'u8[786432]{0}', space=vmem, size = 0xc0000, scoped, tag = 'input window, operand 1, single buffered']
    #allocation6 [shape = 's32[1]{0}', space=sflag, size = 0x4, scoped, tag = 'scoped memory for tpu_custom_call.1']
    #allocation7 [shape = 'u8[2048]{0}', space=vmem, size = 0x800, scoped, tag = 'input window, operand 2, single buffered']
    #allocation8 [shape = 'u8[786432]{0}', space=vmem, size = 0xc0000, scoped, tag = 'input window, operand 3, single buffered']
    #allocation9 [shape = 's32[1]{0}', space=sflag, size = 0x4, scoped, tag = 'scoped memory for tpu_custom_call.1']
    #allocation10 [shape = 'u8[32768]{0}', space=vmem, size = 0x8000, scoped, tag = 'output window, operand 0']
    %10 = vsyncpa [#allocation3], 0
    %s11 = scalar_lea.sflag [#allocation3], 1
    %12 = vsyncpa %s11, 0
    %13 = vsyncpa [#allocation6], 0
    %14 = vsyncpa [#allocation9], 0
    %15 = vsyncpa [#allocation4], 0
    %s16 = scalar_lea.sflag [#allocation4], 1
    %17 = vsyncpa %s16, 0
    loop: start=0, step=1, limit=4
    $region2: #{tpu_custom_call.1} parent=1 // loop_pre_header
      _
    $region3: #{tpu_custom_call.1} parent=1 // loop_header
      %s19 = sphi 0, %s23
      %p20 = scmp.ge.s32.totalorder %s19, 4
      %s29 = sphi 0, %s31
      %s32 = sphi 0, %s29
      %s33 = sphi 0, %s32
      %s49 = sphi 0, %s33
      %s53 = sphi 0, %s53
      %s55 = sphi 0, %s53
      %s56 = sphi 0, %s55
      %s70 = sphi 0, %s56
      %s74 = sphi 0, %s74
      %s76 = sphi 0, %s74
      %s77 = sphi 0, %s76
      %s91 = sphi 0, %s77
      %s95 = sphi 0, %s95
      %s97 = sphi 0, %s95
      %s98 = sphi 0, %s97
      %s112 = sphi 0, %s98
      %s116 = sphi 0, %s116
      %s118 = sphi 0, %s116
      %s119 = sphi 0, %s118
      %s133 = sphi 0, %s119
      %s139 = sphi 0, %s141
      %s142 = sphi 0, %s139
      %s143 = sphi 0, %s142
      %s159 = sphi 0, %s143
    $region4: #{tpu_custom_call.1} parent=1 // loop_header_branch
      %22 = sbr.rel (%p20) target = $region8
    $region5: #{tpu_custom_call.1} parent=1 // loop_body
      %s24 = ssub.s32 %s19, 1
      %s25 = ssub.s32 %s19, 2
      %s26 = sadd.s32 %s19, 1
      %s27 = ssub.s32 %s19, %s26
      %p28 = scmp.eq.s32.totalorder %s27, 0
      %s30 = sadd.s32 %s29, 1
      %s31 = scalar_select %p28, %s29, %s30
      %p34 = pneg %p28
      %p35 = scmp.eq.s32.totalorder %s19, 1
      %p36 = por %p34, %p35
      %p37 = scmp.ne.s32.totalorder %s29, %s32
      %p38 = scmp.eq.s32.totalorder %s19, 0
      %p39 = por %p37, %p38
      %p40 = scmp.ne.s32.totalorder %s29, %s32
      %p41 = scmp.eq.s32.totalorder %s24, 1
      %p42 = por %p40, %p41
      %p43 = scmp.ne.s32.totalorder %s32, %s33
      %p44 = scmp.eq.s32.totalorder %s24, 0
      %p45 = por %p43, %p44
      %p46 = scmp.ne.s32.totalorder %s32, %s33
      %p47 = scmp.eq.s32.totalorder %s25, 1
      %p48 = por %p46, %p47
      %p50 = scmp.ne.s32.totalorder %s33, %s49
      %p51 = scmp.eq.s32.totalorder %s25, 0
      %p52 = por %p50, %p51
      %s54 = sadd.s32 %s53, 1
      %p57 = scmp.eq.s32.totalorder %s19, 1
      %p58 = scmp.ne.s32.totalorder %s53, %s55
      %p59 = scmp.eq.s32.totalorder %s19, 0
      %p60 = por %p58, %p59
      %p61 = scmp.ne.s32.totalorder %s53, %s55
      %p62 = scmp.eq.s32.totalorder %s24, 1
      %p63 = por %p61, %p62
      %p64 = scmp.ne.s32.totalorder %s55, %s56
      %p65 = scmp.eq.s32.totalorder %s24, 0
      %p66 = por %p64, %p65
      %p67 = scmp.ne.s32.totalorder %s55, %s56
      %p68 = scmp.eq.s32.totalorder %s25, 1
      %p69 = por %p67, %p68
      %p71 = scmp.ne.s32.totalorder %s56, %s70
      %p72 = scmp.eq.s32.totalorder %s25, 0
      %p73 = por %p71, %p72
      %s75 = sadd.s32 %s74, 1
      %p78 = scmp.eq.s32.totalorder %s19, 1
      %p79 = scmp.ne.s32.totalorder %s74, %s76
      %p80 = scmp.eq.s32.totalorder %s19, 0
      %p81 = por %p79, %p80
      %p82 = scmp.ne.s32.totalorder %s74, %s76
      %p83 = scmp.eq.s32.totalorder %s24, 1
      %p84 = por %p82, %p83
      %p85 = scmp.ne.s32.totalorder %s76, %s77
      %p86 = scmp.eq.s32.totalorder %s24, 0
      %p87 = por %p85, %p86
      %p88 = scmp.ne.s32.totalorder %s76, %s77
      %p89 = scmp.eq.s32.totalorder %s25, 1
      %p90 = por %p88, %p89
      %p92 = scmp.ne.s32.totalorder %s77, %s91
      %p93 = scmp.eq.s32.totalorder %s25, 0
      %p94 = por %p92, %p93
      %s96 = sadd.s32 %s95, 1
      %p99 = scmp.eq.s32.totalorder %s19, 1
      %p100 = scmp.ne.s32.totalorder %s95, %s97
      %p101 = scmp.eq.s32.totalorder %s19, 0
      %p102 = por %p100, %p101
      %p103 = scmp.ne.s32.totalorder %s95, %s97
      %p104 = scmp.eq.s32.totalorder %s24, 1
      %p105 = por %p103, %p104
      %p106 = scmp.ne.s32.totalorder %s97, %s98
      %p107 = scmp.eq.s32.totalorder %s24, 0
      %p108 = por %p106, %p107
      %p109 = scmp.ne.s32.totalorder %s97, %s98
      %p110 = scmp.eq.s32.totalorder %s25, 1
      %p111 = por %p109, %p110
      %p113 = scmp.ne.s32.totalorder %s98, %s112
      %p114 = scmp.eq.s32.totalorder %s25, 0
      %p115 = por %p113, %p114
      %s117 = sadd.s32 %s116, 1
      %p120 = scmp.eq.s32.totalorder %s19, 1
      %p121 = scmp.ne.s32.totalorder %s116, %s118
      %p122 = scmp.eq.s32.totalorder %s19, 0
      %p123 = por %p121, %p122
      %p124 = scmp.ne.s32.totalorder %s116, %s118
      %p125 = scmp.eq.s32.totalorder %s24, 1
      %p126 = por %p124, %p125
      %p127 = scmp.ne.s32.totalorder %s118, %s119
      %p128 = scmp.eq.s32.totalorder %s24, 0
      %p129 = por %p127, %p128
      %p130 = scmp.ne.s32.totalorder %s118, %s119
      %p131 = scmp.eq.s32.totalorder %s25, 1
      %p132 = por %p130, %p131
      %p134 = scmp.ne.s32.totalorder %s119, %s133
      %p135 = scmp.eq.s32.totalorder %s25, 0
      %p136 = por %p134, %p135
      %s137 = ssub.s32 %s19, %s26
      %p138 = scmp.eq.s32.totalorder %s137, 0
      %s140 = sadd.s32 %s139, 1
      %s141 = scalar_select %p138, %s139, %s140
      %p144 = pneg %p138
      %p145 = scmp.eq.s32.totalorder %s19, 1
      %p146 = por %p144, %p145
      %p147 = scmp.ne.s32.totalorder %s139, %s142
      %p148 = scmp.eq.s32.totalorder %s19, 0
      %p149 = por %p147, %p148
      %p150 = scmp.ne.s32.totalorder %s139, %s142
      %p151 = scmp.eq.s32.totalorder %s24, 1
      %p152 = por %p150, %p151
      %p153 = scmp.ne.s32.totalorder %s142, %s143
      %p154 = scmp.eq.s32.totalorder %s24, 0
      %p155 = por %p153, %p154
      %p156 = scmp.ne.s32.totalorder %s142, %s143
      %p157 = scmp.eq.s32.totalorder %s25, 1
      %p158 = por %p156, %p157
      %p160 = scmp.ne.s32.totalorder %s143, %s159
      %p161 = scmp.eq.s32.totalorder %s25, 0
      %p162 = por %p160, %p161
      %p163 = scmp.le.s32.totalorder 1, %s19
      %p164 = scmp.lt.s32.totalorder %s19, 3
      %p165 = pnand %p163, %p164
      %p166 = pneg %p165
      // Predicated region
      $region9: #{tpu_custom_call.1} parent=5 // pred_check
        _
      $region10: #{tpu_custom_call.1} parent=5 // pred_check_branch
        %168 = sbr.rel (%p165) target = $region12
      $region11: #{tpu_custom_call.1} parent=5 // pred_region
        %s169 = ssub.s32 %s19, 1
        // Predicated region
        $region13: #{tpu_custom_call.1} parent=11 // pred_check
          %p170 = pneg %p66
        $region14: #{tpu_custom_call.1} parent=11 // pred_check_branch
          %172 = sbr.rel (%p170) target = $region16
        $region15: #{tpu_custom_call.1} parent=11 // pred_region
          %174 = vsyncadd [#allocation6], 0
          %s175 = sshll.u32 %s1, 4
          %s176 = int_to_ptr.hbm [resolvable:$true] %s175
          %s177 = sshll.u32 [#allocation5], 4
          %s178 = int_to_ptr.vmem [resolvable:$true] %s177
          %183 = dma.hbm_to_vmem [thread:$0]  %s176, 24576, %s178, [#allocation6], 256, 256, 16
        $region16: #{tpu_custom_call.1} parent=11 // pred_fallthru
          _
        // Predicated region
        $region17: #{tpu_custom_call.1} parent=11 // pred_check
          %p184 = pneg %p87
        $region18: #{tpu_custom_call.1} parent=11 // pred_check_branch
          %186 = sbr.rel (%p184) target = $region20
        $region19: #{tpu_custom_call.1} parent=11 // pred_region
          %188 = vsyncadd [#allocation6], 0
          %s190 = sshll.u32 %s2, 4
          %s191 = int_to_ptr.hbm [resolvable:$true] %s190
          %s192 = sshll.u32 [#allocation7], 4
          %s193 = int_to_ptr.vmem [resolvable:$true] %s192
          %195 = dma.hbm_to_vmem [thread:$0]  %s191, 64, %s193, [#allocation6]
        $region20: #{tpu_custom_call.1} parent=11 // pred_fallthru
          _
        // Predicated region
        $region21: #{tpu_custom_call.1} parent=11 // pred_check
          %p196 = pneg %p108
        $region22: #{tpu_custom_call.1} parent=11 // pred_check_branch
          %198 = sbr.rel (%p196) target = $region24
        $region23: #{tpu_custom_call.1} parent=11 // pred_region
          %200 = vsyncadd [#allocation9], 0
          %s201 = sshll.u32 %s3, 4
          %s202 = int_to_ptr.hbm [resolvable:$true] %s201
          %s203 = sshll.u32 [#allocation8], 4
          %s204 = int_to_ptr.vmem [resolvable:$true] %s203
          %209 = dma.hbm_to_vmem [thread:$0]  %s202, 24576, %s204, [#allocation9], 128, 128, 8
        $region24: #{tpu_custom_call.1} parent=11 // pred_fallthru
          _
        // Predicated region
        $region25: #{tpu_custom_call.1} parent=11 // pred_check
          %p210 = pneg %p129
        $region26: #{tpu_custom_call.1} parent=11 // pred_check_branch
          %212 = sbr.rel (%p210) target = $region28
        $region27: #{tpu_custom_call.1} parent=11 // pred_region
          _
        $region28: #{tpu_custom_call.1} parent=11 // pred_fallthru
          _
      $region12: #{tpu_custom_call.1} parent=5 // pred_fallthru
        _
      %p213 = scmp.lt.s32.totalorder %s19, 2
      // Predicated region
      $region29: #{tpu_custom_call.1} parent=5 // pred_check
        %p214 = pneg %p213
      $region30: #{tpu_custom_call.1} parent=5 // pred_check_branch
        %216 = sbr.rel (%p214) target = $region32
      $region31: #{tpu_custom_call.1} parent=5 // pred_region
        // Predicated region
        $region33: #{tpu_custom_call.1} parent=31 // pred_check
          %p217 = pneg %p39
        $region34: #{tpu_custom_call.1} parent=31 // pred_check_branch
          %219 = sbr.rel (%p217) target = $region36
        $region35: #{tpu_custom_call.1} parent=31 // pred_region
          %s220 = sand.u32 %s29, 1
          %s221 = scalar_lea.sflag [#allocation3], %s220
          %s222 = sand.u32 %s29, 1
          %s223 = smul.addr %s222, 16
          %s224 = scalar_lea.vmem [#allocation2], %s223
          %s225 = smul.u32 2, %s19
          %227 = vsyncadd %s221, 0
          %s228 = smul.addr %s225, 2
          %s229 = smul.addr %s228, 4
          %s230 = scalar_lea.hbm %s0, %s229
          %s231 = sshll.u32 %s230, 4
          %s232 = int_to_ptr.hbm [resolvable:$true] %s231
          %s233 = sshll.u32 %s224, 4
          %s234 = int_to_ptr.vmem [resolvable:$true] %s233
          %239 = dma.hbm_to_vmem [thread:$0]  %s232, 256, %s234, %s221, 128, 128, 8
        $region36: #{tpu_custom_call.1} parent=31 // pred_fallthru
          _
      $region32: #{tpu_custom_call.1} parent=5 // pred_fallthru
        _
      %p240 = scmp.le.s32.totalorder 1, %s19
      %p241 = scmp.lt.s32.totalorder %s19, 3
      %p242 = pnand %p240, %p241
      %p243 = pneg %p242
      // Predicated region
      $region37: #{tpu_custom_call.1} parent=5 // pred_check
        _
      $region38: #{tpu_custom_call.1} parent=5 // pred_check_branch
        %245 = sbr.rel (%p242) target = $region40
      $region39: #{tpu_custom_call.1} parent=5 // pred_region
        %s246 = ssub.s32 %s19, 1
        %s247 = sand.u32 %s32, 1
        %s248 = scalar_lea.sflag [#allocation3], %s247
        %s249 = sand.u32 %s32, 1
        %s250 = smul.addr %s249, 16
        %s251 = scalar_lea.vmem [#allocation2], %s250
        // Predicated region
        $region41: #{tpu_custom_call.1} parent=39 // pred_check
          %p252 = pneg %p45
        $region42: #{tpu_custom_call.1} parent=39 // pred_check_branch
          %254 = sbr.rel (%p252) target = $region44
        $region43: #{tpu_custom_call.1} parent=39 // pred_region
          %256 = dma.done %s248, 256
        $region44: #{tpu_custom_call.1} parent=39 // pred_fallthru
          _
        // Predicated region
        $region45: #{tpu_custom_call.1} parent=39 // pred_check
          %p257 = pneg %p66
        $region46: #{tpu_custom_call.1} parent=39 // pred_check_branch
          %259 = sbr.rel (%p257) target = $region48
        $region47: #{tpu_custom_call.1} parent=39 // pred_region
          %261 = dma.done [#allocation6], 24576
        $region48: #{tpu_custom_call.1} parent=39 // pred_fallthru
          _
        // Predicated region
        $region49: #{tpu_custom_call.1} parent=39 // pred_check
          %p262 = pneg %p87
        $region50: #{tpu_custom_call.1} parent=39 // pred_check_branch
          %264 = sbr.rel (%p262) target = $region52
        $region51: #{tpu_custom_call.1} parent=39 // pred_region
          %266 = dma.done [#allocation6], 64
        $region52: #{tpu_custom_call.1} parent=39 // pred_fallthru
          _
        // Predicated region
        $region53: #{tpu_custom_call.1} parent=39 // pred_check
          %p267 = pneg %p108
        $region54: #{tpu_custom_call.1} parent=39 // pred_check_branch
          %269 = sbr.rel (%p267) target = $region56
        $region55: #{tpu_custom_call.1} parent=39 // pred_region
          %271 = dma.done [#allocation9], 24576
        $region56: #{tpu_custom_call.1} parent=39 // pred_fallthru
          _
        %s272 = sand.u32 %s32, 1
        %s273 = scalar_lea.sflag [#allocation3], %s272
        %s274 = sand.u32 %s32, 1
        %s275 = smul.addr %s274, 16
        %s276 = scalar_lea.vmem [#allocation2], %s275
        %p277 = pneg %p45
        %p278 = pneg %p42
        %p279 = pneg %p66
        %p280 = pneg %p63
        %p281 = pneg %p87
        %p282 = pneg %p84
        %p283 = pneg %p108
        %p284 = pneg %p105
        %p285 = pneg %p129
        %p286 = pneg %p126
        %p287 = pneg %p155
        %p288 = pneg %p152
        %s289 = sand.u32 %s142, 1
        %s290 = scalar_lea.sflag [#allocation4], %s289
        %s291 = sand.u32 %s142, 1
        %s292 = smul.addr %s291, 32
        %s293 = scalar_lea.vmem [#allocation10], %s292
        %s294 = smul.u32 2, %s24
        %s295 = smul.u32 2, %s24
        %v296 = vlaneseq
        %v297 = vshrl.u32 %v296, 7
        %v298 = vadd.s32 %v297, 8
        %vm299 = vcmp.lt.s32.totalorder %v297, 0
        %v300 = vsub.s32 0, %v297
        %v301 = vsel %vm299, %v300, %v297
        %v302 = vshrl.u32 %v301, 3
        %v303 = vand.u32 %v301, 7
        %v304 = vsub.s32 0, %v303
        %v305 = vsel %vm299, %v304, %v303
        %vm306 = vcmp.lt.s32.totalorder %v298, 0
        %v307 = vsub.s32 0, %v298
        %v308 = vsel %vm306, %v307, %v298
        %v309 = vshrl.u32 %v308, 3
        %v310 = vand.u32 %v308, 7
        %v311 = vsub.s32 0, %v310
        %v312 = vsel %vm306, %v311, %v310
        %vm313 = vcmp.ne.s32.totalorder %v305, 0
        %vm314 = vcmp.ne.s32.totalorder %v312, 0
        %vm315 = vcmp.lt.s32.totalorder %v305, 0
        %vm316 = vcmp.lt.s32.totalorder %v312, 0
        %vm317 = vmand %vm315, %vm313
        %vm318 = vmand %vm316, %vm314
        %v319 = vadd.s32 %v305, 8
        %v320 = vadd.s32 %v312, 8
        %v321 = vsel %vm317, %v319, %v305
        %v322 = vsel %vm318, %v320, %v312
        %vm323 = vcmp.eq.s32.totalorder %v321, 0
        %vm324 = vcmp.eq.s32.totalorder %v322, 0
        %vm325 = vcmp.eq.s32.totalorder %v321, 7
        %vm326 = vcmp.eq.s32.totalorder %v322, 7
        %v327 = vld [vmem:[%s251] sm:$0xff]
        %v328 = vld [vmem:[%s251 + $0x8] sm:$0xff]
        %v329 = vunpack.c.l.bf16 %v327
        %v330 = vunpack.c.h.bf16 %v327
        %v331 = vunpack.c.l.bf16 %v328
        %v332 = vunpack.c.h.bf16 %v328
        %v333 = vrot.slane %v329, 7
        %v334 = vrot.slane %v330, 7
        %v335 = vrot.slane %v331, 7
        %v336 = vrot.slane %v332, 7
        %vm337 = vcmp.lt.s32.totalorder %v297, 1
        %v338 = vsel %vm337, %v333, %v335
        %v339 = vsel %vm337, %v334, %v336
        %v340 = vsel %vm337, %v335, %v333
        %v341 = vsel %vm337, %v336, %v334
        %v342 = vsel %vm323, 1, 0
        %v343 = vsel %vm324, 1, 0
        %vm344 = vcmp.eq.s32.totalorder %v342, 1
        %vm345 = vcmp.eq.s32.totalorder %v343, 1
        %v346 = vsel %vm344, 0.0, %v340
        %v347 = vsel %vm344, 0.0, %v341
        %v348 = vsel %vm345, 0.0, %v338
        %v349 = vsel %vm345, 0.0, %v339
        %v350 = vpack.c.bf16 %v347, %v346
        %v351 = vpack.c.bf16 %v349, %v348
        %v352 = vrot.slane %v329, 1
        %v353 = vrot.slane %v330, 1
        %v354 = vrot.slane %v331, 1
        %v355 = vrot.slane %v332, 1
        %vm356 = vcmp.lt.s32.totalorder %v297, 7
        %v357 = vsel %vm356, %v352, %v354
        %v358 = vsel %vm356, %v353, %v355
        %v359 = vsel %vm356, %v354, %v352
        %v360 = vsel %vm356, %v355, %v353
        %v361 = vsel %vm325, 1, 0
        %v362 = vsel %vm326, 1, 0
        %vm363 = vcmp.eq.s32.totalorder %v361, 1
        %vm364 = vcmp.eq.s32.totalorder %v362, 1
        %v365 = vsel %vm363, 0.0, %v357
        %v366 = vsel %vm363, 0.0, %v358
        %v367 = vsel %vm364, 0.0, %v359
        %v368 = vsel %vm364, 0.0, %v360
        %v369 = vpack.c.bf16 %v366, %v365
        %v370 = vpack.c.bf16 %v368, %v367
        %v373 = vunpack.c.l.b16 %v350
        %v374 = vunpack.c.h.b16 %v350
        %v375 = vunpack.c.l.b16 %v351
        %v376 = vunpack.c.h.b16 %v351
        %v377 = vpack.c.b16 %v375, %v373
        %v378 = vpack.c.b16 %v376, %v374
        %v383 = vunpack.c.l.b16 %v327
        %v384 = vunpack.c.h.b16 %v327
        %v385 = vunpack.c.l.b16 %v328
        %v386 = vunpack.c.h.b16 %v328
        %v387 = vpack.c.b16 %v385, %v383
        %v388 = vpack.c.b16 %v386, %v384
        %v393 = vunpack.c.l.b16 %v369
        %v394 = vunpack.c.h.b16 %v369
        %v395 = vunpack.c.l.b16 %v370
        %v396 = vunpack.c.h.b16 %v370
        %v397 = vpack.c.b16 %v395, %v393
        %v398 = vpack.c.b16 %v396, %v394
        %v401 = vld [vmem:[#allocation5] sm:$0xff]
        %v402 = vld [vmem:[#allocation5 + $0x8] sm:$0xff]
        %v403 = vld [vmem:[#allocation5 + $0x10] sm:$0xff]
        %v404 = vld [vmem:[#allocation5 + $0x18] sm:$0xff]
        %v405 = vld [vmem:[#allocation5 + $0x20] sm:$0xff]
        %v406 = vld [vmem:[#allocation5 + $0x28] sm:$0xff]
        %v407 = vld [vmem:[#allocation5 + $0x30] sm:$0xff]
        %v408 = vld [vmem:[#allocation5 + $0x38] sm:$0xff]
        %v409 = vld [vmem:[#allocation5 + $0x40] sm:$0xff]
        %v410 = vld [vmem:[#allocation5 + $0x48] sm:$0xff]
        %v411 = vld [vmem:[#allocation5 + $0x50] sm:$0xff]
        %v412 = vld [vmem:[#allocation5 + $0x58] sm:$0xff]
        %v413 = vld [vmem:[#allocation5 + $0x60] sm:$0xff]
        %v414 = vld [vmem:[#allocation5 + $0x68] sm:$0xff]
        %v415 = vld [vmem:[#allocation5 + $0x70] sm:$0xff]
        %v416 = vld [vmem:[#allocation5 + $0x78] sm:$0xff]
        %v417 = vld [vmem:[#allocation5 + $0x80] sm:$0xff]
        %v418 = vld [vmem:[#allocation5 + $0x88] sm:$0xff]
        %v419 = vld [vmem:[#allocation5 + $0x90] sm:$0xff]
        %v420 = vld [vmem:[#allocation5 + $0x98] sm:$0xff]
        %v421 = vld [vmem:[#allocation5 + $0xa0] sm:$0xff]
        %v422 = vld [vmem:[#allocation5 + $0xa8] sm:$0xff]
        %v423 = vld [vmem:[#allocation5 + $0xb0] sm:$0xff]
        %v424 = vld [vmem:[#allocation5 + $0xb8] sm:$0xff]
        %v425 = vld [vmem:[#allocation5 + $0xc0] sm:$0xff]
        %v426 = vld [vmem:[#allocation5 + $0xc8] sm:$0xff]
        %v427 = vld [vmem:[#allocation5 + $0xd0] sm:$0xff]
        %v428 = vld [vmem:[#allocation5 + $0xd8] sm:$0xff]
        %v429 = vld [vmem:[#allocation5 + $0xe0] sm:$0xff]
        %v430 = vld [vmem:[#allocation5 + $0xe8] sm:$0xff]
        %v431 = vld [vmem:[#allocation5 + $0xf0] sm:$0xff]
        %v432 = vld [vmem:[#allocation5 + $0xf8] sm:$0xff]
        %v433 = vld [vmem:[#allocation5 + $0x100] sm:$0xff]
        %v434 = vld [vmem:[#allocation5 + $0x108] sm:$0xff]
        %v435 = vld [vmem:[#allocation5 + $0x110] sm:$0xff]
        %v436 = vld [vmem:[#allocation5 + $0x118] sm:$0xff]
        %v437 = vld [vmem:[#allocation5 + $0x120] sm:$0xff]
        %v438 = vld [vmem:[#allocation5 + $0x128] sm:$0xff]
        %v439 = vld [vmem:[#allocation5 + $0x130] sm:$0xff]
        %v440 = vld [vmem:[#allocation5 + $0x138] sm:$0xff]
        %v441 = vld [vmem:[#allocation5 + $0x140] sm:$0xff]
        %v442 = vld [vmem:[#allocation5 + $0x148] sm:$0xff]
        %v443 = vld [vmem:[#allocation5 + $0x150] sm:$0xff]
        %v444 = vld [vmem:[#allocation5 + $0x158] sm:$0xff]
        %v445 = vld [vmem:[#allocation5 + $0x160] sm:$0xff]
        %v446 = vld [vmem:[#allocation5 + $0x168] sm:$0xff]
        %v447 = vld [vmem:[#allocation5 + $0x170] sm:$0xff]
        %v448 = vld [vmem:[#allocation5 + $0x178] sm:$0xff]
        %v449 = vld [vmem:[#allocation5 + $0x180] sm:$0xff]
        %v450 = vld [vmem:[#allocation5 + $0x188] sm:$0xff]
        %v451 = vld [vmem:[#allocation5 + $0x190] sm:$0xff]
        %v452 = vld [vmem:[#allocation5 + $0x198] sm:$0xff]
        %v453 = vld [vmem:[#allocation5 + $0x1a0] sm:$0xff]
        %v454 = vld [vmem:[#allocation5 + $0x1a8] sm:$0xff]
        %v455 = vld [vmem:[#allocation5 + $0x1b0] sm:$0xff]
        %v456 = vld [vmem:[#allocation5 + $0x1b8] sm:$0xff]
        %v457 = vld [vmem:[#allocation5 + $0x1c0] sm:$0xff]
        %v458 = vld [vmem:[#allocation5 + $0x1c8] sm:$0xff]
        %v459 = vld [vmem:[#allocation5 + $0x1d0] sm:$0xff]
        %v460 = vld [vmem:[#allocation5 + $0x1d8] sm:$0xff]
        %v461 = vld [vmem:[#allocation5 + $0x1e0] sm:$0xff]
        %v462 = vld [vmem:[#allocation5 + $0x1e8] sm:$0xff]
        %v463 = vld [vmem:[#allocation5 + $0x1f0] sm:$0xff]
        %v464 = vld [vmem:[#allocation5 + $0x1f8] sm:$0xff]
        %v465 = vld [vmem:[#allocation5 + $0x200] sm:$0xff]
        %v466 = vld [vmem:[#allocation5 + $0x208] sm:$0xff]
        %v467 = vld [vmem:[#allocation5 + $0x210] sm:$0xff]
        %v468 = vld [vmem:[#allocation5 + $0x218] sm:$0xff]
        %v469 = vld [vmem:[#allocation5 + $0x220] sm:$0xff]
        %v470 = vld [vmem:[#allocation5 + $0x228] sm:$0xff]
        %v471 = vld [vmem:[#allocation5 + $0x230] sm:$0xff]
        %v472 = vld [vmem:[#allocation5 + $0x238] sm:$0xff]
        %v473 = vld [vmem:[#allocation5 + $0x240] sm:$0xff]
        %v474 = vld [vmem:[#allocation5 + $0x248] sm:$0xff]
        %v475 = vld [vmem:[#allocation5 + $0x250] sm:$0xff]
        %v476 = vld [vmem:[#allocation5 + $0x258] sm:$0xff]
        %v477 = vld [vmem:[#allocation5 + $0x260] sm:$0xff]
        %v478 = vld [vmem:[#allocation5 + $0x268] sm:$0xff]
        %v479 = vld [vmem:[#allocation5 + $0x270] sm:$0xff]
        %v480 = vld [vmem:[#allocation5 + $0x278] sm:$0xff]
        %v481 = vld [vmem:[#allocation5 + $0x280] sm:$0xff]
        %v482 = vld [vmem:[#allocation5 + $0x288] sm:$0xff]
        %v483 = vld [vmem:[#allocation5 + $0x290] sm:$0xff]
        %v484 = vld [vmem:[#allocation5 + $0x298] sm:$0xff]
        %v485 = vld [vmem:[#allocation5 + $0x2a0] sm:$0xff]
        %v486 = vld [vmem:[#allocation5 + $0x2a8] sm:$0xff]
        %v487 = vld [vmem:[#allocation5 + $0x2b0] sm:$0xff]
        %v488 = vld [vmem:[#allocation5 + $0x2b8] sm:$0xff]
        %v489 = vld [vmem:[#allocation5 + $0x2c0] sm:$0xff]
        %v490 = vld [vmem:[#allocation5 + $0x2c8] sm:$0xff]
        %v491 = vld [vmem:[#allocation5 + $0x2d0] sm:$0xff]
        %v492 = vld [vmem:[#allocation5 + $0x2d8] sm:$0xff]
        %v493 = vld [vmem:[#allocation5 + $0x2e0] sm:$0xff]
        %v494 = vld [vmem:[#allocation5 + $0x2e8] sm:$0xff]
        %v495 = vld [vmem:[#allocation5 + $0x2f0] sm:$0xff]
        %v496 = vld [vmem:[#allocation5 + $0x2f8] sm:$0xff]
        %v497 = vld [vmem:[#allocation5 + $0x300] sm:$0xff]
        %v498 = vld [vmem:[#allocation5 + $0x308] sm:$0xff]
        %v499 = vld [vmem:[#allocation5 + $0x310] sm:$0xff]
        %v500 = vld [vmem:[#allocation5 + $0x318] sm:$0xff]
        %v501 = vld [vmem:[#allocation5 + $0x320] sm:$0xff]
        %v502 = vld [vmem:[#allocation5 + $0x328] sm:$0xff]
        %v503 = vld [vmem:[#allocation5 + $0x330] sm:$0xff]
        %v504 = vld [vmem:[#allocation5 + $0x338] sm:$0xff]
        %v505 = vld [vmem:[#allocation5 + $0x340] sm:$0xff]
        %v506 = vld [vmem:[#allocation5 + $0x348] sm:$0xff]
        %v507 = vld [vmem:[#allocation5 + $0x350] sm:$0xff]
        %v508 = vld [vmem:[#allocation5 + $0x358] sm:$0xff]
        %v509 = vld [vmem:[#allocation5 + $0x360] sm:$0xff]
        %v510 = vld [vmem:[#allocation5 + $0x368] sm:$0xff]
        %v511 = vld [vmem:[#allocation5 + $0x370] sm:$0xff]
        %v512 = vld [vmem:[#allocation5 + $0x378] sm:$0xff]
        %v513 = vld [vmem:[#allocation5 + $0x380] sm:$0xff]
        %v514 = vld [vmem:[#allocation5 + $0x388] sm:$0xff]
        %v515 = vld [vmem:[#allocation5 + $0x390] sm:$0xff]
        %v516 = vld [vmem:[#allocation5 + $0x398] sm:$0xff]
        %v517 = vld [vmem:[#allocation5 + $0x3a0] sm:$0xff]
        %v518 = vld [vmem:[#allocation5 + $0x3a8] sm:$0xff]
        %v519 = vld [vmem:[#allocation5 + $0x3b0] sm:$0xff]
        %v520 = vld [vmem:[#allocation5 + $0x3b8] sm:$0xff]
        %v521 = vld [vmem:[#allocation5 + $0x3c0] sm:$0xff]
        %v522 = vld [vmem:[#allocation5 + $0x3c8] sm:$0xff]
        %v523 = vld [vmem:[#allocation5 + $0x3d0] sm:$0xff]
        %v524 = vld [vmem:[#allocation5 + $0x3d8] sm:$0xff]
        %v525 = vld [vmem:[#allocation5 + $0x3e0] sm:$0xff]
        %v526 = vld [vmem:[#allocation5 + $0x3e8] sm:$0xff]
        %v527 = vld [vmem:[#allocation5 + $0x3f0] sm:$0xff]
        %v528 = vld [vmem:[#allocation5 + $0x3f8] sm:$0xff]
        %v529 = vld [vmem:[#allocation5 + $0x400] sm:$0xff]
        %v530 = vld [vmem:[#allocation5 + $0x408] sm:$0xff]
        %v531 = vld [vmem:[#allocation5 + $0x410] sm:$0xff]
        %v532 = vld [vmem:[#allocation5 + $0x418] sm:$0xff]
        %v533 = vld [vmem:[#allocation5 + $0x420] sm:$0xff]
        %v534 = vld [vmem:[#allocation5 + $0x428] sm:$0xff]
        %v535 = vld [vmem:[#allocation5 + $0x430] sm:$0xff]
        %v536 = vld [vmem:[#allocation5 + $0x438] sm:$0xff]
        %v537 = vld [vmem:[#allocation5 + $0x440] sm:$0xff]
        %v538 = vld [vmem:[#allocation5 + $0x448] sm:$0xff]
        %v539 = vld [vmem:[#allocation5 + $0x450] sm:$0xff]
        %v540 = vld [vmem:[#allocation5 + $0x458] sm:$0xff]
        %v541 = vld [vmem:[#allocation5 + $0x460] sm:$0xff]
        %v542 = vld [vmem:[#allocation5 + $0x468] sm:$0xff]
        %v543 = vld [vmem:[#allocation5 + $0x470] sm:$0xff]
        %v544 = vld [vmem:[#allocation5 + $0x478] sm:$0xff]
        %v545 = vld [vmem:[#allocation5 + $0x480] sm:$0xff]
        %v546 = vld [vmem:[#allocation5 + $0x488] sm:$0xff]
        %v547 = vld [vmem:[#allocation5 + $0x490] sm:$0xff]
        %v548 = vld [vmem:[#allocation5 + $0x498] sm:$0xff]
        %v549 = vld [vmem:[#allocation5 + $0x4a0] sm:$0xff]
        %v550 = vld [vmem:[#allocation5 + $0x4a8] sm:$0xff]
        %v551 = vld [vmem:[#allocation5 + $0x4b0] sm:$0xff]
        %v552 = vld [vmem:[#allocation5 + $0x4b8] sm:$0xff]
        %v553 = vld [vmem:[#allocation5 + $0x4c0] sm:$0xff]
        %v554 = vld [vmem:[#allocation5 + $0x4c8] sm:$0xff]
        %v555 = vld [vmem:[#allocation5 + $0x4d0] sm:$0xff]
        %v556 = vld [vmem:[#allocation5 + $0x4d8] sm:$0xff]
        %v557 = vld [vmem:[#allocation5 + $0x4e0] sm:$0xff]
        %v558 = vld [vmem:[#allocation5 + $0x4e8] sm:$0xff]
        %v559 = vld [vmem:[#allocation5 + $0x4f0] sm:$0xff]
        %v560 = vld [vmem:[#allocation5 + $0x4f8] sm:$0xff]
        %v561 = vld [vmem:[#allocation5 + $0x500] sm:$0xff]
        %v562 = vld [vmem:[#allocation5 + $0x508] sm:$0xff]
        %v563 = vld [vmem:[#allocation5 + $0x510] sm:$0xff]
        %v564 = vld [vmem:[#allocation5 + $0x518] sm:$0xff]
        %v565 = vld [vmem:[#allocation5 + $0x520] sm:$0xff]
        %v566 = vld [vmem:[#allocation5 + $0x528] sm:$0xff]
        %v567 = vld [vmem:[#allocation5 + $0x530] sm:$0xff]
        %v568 = vld [vmem:[#allocation5 + $0x538] sm:$0xff]
        %v569 = vld [vmem:[#allocation5 + $0x540] sm:$0xff]
        %v570 = vld [vmem:[#allocation5 + $0x548] sm:$0xff]
        %v571 = vld [vmem:[#allocation5 + $0x550] sm:$0xff]
        %v572 = vld [vmem:[#allocation5 + $0x558] sm:$0xff]
        %v573 = vld [vmem:[#allocation5 + $0x560] sm:$0xff]
        %v574 = vld [vmem:[#allocation5 + $0x568] sm:$0xff]
        %v575 = vld [vmem:[#allocation5 + $0x570] sm:$0xff]
        %v576 = vld [vmem:[#allocation5 + $0x578] sm:$0xff]
        %v577 = vld [vmem:[#allocation5 + $0x580] sm:$0xff]
        %v578 = vld [vmem:[#allocation5 + $0x588] sm:$0xff]
        %v579 = vld [vmem:[#allocation5 + $0x590] sm:$0xff]
        %v580 = vld [vmem:[#allocation5 + $0x598] sm:$0xff]
        %v581 = vld [vmem:[#allocation5 + $0x5a0] sm:$0xff]
        %v582 = vld [vmem:[#allocation5 + $0x5a8] sm:$0xff]
        %v583 = vld [vmem:[#allocation5 + $0x5b0] sm:$0xff]
        %v584 = vld [vmem:[#allocation5 + $0x5b8] sm:$0xff]
        %v585 = vld [vmem:[#allocation5 + $0x5c0] sm:$0xff]
        %v586 = vld [vmem:[#allocation5 + $0x5c8] sm:$0xff]
        %v587 = vld [vmem:[#allocation5 + $0x5d0] sm:$0xff]
        %v588 = vld [vmem:[#allocation5 + $0x5d8] sm:$0xff]
        %v589 = vld [vmem:[#allocation5 + $0x5e0] sm:$0xff]
        %v590 = vld [vmem:[#allocation5 + $0x5e8] sm:$0xff]
        %v591 = vld [vmem:[#allocation5 + $0x5f0] sm:$0xff]
        %v592 = vld [vmem:[#allocation5 + $0x5f8] sm:$0xff]
        %v593 = vld [vmem:[#allocation7] sm:$0xf]
        %v595 = vperm.slane %v593, 0
        %v596 = vperm.slane %v593, 1
        %v597 = vperm.slane %v593, 2
        %v598 = vperm.slane %v593, 3
        %v795 = vunpack.c.l.b16 %v401
        %v796 = vunpack.c.h.b16 %v401
        %v797 = vunpack.c.l.b16 %v402
        %v798 = vunpack.c.h.b16 %v402
        %v799 = vunpack.c.l.b16 %v403
        %v800 = vunpack.c.h.b16 %v403
        %v801 = vunpack.c.l.b16 %v404
        %v802 = vunpack.c.h.b16 %v404
        %v803 = vunpack.c.l.b16 %v405
        %v804 = vunpack.c.h.b16 %v405
        %v805 = vunpack.c.l.b16 %v406
        %v806 = vunpack.c.h.b16 %v406
        %v807 = vunpack.c.l.b16 %v407
        %v808 = vunpack.c.h.b16 %v407
        %v809 = vunpack.c.l.b16 %v408
        %v810 = vunpack.c.h.b16 %v408
        %v811 = vunpack.c.l.b16 %v409
        %v812 = vunpack.c.h.b16 %v409
        %v813 = vunpack.c.l.b16 %v410
        %v814 = vunpack.c.h.b16 %v410
        %v815 = vunpack.c.l.b16 %v411
        %v816 = vunpack.c.h.b16 %v411
        %v817 = vunpack.c.l.b16 %v412
        %v818 = vunpack.c.h.b16 %v412
        %v819 = vunpack.c.l.b16 %v413
        %v820 = vunpack.c.h.b16 %v413
        %v821 = vunpack.c.l.b16 %v414
        %v822 = vunpack.c.h.b16 %v414
        %v823 = vunpack.c.l.b16 %v415
        %v824 = vunpack.c.h.b16 %v415
        %v825 = vunpack.c.l.b16 %v416
        %v826 = vunpack.c.h.b16 %v416
        %v827 = vunpack.c.l.b16 %v417
        %v828 = vunpack.c.h.b16 %v417
        %v829 = vunpack.c.l.b16 %v418
        %v830 = vunpack.c.h.b16 %v418
        %v831 = vunpack.c.l.b16 %v419
        %v832 = vunpack.c.h.b16 %v419
        %v833 = vunpack.c.l.b16 %v420
        %v834 = vunpack.c.h.b16 %v420
        %v835 = vunpack.c.l.b16 %v421
        %v836 = vunpack.c.h.b16 %v421
        %v837 = vunpack.c.l.b16 %v422
        %v838 = vunpack.c.h.b16 %v422
        %v839 = vunpack.c.l.b16 %v423
        %v840 = vunpack.c.h.b16 %v423
        %v841 = vunpack.c.l.b16 %v424
        %v842 = vunpack.c.h.b16 %v424
        %v843 = vunpack.c.l.b16 %v425
        %v844 = vunpack.c.h.b16 %v425
        %v845 = vunpack.c.l.b16 %v426
        %v846 = vunpack.c.h.b16 %v426
        %v847 = vunpack.c.l.b16 %v427
        %v848 = vunpack.c.h.b16 %v427
        %v849 = vunpack.c.l.b16 %v428
        %v850 = vunpack.c.h.b16 %v428
        %v851 = vunpack.c.l.b16 %v429
        %v852 = vunpack.c.h.b16 %v429
        %v853 = vunpack.c.l.b16 %v430
        %v854 = vunpack.c.h.b16 %v430
        %v855 = vunpack.c.l.b16 %v431
        %v856 = vunpack.c.h.b16 %v431
        %v857 = vunpack.c.l.b16 %v432
        %v858 = vunpack.c.h.b16 %v432
        %v859 = vunpack.c.l.b16 %v433
        %v860 = vunpack.c.h.b16 %v433
        %v861 = vunpack.c.l.b16 %v434
        %v862 = vunpack.c.h.b16 %v434
        %v863 = vunpack.c.l.b16 %v435
        %v864 = vunpack.c.h.b16 %v435
        %v865 = vunpack.c.l.b16 %v436
        %v866 = vunpack.c.h.b16 %v436
        %v867 = vunpack.c.l.b16 %v437
        %v868 = vunpack.c.h.b16 %v437
        %v869 = vunpack.c.l.b16 %v438
        %v870 = vunpack.c.h.b16 %v438
        %v871 = vunpack.c.l.b16 %v439
        %v872 = vunpack.c.h.b16 %v439
        %v873 = vunpack.c.l.b16 %v440
        %v874 = vunpack.c.h.b16 %v440
        %v875 = vunpack.c.l.b16 %v441
        %v876 = vunpack.c.h.b16 %v441
        %v877 = vunpack.c.l.b16 %v442
        %v878 = vunpack.c.h.b16 %v442
        %v879 = vunpack.c.l.b16 %v443
        %v880 = vunpack.c.h.b16 %v443
        %v881 = vunpack.c.l.b16 %v444
        %v882 = vunpack.c.h.b16 %v444
        %v883 = vunpack.c.l.b16 %v445
        %v884 = vunpack.c.h.b16 %v445
        %v885 = vunpack.c.l.b16 %v446
        %v886 = vunpack.c.h.b16 %v446
        %v887 = vunpack.c.l.b16 %v447
        %v888 = vunpack.c.h.b16 %v447
        %v889 = vunpack.c.l.b16 %v448
        %v890 = vunpack.c.h.b16 %v448
        %v891 = vunpack.c.l.b16 %v449
        %v892 = vunpack.c.h.b16 %v449
        %v893 = vunpack.c.l.b16 %v450
        %v894 = vunpack.c.h.b16 %v450
        %v895 = vunpack.c.l.b16 %v451
        %v896 = vunpack.c.h.b16 %v451
        %v897 = vunpack.c.l.b16 %v452
        %v898 = vunpack.c.h.b16 %v452
        %v899 = vunpack.c.l.b16 %v453
        %v900 = vunpack.c.h.b16 %v453
        %v901 = vunpack.c.l.b16 %v454
        %v902 = vunpack.c.h.b16 %v454
        %v903 = vunpack.c.l.b16 %v455
        %v904 = vunpack.c.h.b16 %v455
        %v905 = vunpack.c.l.b16 %v456
        %v906 = vunpack.c.h.b16 %v456
        %v907 = vunpack.c.l.b16 %v457
        %v908 = vunpack.c.h.b16 %v457
        %v909 = vunpack.c.l.b16 %v458
        %v910 = vunpack.c.h.b16 %v458
        %v911 = vunpack.c.l.b16 %v459
        %v912 = vunpack.c.h.b16 %v459
        %v913 = vunpack.c.l.b16 %v460
        %v914 = vunpack.c.h.b16 %v460
        %v915 = vunpack.c.l.b16 %v461
        %v916 = vunpack.c.h.b16 %v461
        %v917 = vunpack.c.l.b16 %v462
        %v918 = vunpack.c.h.b16 %v462
        %v919 = vunpack.c.l.b16 %v463
        %v920 = vunpack.c.h.b16 %v463
        %v921 = vunpack.c.l.b16 %v464
        %v922 = vunpack.c.h.b16 %v464
        %v923 = vunpack.c.l.b16 %v465
        %v924 = vunpack.c.h.b16 %v465
        %v925 = vunpack.c.l.b16 %v466
        %v926 = vunpack.c.h.b16 %v466
        %v927 = vunpack.c.l.b16 %v467
        %v928 = vunpack.c.h.b16 %v467
        %v929 = vunpack.c.l.b16 %v468
        %v930 = vunpack.c.h.b16 %v468
        %v931 = vunpack.c.l.b16 %v469
        %v932 = vunpack.c.h.b16 %v469
        %v933 = vunpack.c.l.b16 %v470
        %v934 = vunpack.c.h.b16 %v470
        %v935 = vunpack.c.l.b16 %v471
        %v936 = vunpack.c.h.b16 %v471
        %v937 = vunpack.c.l.b16 %v472
        %v938 = vunpack.c.h.b16 %v472
        %v939 = vunpack.c.l.b16 %v473
        %v940 = vunpack.c.h.b16 %v473
        %v941 = vunpack.c.l.b16 %v474
        %v942 = vunpack.c.h.b16 %v474
        %v943 = vunpack.c.l.b16 %v475
        %v944 = vunpack.c.h.b16 %v475
        %v945 = vunpack.c.l.b16 %v476
        %v946 = vunpack.c.h.b16 %v476
        %v947 = vunpack.c.l.b16 %v477
        %v948 = vunpack.c.h.b16 %v477
        %v949 = vunpack.c.l.b16 %v478
        %v950 = vunpack.c.h.b16 %v478
        %v951 = vunpack.c.l.b16 %v479
        %v952 = vunpack.c.h.b16 %v479
        %v953 = vunpack.c.l.b16 %v480
        %v954 = vunpack.c.h.b16 %v480
        %v955 = vunpack.c.l.b16 %v481
        %v956 = vunpack.c.h.b16 %v481
        %v957 = vunpack.c.l.b16 %v482
        %v958 = vunpack.c.h.b16 %v482
        %v959 = vunpack.c.l.b16 %v483
        %v960 = vunpack.c.h.b16 %v483
        %v961 = vunpack.c.l.b16 %v484
        %v962 = vunpack.c.h.b16 %v484
        %v963 = vunpack.c.l.b16 %v485
        %v964 = vunpack.c.h.b16 %v485
        %v965 = vunpack.c.l.b16 %v486
        %v966 = vunpack.c.h.b16 %v486
        %v967 = vunpack.c.l.b16 %v487
        %v968 = vunpack.c.h.b16 %v487
        %v969 = vunpack.c.l.b16 %v488
        %v970 = vunpack.c.h.b16 %v488
        %v971 = vunpack.c.l.b16 %v489
        %v972 = vunpack.c.h.b16 %v489
        %v973 = vunpack.c.l.b16 %v490
        %v974 = vunpack.c.h.b16 %v490
        %v975 = vunpack.c.l.b16 %v491
        %v976 = vunpack.c.h.b16 %v491
        %v977 = vunpack.c.l.b16 %v492
        %v978 = vunpack.c.h.b16 %v492
        %v979 = vunpack.c.l.b16 %v493
        %v980 = vunpack.c.h.b16 %v493
        %v981 = vunpack.c.l.b16 %v494
        %v982 = vunpack.c.h.b16 %v494
        %v983 = vunpack.c.l.b16 %v495
        %v984 = vunpack.c.h.b16 %v495
        %v985 = vunpack.c.l.b16 %v496
        %v986 = vunpack.c.h.b16 %v496
        %v987 = vunpack.c.l.b16 %v497
        %v988 = vunpack.c.h.b16 %v497
        %v989 = vunpack.c.l.b16 %v498
        %v990 = vunpack.c.h.b16 %v498
        %v991 = vunpack.c.l.b16 %v499
        %v992 = vunpack.c.h.b16 %v499
        %v993 = vunpack.c.l.b16 %v500
        %v994 = vunpack.c.h.b16 %v500
        %v995 = vunpack.c.l.b16 %v501
        %v996 = vunpack.c.h.b16 %v501
        %v997 = vunpack.c.l.b16 %v502
        %v998 = vunpack.c.h.b16 %v502
        %v999 = vunpack.c.l.b16 %v503
        %v1000 = vunpack.c.h.b16 %v503
        %v1001 = vunpack.c.l.b16 %v504
        %v1002 = vunpack.c.h.b16 %v504
        %v1003 = vunpack.c.l.b16 %v505
        %v1004 = vunpack.c.h.b16 %v505
        %v1005 = vunpack.c.l.b16 %v506
        %v1006 = vunpack.c.h.b16 %v506
        %v1007 = vunpack.c.l.b16 %v507
        %v1008 = vunpack.c.h.b16 %v507
        %v1009 = vunpack.c.l.b16 %v508
        %v1010 = vunpack.c.h.b16 %v508
        %v1011 = vunpack.c.l.b16 %v509
        %v1012 = vunpack.c.h.b16 %v509
        %v1013 = vunpack.c.l.b16 %v510
        %v1014 = vunpack.c.h.b16 %v510
        %v1015 = vunpack.c.l.b16 %v511
        %v1016 = vunpack.c.h.b16 %v511
        %v1017 = vunpack.c.l.b16 %v512
        %v1018 = vunpack.c.h.b16 %v512
        %v1019 = vunpack.c.l.b16 %v513
        %v1020 = vunpack.c.h.b16 %v513
        %v1021 = vunpack.c.l.b16 %v514
        %v1022 = vunpack.c.h.b16 %v514
        %v1023 = vunpack.c.l.b16 %v515
        %v1024 = vunpack.c.h.b16 %v515
        %v1025 = vunpack.c.l.b16 %v516
        %v1026 = vunpack.c.h.b16 %v516
        %v1027 = vunpack.c.l.b16 %v517
        %v1028 = vunpack.c.h.b16 %v517
        %v1029 = vunpack.c.l.b16 %v518
        %v1030 = vunpack.c.h.b16 %v518
        %v1031 = vunpack.c.l.b16 %v519
        %v1032 = vunpack.c.h.b16 %v519
        %v1033 = vunpack.c.l.b16 %v520
        %v1034 = vunpack.c.h.b16 %v520
        %v1035 = vunpack.c.l.b16 %v521
        %v1036 = vunpack.c.h.b16 %v521
        %v1037 = vunpack.c.l.b16 %v522
        %v1038 = vunpack.c.h.b16 %v522
        %v1039 = vunpack.c.l.b16 %v523
        %v1040 = vunpack.c.h.b16 %v523
        %v1041 = vunpack.c.l.b16 %v524
        %v1042 = vunpack.c.h.b16 %v524
        %v1043 = vunpack.c.l.b16 %v525
        %v1044 = vunpack.c.h.b16 %v525
        %v1045 = vunpack.c.l.b16 %v526
        %v1046 = vunpack.c.h.b16 %v526
        %v1047 = vunpack.c.l.b16 %v527
        %v1048 = vunpack.c.h.b16 %v527
        %v1049 = vunpack.c.l.b16 %v528
        %v1050 = vunpack.c.h.b16 %v528
        %v1051 = vunpack.c.l.b16 %v529
        %v1052 = vunpack.c.h.b16 %v529
        %v1053 = vunpack.c.l.b16 %v530
        %v1054 = vunpack.c.h.b16 %v530
        %v1055 = vunpack.c.l.b16 %v531
        %v1056 = vunpack.c.h.b16 %v531
        %v1057 = vunpack.c.l.b16 %v532
        %v1058 = vunpack.c.h.b16 %v532
        %v1059 = vunpack.c.l.b16 %v533
        %v1060 = vunpack.c.h.b16 %v533
        %v1061 = vunpack.c.l.b16 %v534
        %v1062 = vunpack.c.h.b16 %v534
        %v1063 = vunpack.c.l.b16 %v535
        %v1064 = vunpack.c.h.b16 %v535
        %v1065 = vunpack.c.l.b16 %v536
        %v1066 = vunpack.c.h.b16 %v536
        %v1067 = vunpack.c.l.b16 %v537
        %v1068 = vunpack.c.h.b16 %v537
        %v1069 = vunpack.c.l.b16 %v538
        %v1070 = vunpack.c.h.b16 %v538
        %v1071 = vunpack.c.l.b16 %v539
        %v1072 = vunpack.c.h.b16 %v539
        %v1073 = vunpack.c.l.b16 %v540
        %v1074 = vunpack.c.h.b16 %v540
        %v1075 = vunpack.c.l.b16 %v541
        %v1076 = vunpack.c.h.b16 %v541
        %v1077 = vunpack.c.l.b16 %v542
        %v1078 = vunpack.c.h.b16 %v542
        %v1079 = vunpack.c.l.b16 %v543
        %v1080 = vunpack.c.h.b16 %v543
        %v1081 = vunpack.c.l.b16 %v544
        %v1082 = vunpack.c.h.b16 %v544
        %v1083 = vunpack.c.l.b16 %v545
        %v1084 = vunpack.c.h.b16 %v545
        %v1085 = vunpack.c.l.b16 %v546
        %v1086 = vunpack.c.h.b16 %v546
        %v1087 = vunpack.c.l.b16 %v547
        %v1088 = vunpack.c.h.b16 %v547
        %v1089 = vunpack.c.l.b16 %v548
        %v1090 = vunpack.c.h.b16 %v548
        %v1091 = vunpack.c.l.b16 %v549
        %v1092 = vunpack.c.h.b16 %v549
        %v1093 = vunpack.c.l.b16 %v550
        %v1094 = vunpack.c.h.b16 %v550
        %v1095 = vunpack.c.l.b16 %v551
        %v1096 = vunpack.c.h.b16 %v551
        %v1097 = vunpack.c.l.b16 %v552
        %v1098 = vunpack.c.h.b16 %v552
        %v1099 = vunpack.c.l.b16 %v553
        %v1100 = vunpack.c.h.b16 %v553
        %v1101 = vunpack.c.l.b16 %v554
        %v1102 = vunpack.c.h.b16 %v554
        %v1103 = vunpack.c.l.b16 %v555
        %v1104 = vunpack.c.h.b16 %v555
        %v1105 = vunpack.c.l.b16 %v556
        %v1106 = vunpack.c.h.b16 %v556
        %v1107 = vunpack.c.l.b16 %v557
        %v1108 = vunpack.c.h.b16 %v557
        %v1109 = vunpack.c.l.b16 %v558
        %v1110 = vunpack.c.h.b16 %v558
        %v1111 = vunpack.c.l.b16 %v559
        %v1112 = vunpack.c.h.b16 %v559
        %v1113 = vunpack.c.l.b16 %v560
        %v1114 = vunpack.c.h.b16 %v560
        %v1115 = vunpack.c.l.b16 %v561
        %v1116 = vunpack.c.h.b16 %v561
        %v1117 = vunpack.c.l.b16 %v562
        %v1118 = vunpack.c.h.b16 %v562
        %v1119 = vunpack.c.l.b16 %v563
        %v1120 = vunpack.c.h.b16 %v563
        %v1121 = vunpack.c.l.b16 %v564
        %v1122 = vunpack.c.h.b16 %v564
        %v1123 = vunpack.c.l.b16 %v565
        %v1124 = vunpack.c.h.b16 %v565
        %v1125 = vunpack.c.l.b16 %v566
        %v1126 = vunpack.c.h.b16 %v566
        %v1127 = vunpack.c.l.b16 %v567
        %v1128 = vunpack.c.h.b16 %v567
        %v1129 = vunpack.c.l.b16 %v568
        %v1130 = vunpack.c.h.b16 %v568
        %v1131 = vunpack.c.l.b16 %v569
        %v1132 = vunpack.c.h.b16 %v569
        %v1133 = vunpack.c.l.b16 %v570
        %v1134 = vunpack.c.h.b16 %v570
        %v1135 = vunpack.c.l.b16 %v571
        %v1136 = vunpack.c.h.b16 %v571
        %v1137 = vunpack.c.l.b16 %v572
        %v1138 = vunpack.c.h.b16 %v572
        %v1139 = vunpack.c.l.b16 %v573
        %v1140 = vunpack.c.h.b16 %v573
        %v1141 = vunpack.c.l.b16 %v574
        %v1142 = vunpack.c.h.b16 %v574
        %v1143 = vunpack.c.l.b16 %v575
        %v1144 = vunpack.c.h.b16 %v575
        %v1145 = vunpack.c.l.b16 %v576
        %v1146 = vunpack.c.h.b16 %v576
        %v1147 = vunpack.c.l.b16 %v577
        %v1148 = vunpack.c.h.b16 %v577
        %v1149 = vunpack.c.l.b16 %v578
        %v1150 = vunpack.c.h.b16 %v578
        %v1151 = vunpack.c.l.b16 %v579
        %v1152 = vunpack.c.h.b16 %v579
        %v1153 = vunpack.c.l.b16 %v580
        %v1154 = vunpack.c.h.b16 %v580
        %v1155 = vunpack.c.l.b16 %v581
        %v1156 = vunpack.c.h.b16 %v581
        %v1157 = vunpack.c.l.b16 %v582
        %v1158 = vunpack.c.h.b16 %v582
        %v1159 = vunpack.c.l.b16 %v583
        %v1160 = vunpack.c.h.b16 %v583
        %v1161 = vunpack.c.l.b16 %v584
        %v1162 = vunpack.c.h.b16 %v584
        %v1163 = vunpack.c.l.b16 %v585
        %v1164 = vunpack.c.h.b16 %v585
        %v1165 = vunpack.c.l.b16 %v586
        %v1166 = vunpack.c.h.b16 %v586
        %v1167 = vunpack.c.l.b16 %v587
        %v1168 = vunpack.c.h.b16 %v587
        %v1169 = vunpack.c.l.b16 %v588
        %v1170 = vunpack.c.h.b16 %v588
        %v1171 = vunpack.c.l.b16 %v589
        %v1172 = vunpack.c.h.b16 %v589
        %v1173 = vunpack.c.l.b16 %v590
        %v1174 = vunpack.c.h.b16 %v590
        %v1175 = vunpack.c.l.b16 %v591
        %v1176 = vunpack.c.h.b16 %v591
        %v1177 = vunpack.c.l.b16 %v592
        %v1178 = vunpack.c.h.b16 %v592
        %v1179 = vpack.c.b16 %v799, %v795
        %v1180 = vpack.c.b16 %v800, %v796
        %v1181 = vpack.c.b16 %v801, %v797
        %v1182 = vpack.c.b16 %v802, %v798
        %v1183 = vpack.c.b16 %v807, %v803
        %v1184 = vpack.c.b16 %v808, %v804
        %v1185 = vpack.c.b16 %v809, %v805
        %v1186 = vpack.c.b16 %v810, %v806
        %v1187 = vpack.c.b16 %v815, %v811
        %v1188 = vpack.c.b16 %v816, %v812
        %v1189 = vpack.c.b16 %v817, %v813
        %v1190 = vpack.c.b16 %v818, %v814
        %v1191 = vpack.c.b16 %v823, %v819
        %v1192 = vpack.c.b16 %v824, %v820
        %v1193 = vpack.c.b16 %v825, %v821
        %v1194 = vpack.c.b16 %v826, %v822
        %v1195 = vpack.c.b16 %v831, %v827
        %v1196 = vpack.c.b16 %v832, %v828
        %v1197 = vpack.c.b16 %v833, %v829
        %v1198 = vpack.c.b16 %v834, %v830
        %v1199 = vpack.c.b16 %v839, %v835
        %v1200 = vpack.c.b16 %v840, %v836
        %v1201 = vpack.c.b16 %v841, %v837
        %v1202 = vpack.c.b16 %v842, %v838
        %v1203 = vpack.c.b16 %v847, %v843
        %v1204 = vpack.c.b16 %v848, %v844
        %v1205 = vpack.c.b16 %v849, %v845
        %v1206 = vpack.c.b16 %v850, %v846
        %v1207 = vpack.c.b16 %v855, %v851
        %v1208 = vpack.c.b16 %v856, %v852
        %v1209 = vpack.c.b16 %v857, %v853
        %v1210 = vpack.c.b16 %v858, %v854
        %v1211 = vpack.c.b16 %v863, %v859
        %v1212 = vpack.c.b16 %v864, %v860
        %v1213 = vpack.c.b16 %v865, %v861
        %v1214 = vpack.c.b16 %v866, %v862
        %v1215 = vpack.c.b16 %v871, %v867
        %v1216 = vpack.c.b16 %v872, %v868
        %v1217 = vpack.c.b16 %v873, %v869
        %v1218 = vpack.c.b16 %v874, %v870
        %v1219 = vpack.c.b16 %v879, %v875
        %v1220 = vpack.c.b16 %v880, %v876
        %v1221 = vpack.c.b16 %v881, %v877
        %v1222 = vpack.c.b16 %v882, %v878
        %v1223 = vpack.c.b16 %v887, %v883
        %v1224 = vpack.c.b16 %v888, %v884
        %v1225 = vpack.c.b16 %v889, %v885
        %v1226 = vpack.c.b16 %v890, %v886
        %v1227 = vpack.c.b16 %v895, %v891
        %v1228 = vpack.c.b16 %v896, %v892
        %v1229 = vpack.c.b16 %v897, %v893
        %v1230 = vpack.c.b16 %v898, %v894
        %v1231 = vpack.c.b16 %v903, %v899
        %v1232 = vpack.c.b16 %v904, %v900
        %v1233 = vpack.c.b16 %v905, %v901
        %v1234 = vpack.c.b16 %v906, %v902
        %v1235 = vpack.c.b16 %v911, %v907
        %v1236 = vpack.c.b16 %v912, %v908
        %v1237 = vpack.c.b16 %v913, %v909
        %v1238 = vpack.c.b16 %v914, %v910
        %v1239 = vpack.c.b16 %v919, %v915
        %v1240 = vpack.c.b16 %v920, %v916
        %v1241 = vpack.c.b16 %v921, %v917
        %v1242 = vpack.c.b16 %v922, %v918
        %v1243 = vpack.c.b16 %v927, %v923
        %v1244 = vpack.c.b16 %v928, %v924
        %v1245 = vpack.c.b16 %v929, %v925
        %v1246 = vpack.c.b16 %v930, %v926
        %v1247 = vpack.c.b16 %v935, %v931
        %v1248 = vpack.c.b16 %v936, %v932
        %v1249 = vpack.c.b16 %v937, %v933
        %v1250 = vpack.c.b16 %v938, %v934
        %v1251 = vpack.c.b16 %v943, %v939
        %v1252 = vpack.c.b16 %v944, %v940
        %v1253 = vpack.c.b16 %v945, %v941
        %v1254 = vpack.c.b16 %v946, %v942
        %v1255 = vpack.c.b16 %v951, %v947
        %v1256 = vpack.c.b16 %v952, %v948
        %v1257 = vpack.c.b16 %v953, %v949
        %v1258 = vpack.c.b16 %v954, %v950
        %v1259 = vpack.c.b16 %v959, %v955
        %v1260 = vpack.c.b16 %v960, %v956
        %v1261 = vpack.c.b16 %v961, %v957
        %v1262 = vpack.c.b16 %v962, %v958
        %v1263 = vpack.c.b16 %v967, %v963
        %v1264 = vpack.c.b16 %v968, %v964
        %v1265 = vpack.c.b16 %v969, %v965
        %v1266 = vpack.c.b16 %v970, %v966
        %v1267 = vpack.c.b16 %v975, %v971
        %v1268 = vpack.c.b16 %v976, %v972
        %v1269 = vpack.c.b16 %v977, %v973
        %v1270 = vpack.c.b16 %v978, %v974
        %v1271 = vpack.c.b16 %v983, %v979
        %v1272 = vpack.c.b16 %v984, %v980
        %v1273 = vpack.c.b16 %v985, %v981
        %v1274 = vpack.c.b16 %v986, %v982
        %v1275 = vpack.c.b16 %v991, %v987
        %v1276 = vpack.c.b16 %v992, %v988
        %v1277 = vpack.c.b16 %v993, %v989
        %v1278 = vpack.c.b16 %v994, %v990
        %v1279 = vpack.c.b16 %v999, %v995
        %v1280 = vpack.c.b16 %v1000, %v996
        %v1281 = vpack.c.b16 %v1001, %v997
        %v1282 = vpack.c.b16 %v1002, %v998
        %v1283 = vpack.c.b16 %v1007, %v1003
        %v1284 = vpack.c.b16 %v1008, %v1004
        %v1285 = vpack.c.b16 %v1009, %v1005
        %v1286 = vpack.c.b16 %v1010, %v1006
        %v1287 = vpack.c.b16 %v1015, %v1011
        %v1288 = vpack.c.b16 %v1016, %v1012
        %v1289 = vpack.c.b16 %v1017, %v1013
        %v1290 = vpack.c.b16 %v1018, %v1014
        %v1291 = vpack.c.b16 %v1023, %v1019
        %v1292 = vpack.c.b16 %v1024, %v1020
        %v1293 = vpack.c.b16 %v1025, %v1021
        %v1294 = vpack.c.b16 %v1026, %v1022
        %v1295 = vpack.c.b16 %v1031, %v1027
        %v1296 = vpack.c.b16 %v1032, %v1028
        %v1297 = vpack.c.b16 %v1033, %v1029
        %v1298 = vpack.c.b16 %v1034, %v1030
        %v1299 = vpack.c.b16 %v1039, %v1035
        %v1300 = vpack.c.b16 %v1040, %v1036
        %v1301 = vpack.c.b16 %v1041, %v1037
        %v1302 = vpack.c.b16 %v1042, %v1038
        %v1303 = vpack.c.b16 %v1047, %v1043
        %v1304 = vpack.c.b16 %v1048, %v1044
        %v1305 = vpack.c.b16 %v1049, %v1045
        %v1306 = vpack.c.b16 %v1050, %v1046
        %v1307 = vpack.c.b16 %v1055, %v1051
        %v1308 = vpack.c.b16 %v1056, %v1052
        %v1309 = vpack.c.b16 %v1057, %v1053
        %v1310 = vpack.c.b16 %v1058, %v1054
        %v1311 = vpack.c.b16 %v1063, %v1059
        %v1312 = vpack.c.b16 %v1064, %v1060
        %v1313 = vpack.c.b16 %v1065, %v1061
        %v1314 = vpack.c.b16 %v1066, %v1062
        %v1315 = vpack.c.b16 %v1071, %v1067
        %v1316 = vpack.c.b16 %v1072, %v1068
        %v1317 = vpack.c.b16 %v1073, %v1069
        %v1318 = vpack.c.b16 %v1074, %v1070
        %v1319 = vpack.c.b16 %v1079, %v1075
        %v1320 = vpack.c.b16 %v1080, %v1076
        %v1321 = vpack.c.b16 %v1081, %v1077
        %v1322 = vpack.c.b16 %v1082, %v1078
        %v1323 = vpack.c.b16 %v1087, %v1083
        %v1324 = vpack.c.b16 %v1088, %v1084
        %v1325 = vpack.c.b16 %v1089, %v1085
        %v1326 = vpack.c.b16 %v1090, %v1086
        %v1327 = vpack.c.b16 %v1095, %v1091
        %v1328 = vpack.c.b16 %v1096, %v1092
        %v1329 = vpack.c.b16 %v1097, %v1093
        %v1330 = vpack.c.b16 %v1098, %v1094
        %v1331 = vpack.c.b16 %v1103, %v1099
        %v1332 = vpack.c.b16 %v1104, %v1100
        %v1333 = vpack.c.b16 %v1105, %v1101
        %v1334 = vpack.c.b16 %v1106, %v1102
        %v1335 = vpack.c.b16 %v1111, %v1107
        %v1336 = vpack.c.b16 %v1112, %v1108
        %v1337 = vpack.c.b16 %v1113, %v1109
        %v1338 = vpack.c.b16 %v1114, %v1110
        %v1339 = vpack.c.b16 %v1119, %v1115
        %v1340 = vpack.c.b16 %v1120, %v1116
        %v1341 = vpack.c.b16 %v1121, %v1117
        %v1342 = vpack.c.b16 %v1122, %v1118
        %v1343 = vpack.c.b16 %v1127, %v1123
        %v1344 = vpack.c.b16 %v1128, %v1124
        %v1345 = vpack.c.b16 %v1129, %v1125
        %v1346 = vpack.c.b16 %v1130, %v1126
        %v1347 = vpack.c.b16 %v1135, %v1131
        %v1348 = vpack.c.b16 %v1136, %v1132
        %v1349 = vpack.c.b16 %v1137, %v1133
        %v1350 = vpack.c.b16 %v1138, %v1134
        %v1351 = vpack.c.b16 %v1143, %v1139
        %v1352 = vpack.c.b16 %v1144, %v1140
        %v1353 = vpack.c.b16 %v1145, %v1141
        %v1354 = vpack.c.b16 %v1146, %v1142
        %v1355 = vpack.c.b16 %v1151, %v1147
        %v1356 = vpack.c.b16 %v1152, %v1148
        %v1357 = vpack.c.b16 %v1153, %v1149
        %v1358 = vpack.c.b16 %v1154, %v1150
        %v1359 = vpack.c.b16 %v1159, %v1155
        %v1360 = vpack.c.b16 %v1160, %v1156
        %v1361 = vpack.c.b16 %v1161, %v1157
        %v1362 = vpack.c.b16 %v1162, %v1158
        %v1363 = vpack.c.b16 %v1167, %v1163
        %v1364 = vpack.c.b16 %v1168, %v1164
        %v1365 = vpack.c.b16 %v1169, %v1165
        %v1366 = vpack.c.b16 %v1170, %v1166
        %v1367 = vpack.c.b16 %v1175, %v1171
        %v1368 = vpack.c.b16 %v1176, %v1172
        %v1369 = vpack.c.b16 %v1177, %v1173
        %v1370 = vpack.c.b16 %v1178, %v1174
        %1563 = vmatpush.bf16.msra.mxu0 %v1207
        %1564 = vmatpush.bf16.msra.mxu0 %v1203
        %1565 = vmatpush.bf16.msra.mxu0 %v1199
        %1566 = vmatpush.bf16.msra.mxu0 %v1195
        %1567 = vmatpush.bf16.msra.mxu0 %v1191
        %1568 = vmatpush.bf16.msra.mxu0 %v1187
        %1569 = vmatpush.bf16.msra.mxu0 %v1183
        %1570 = vmatpush.bf16.msra.mxu0 %v1179
        %1571 = vmatmul.bf16.gmra.mxu0 %v377
        %v1572 = vpop.f32.mrf.mxu0
        %v1573 = vadd.f32 %v595, %v1572
        %v1574 = vpop.f32.mrf.mxu0
        %v1575 = vadd.f32 %v595, %v1574
        %1576 = vdwg.mxu0
        %1577 = vmatpush.bf16.msra.mxu0 %v1239
        %1578 = vmatpush.bf16.msra.mxu0 %v1235
        %1579 = vmatpush.bf16.msra.mxu0 %v1231
        %1580 = vmatpush.bf16.msra.mxu0 %v1227
        %1581 = vmatpush.bf16.msra.mxu0 %v1223
        %1582 = vmatpush.bf16.msra.mxu0 %v1219
        %1583 = vmatpush.bf16.msra.mxu0 %v1215
        %1584 = vmatpush.bf16.msra.mxu0 %v1211
        %1585 = vmatmul.bf16.gmra.mxu0 %v378
        %v1586 = vpop.f32.mrf.mxu0
        %v1587 = vadd.f32 %v1573, %v1586
        %v1588 = vpop.f32.mrf.mxu0
        %v1589 = vadd.f32 %v1575, %v1588
        %1590 = vdwg.mxu0
        %1591 = vmatpush.bf16.msra.mxu0 %v1271
        %1592 = vmatpush.bf16.msra.mxu0 %v1267
        %1593 = vmatpush.bf16.msra.mxu0 %v1263
        %1594 = vmatpush.bf16.msra.mxu0 %v1259
        %1595 = vmatpush.bf16.msra.mxu0 %v1255
        %1596 = vmatpush.bf16.msra.mxu0 %v1251
        %1597 = vmatpush.bf16.msra.mxu0 %v1247
        %1598 = vmatpush.bf16.msra.mxu0 %v1243
        %1599 = vmatmul.bf16.gmra.mxu0 %v387
        %v1600 = vpop.f32.mrf.mxu0
        %v1601 = vadd.f32 %v1587, %v1600
        %v1602 = vpop.f32.mrf.mxu0
        %v1603 = vadd.f32 %v1589, %v1602
        %1604 = vdwg.mxu0
        %1605 = vmatpush.bf16.msra.mxu0 %v1303
        %1606 = vmatpush.bf16.msra.mxu0 %v1299
        %1607 = vmatpush.bf16.msra.mxu0 %v1295
        %1608 = vmatpush.bf16.msra.mxu0 %v1291
        %1609 = vmatpush.bf16.msra.mxu0 %v1287
        %1610 = vmatpush.bf16.msra.mxu0 %v1283
        %1611 = vmatpush.bf16.msra.mxu0 %v1279
        %1612 = vmatpush.bf16.msra.mxu0 %v1275
        %1613 = vmatmul.bf16.gmra.mxu0 %v388
        %v1614 = vpop.f32.mrf.mxu0
        %v1615 = vadd.f32 %v1601, %v1614
        %v1616 = vpop.f32.mrf.mxu0
        %v1617 = vadd.f32 %v1603, %v1616
        %1618 = vdwg.mxu0
        %1619 = vmatpush.bf16.msra.mxu0 %v1335
        %1620 = vmatpush.bf16.msra.mxu0 %v1331
        %1621 = vmatpush.bf16.msra.mxu0 %v1327
        %1622 = vmatpush.bf16.msra.mxu0 %v1323
        %1623 = vmatpush.bf16.msra.mxu0 %v1319
        %1624 = vmatpush.bf16.msra.mxu0 %v1315
        %1625 = vmatpush.bf16.msra.mxu0 %v1311
        %1626 = vmatpush.bf16.msra.mxu0 %v1307
        %1627 = vmatmul.bf16.gmra.mxu0 %v397
        %v1628 = vpop.f32.mrf.mxu0
        %v1629 = vadd.f32 %v1615, %v1628
        %v1630 = vpop.f32.mrf.mxu0
        %v1631 = vadd.f32 %v1617, %v1630
        %1632 = vdwg.mxu0
        %1633 = vmatpush.bf16.msra.mxu0 %v1367
        %1634 = vmatpush.bf16.msra.mxu0 %v1363
        %1635 = vmatpush.bf16.msra.mxu0 %v1359
        %1636 = vmatpush.bf16.msra.mxu0 %v1355
        %1637 = vmatpush.bf16.msra.mxu0 %v1351
        %1638 = vmatpush.bf16.msra.mxu0 %v1347
        %1639 = vmatpush.bf16.msra.mxu0 %v1343
        %1640 = vmatpush.bf16.msra.mxu0 %v1339
        %1641 = vmatmul.bf16.gmra.mxu0 %v398
        %v1642 = vpop.f32.mrf.mxu0
        %v1643 = vadd.f32 %v1629, %v1642
        %v1644 = vpop.f32.mrf.mxu0
        %v1645 = vadd.f32 %v1631, %v1644
        %1646 = vdwg.mxu0
        %1647 = vmatpush.bf16.msra.mxu0 %v1208
        %1648 = vmatpush.bf16.msra.mxu0 %v1204
        %1649 = vmatpush.bf16.msra.mxu0 %v1200
        %1650 = vmatpush.bf16.msra.mxu0 %v1196
        %1651 = vmatpush.bf16.msra.mxu0 %v1192
        %1652 = vmatpush.bf16.msra.mxu0 %v1188
        %1653 = vmatpush.bf16.msra.mxu0 %v1184
        %1654 = vmatpush.bf16.msra.mxu0 %v1180
        %1655 = vmatmul.bf16.gmra.mxu0 %v377
        %v1656 = vpop.f32.mrf.mxu0
        %v1657 = vadd.f32 %v596, %v1656
        %v1658 = vpop.f32.mrf.mxu0
        %v1659 = vadd.f32 %v596, %v1658
        %1660 = vdwg.mxu0
        %1661 = vmatpush.bf16.msra.mxu0 %v1240
        %1662 = vmatpush.bf16.msra.mxu0 %v1236
        %1663 = vmatpush.bf16.msra.mxu0 %v1232
        %1664 = vmatpush.bf16.msra.mxu0 %v1228
        %1665 = vmatpush.bf16.msra.mxu0 %v1224
        %1666 = vmatpush.bf16.msra.mxu0 %v1220
        %1667 = vmatpush.bf16.msra.mxu0 %v1216
        %1668 = vmatpush.bf16.msra.mxu0 %v1212
        %1669 = vmatmul.bf16.gmra.mxu0 %v378
        %v1670 = vpop.f32.mrf.mxu0
        %v1671 = vadd.f32 %v1657, %v1670
        %v1672 = vpop.f32.mrf.mxu0
        %v1673 = vadd.f32 %v1659, %v1672
        %1674 = vdwg.mxu0
        %1675 = vmatpush.bf16.msra.mxu0 %v1272
        %1676 = vmatpush.bf16.msra.mxu0 %v1268
        %1677 = vmatpush.bf16.msra.mxu0 %v1264
        %1678 = vmatpush.bf16.msra.mxu0 %v1260
        %1679 = vmatpush.bf16.msra.mxu0 %v1256
        %1680 = vmatpush.bf16.msra.mxu0 %v1252
        %1681 = vmatpush.bf16.msra.mxu0 %v1248
        %1682 = vmatpush.bf16.msra.mxu0 %v1244
        %1683 = vmatmul.bf16.gmra.mxu0 %v387
        %v1684 = vpop.f32.mrf.mxu0
        %v1685 = vadd.f32 %v1671, %v1684
        %v1686 = vpop.f32.mrf.mxu0
        %v1687 = vadd.f32 %v1673, %v1686
        %1688 = vdwg.mxu0
        %1689 = vmatpush.bf16.msra.mxu0 %v1304
        %1690 = vmatpush.bf16.msra.mxu0 %v1300
        %1691 = vmatpush.bf16.msra.mxu0 %v1296
        %1692 = vmatpush.bf16.msra.mxu0 %v1292
        %1693 = vmatpush.bf16.msra.mxu0 %v1288
        %1694 = vmatpush.bf16.msra.mxu0 %v1284
        %1695 = vmatpush.bf16.msra.mxu0 %v1280
        %1696 = vmatpush.bf16.msra.mxu0 %v1276
        %1697 = vmatmul.bf16.gmra.mxu0 %v388
        %v1698 = vpop.f32.mrf.mxu0
        %v1699 = vadd.f32 %v1685, %v1698
        %v1700 = vpop.f32.mrf.mxu0
        %v1701 = vadd.f32 %v1687, %v1700
        %1702 = vdwg.mxu0
        %1703 = vmatpush.bf16.msra.mxu0 %v1336
        %1704 = vmatpush.bf16.msra.mxu0 %v1332
        %1705 = vmatpush.bf16.msra.mxu0 %v1328
        %1706 = vmatpush.bf16.msra.mxu0 %v1324
        %1707 = vmatpush.bf16.msra.mxu0 %v1320
        %1708 = vmatpush.bf16.msra.mxu0 %v1316
        %1709 = vmatpush.bf16.msra.mxu0 %v1312
        %1710 = vmatpush.bf16.msra.mxu0 %v1308
        %1711 = vmatmul.bf16.gmra.mxu0 %v397
        %v1712 = vpop.f32.mrf.mxu0
        %v1713 = vadd.f32 %v1699, %v1712
        %v1714 = vpop.f32.mrf.mxu0
        %v1715 = vadd.f32 %v1701, %v1714
        %1716 = vdwg.mxu0
        %1717 = vmatpush.bf16.msra.mxu0 %v1368
        %1718 = vmatpush.bf16.msra.mxu0 %v1364
        %1719 = vmatpush.bf16.msra.mxu0 %v1360
        %1720 = vmatpush.bf16.msra.mxu0 %v1356
        %1721 = vmatpush.bf16.msra.mxu0 %v1352
        %1722 = vmatpush.bf16.msra.mxu0 %v1348
        %1723 = vmatpush.bf16.msra.mxu0 %v1344
        %1724 = vmatpush.bf16.msra.mxu0 %v1340
        %1725 = vmatmul.bf16.gmra.mxu0 %v398
        %v1726 = vpop.f32.mrf.mxu0
        %v1727 = vadd.f32 %v1713, %v1726
        %v1728 = vpop.f32.mrf.mxu0
        %v1729 = vadd.f32 %v1715, %v1728
        %1730 = vdwg.mxu0
        %1731 = vmatpush.bf16.msra.mxu0 %v1209
        %1732 = vmatpush.bf16.msra.mxu0 %v1205
        %1733 = vmatpush.bf16.msra.mxu0 %v1201
        %1734 = vmatpush.bf16.msra.mxu0 %v1197
        %1735 = vmatpush.bf16.msra.mxu0 %v1193
        %1736 = vmatpush.bf16.msra.mxu0 %v1189
        %1737 = vmatpush.bf16.msra.mxu0 %v1185
        %1738 = vmatpush.bf16.msra.mxu0 %v1181
        %1739 = vmatmul.bf16.gmra.mxu0 %v377
        %v1740 = vpop.f32.mrf.mxu0
        %v1741 = vadd.f32 %v597, %v1740
        %v1742 = vpop.f32.mrf.mxu0
        %v1743 = vadd.f32 %v597, %v1742
        %1744 = vdwg.mxu0
        %1745 = vmatpush.bf16.msra.mxu0 %v1241
        %1746 = vmatpush.bf16.msra.mxu0 %v1237
        %1747 = vmatpush.bf16.msra.mxu0 %v1233
        %1748 = vmatpush.bf16.msra.mxu0 %v1229
        %1749 = vmatpush.bf16.msra.mxu0 %v1225
        %1750 = vmatpush.bf16.msra.mxu0 %v1221
        %1751 = vmatpush.bf16.msra.mxu0 %v1217
        %1752 = vmatpush.bf16.msra.mxu0 %v1213
        %1753 = vmatmul.bf16.gmra.mxu0 %v378
        %v1754 = vpop.f32.mrf.mxu0
        %v1755 = vadd.f32 %v1741, %v1754
        %v1756 = vpop.f32.mrf.mxu0
        %v1757 = vadd.f32 %v1743, %v1756
        %1758 = vdwg.mxu0
        %1759 = vmatpush.bf16.msra.mxu0 %v1273
        %1760 = vmatpush.bf16.msra.mxu0 %v1269
        %1761 = vmatpush.bf16.msra.mxu0 %v1265
        %1762 = vmatpush.bf16.msra.mxu0 %v1261
        %1763 = vmatpush.bf16.msra.mxu0 %v1257
        %1764 = vmatpush.bf16.msra.mxu0 %v1253
        %1765 = vmatpush.bf16.msra.mxu0 %v1249
        %1766 = vmatpush.bf16.msra.mxu0 %v1245
        %1767 = vmatmul.bf16.gmra.mxu0 %v387
        %v1768 = vpop.f32.mrf.mxu0
        %v1769 = vadd.f32 %v1755, %v1768
        %v1770 = vpop.f32.mrf.mxu0
        %v1771 = vadd.f32 %v1757, %v1770
        %1772 = vdwg.mxu0
        %1773 = vmatpush.bf16.msra.mxu0 %v1305
        %1774 = vmatpush.bf16.msra.mxu0 %v1301
        %1775 = vmatpush.bf16.msra.mxu0 %v1297
        %1776 = vmatpush.bf16.msra.mxu0 %v1293
        %1777 = vmatpush.bf16.msra.mxu0 %v1289
        %1778 = vmatpush.bf16.msra.mxu0 %v1285
        %1779 = vmatpush.bf16.msra.mxu0 %v1281
        %1780 = vmatpush.bf16.msra.mxu0 %v1277
        %1781 = vmatmul.bf16.gmra.mxu0 %v388
        %v1782 = vpop.f32.mrf.mxu0
        %v1783 = vadd.f32 %v1769, %v1782
        %v1784 = vpop.f32.mrf.mxu0
        %v1785 = vadd.f32 %v1771, %v1784
        %1786 = vdwg.mxu0
        %1787 = vmatpush.bf16.msra.mxu0 %v1337
        %1788 = vmatpush.bf16.msra.mxu0 %v1333
        %1789 = vmatpush.bf16.msra.mxu0 %v1329
        %1790 = vmatpush.bf16.msra.mxu0 %v1325
        %1791 = vmatpush.bf16.msra.mxu0 %v1321
        %1792 = vmatpush.bf16.msra.mxu0 %v1317
        %1793 = vmatpush.bf16.msra.mxu0 %v1313
        %1794 = vmatpush.bf16.msra.mxu0 %v1309
        %1795 = vmatmul.bf16.gmra.mxu0 %v397
        %v1796 = vpop.f32.mrf.mxu0
        %v1797 = vadd.f32 %v1783, %v1796
        %v1798 = vpop.f32.mrf.mxu0
        %v1799 = vadd.f32 %v1785, %v1798
        %1800 = vdwg.mxu0
        %1801 = vmatpush.bf16.msra.mxu0 %v1369
        %1802 = vmatpush.bf16.msra.mxu0 %v1365
        %1803 = vmatpush.bf16.msra.mxu0 %v1361
        %1804 = vmatpush.bf16.msra.mxu0 %v1357
        %1805 = vmatpush.bf16.msra.mxu0 %v1353
        %1806 = vmatpush.bf16.msra.mxu0 %v1349
        %1807 = vmatpush.bf16.msra.mxu0 %v1345
        %1808 = vmatpush.bf16.msra.mxu0 %v1341
        %1809 = vmatmul.bf16.gmra.mxu0 %v398
        %v1810 = vpop.f32.mrf.mxu0
        %v1811 = vadd.f32 %v1797, %v1810
        %v1812 = vpop.f32.mrf.mxu0
        %v1813 = vadd.f32 %v1799, %v1812
        %1814 = vdwg.mxu0
        %1815 = vmatpush.bf16.msra.mxu0 %v1210
        %1816 = vmatpush.bf16.msra.mxu0 %v1206
        %1817 = vmatpush.bf16.msra.mxu0 %v1202
        %1818 = vmatpush.bf16.msra.mxu0 %v1198
        %1819 = vmatpush.bf16.msra.mxu0 %v1194
        %1820 = vmatpush.bf16.msra.mxu0 %v1190
        %1821 = vmatpush.bf16.msra.mxu0 %v1186
        %1822 = vmatpush.bf16.msra.mxu0 %v1182
        %1823 = vmatmul.bf16.gmra.mxu0 %v377
        %v1824 = vpop.f32.mrf.mxu0
        %v1825 = vadd.f32 %v598, %v1824
        %v1826 = vpop.f32.mrf.mxu0
        %v1827 = vadd.f32 %v598, %v1826
        %1828 = vdwg.mxu0
        %1829 = vmatpush.bf16.msra.mxu0 %v1242
        %1830 = vmatpush.bf16.msra.mxu0 %v1238
        %1831 = vmatpush.bf16.msra.mxu0 %v1234
        %1832 = vmatpush.bf16.msra.mxu0 %v1230
        %1833 = vmatpush.bf16.msra.mxu0 %v1226
        %1834 = vmatpush.bf16.msra.mxu0 %v1222
        %1835 = vmatpush.bf16.msra.mxu0 %v1218
        %1836 = vmatpush.bf16.msra.mxu0 %v1214
        %1837 = vmatmul.bf16.gmra.mxu0 %v378
        %v1838 = vpop.f32.mrf.mxu0
        %v1839 = vadd.f32 %v1825, %v1838
        %v1840 = vpop.f32.mrf.mxu0
        %v1841 = vadd.f32 %v1827, %v1840
        %1842 = vdwg.mxu0
        %1843 = vmatpush.bf16.msra.mxu0 %v1274
        %1844 = vmatpush.bf16.msra.mxu0 %v1270
        %1845 = vmatpush.bf16.msra.mxu0 %v1266
        %1846 = vmatpush.bf16.msra.mxu0 %v1262
        %1847 = vmatpush.bf16.msra.mxu0 %v1258
        %1848 = vmatpush.bf16.msra.mxu0 %v1254
        %1849 = vmatpush.bf16.msra.mxu0 %v1250
        %1850 = vmatpush.bf16.msra.mxu0 %v1246
        %1851 = vmatmul.bf16.gmra.mxu0 %v387
        %v1852 = vpop.f32.mrf.mxu0
        %v1853 = vadd.f32 %v1839, %v1852
        %v1854 = vpop.f32.mrf.mxu0
        %v1855 = vadd.f32 %v1841, %v1854
        %1856 = vdwg.mxu0
        %1857 = vmatpush.bf16.msra.mxu0 %v1306
        %1858 = vmatpush.bf16.msra.mxu0 %v1302
        %1859 = vmatpush.bf16.msra.mxu0 %v1298
        %1860 = vmatpush.bf16.msra.mxu0 %v1294
        %1861 = vmatpush.bf16.msra.mxu0 %v1290
        %1862 = vmatpush.bf16.msra.mxu0 %v1286
        %1863 = vmatpush.bf16.msra.mxu0 %v1282
        %1864 = vmatpush.bf16.msra.mxu0 %v1278
        %1865 = vmatmul.bf16.gmra.mxu0 %v388
        %v1866 = vpop.f32.mrf.mxu0
        %v1867 = vadd.f32 %v1853, %v1866
        %v1868 = vpop.f32.mrf.mxu0
        %v1869 = vadd.f32 %v1855, %v1868
        %1870 = vdwg.mxu0
        %1871 = vmatpush.bf16.msra.mxu0 %v1338
        %1872 = vmatpush.bf16.msra.mxu0 %v1334
        %1873 = vmatpush.bf16.msra.mxu0 %v1330
        %1874 = vmatpush.bf16.msra.mxu0 %v1326
        %1875 = vmatpush.bf16.msra.mxu0 %v1322
        %1876 = vmatpush.bf16.msra.mxu0 %v1318
        %1877 = vmatpush.bf16.msra.mxu0 %v1314
        %1878 = vmatpush.bf16.msra.mxu0 %v1310
        %1879 = vmatmul.bf16.gmra.mxu0 %v397
        %v1880 = vpop.f32.mrf.mxu0
        %v1881 = vadd.f32 %v1867, %v1880
        %v1882 = vpop.f32.mrf.mxu0
        %v1883 = vadd.f32 %v1869, %v1882
        %1884 = vdwg.mxu0
        %1885 = vmatpush.bf16.msra.mxu0 %v1370
        %1886 = vmatpush.bf16.msra.mxu0 %v1366
        %1887 = vmatpush.bf16.msra.mxu0 %v1362
        %1888 = vmatpush.bf16.msra.mxu0 %v1358
        %1889 = vmatpush.bf16.msra.mxu0 %v1354
        %1890 = vmatpush.bf16.msra.mxu0 %v1350
        %1891 = vmatpush.bf16.msra.mxu0 %v1346
        %1892 = vmatpush.bf16.msra.mxu0 %v1342
        %1893 = vmatmul.bf16.gmra.mxu0 %v398
        %v1894 = vpop.f32.mrf.mxu0
        %v1895 = vadd.f32 %v1881, %v1894
        %v1896 = vpop.f32.mrf.mxu0
        %v1897 = vadd.f32 %v1883, %v1896
        %1898 = vdwg.mxu0
        %v1899 = vmax.f32 %v1643, 0.0
        %v1900 = vmax.f32 %v1727, 0.0
        %v1901 = vmax.f32 %v1811, 0.0
        %v1902 = vmax.f32 %v1895, 0.0
        %v1903 = vmax.f32 %v1645, 0.0
        %v1904 = vmax.f32 %v1729, 0.0
        %v1905 = vmax.f32 %v1813, 0.0
        %v1906 = vmax.f32 %v1897, 0.0
        %v1907 = vpack.c.bf16 %v1900, %v1899
        %v1908 = vpack.c.bf16 %v1902, %v1901
        %v1909 = vpack.c.bf16 %v1904, %v1903
        %v1910 = vpack.c.bf16 %v1906, %v1905
        %v1911 = vrot.slane %v1899, 7
        %v1912 = vrot.slane %v1900, 7
        %v1913 = vrot.slane %v1901, 7
        %v1914 = vrot.slane %v1902, 7
        %v1915 = vrot.slane %v1903, 7
        %v1916 = vrot.slane %v1904, 7
        %v1917 = vrot.slane %v1905, 7
        %v1918 = vrot.slane %v1906, 7
        %v1919 = vsel %vm337, %v1911, %v1915
        %v1920 = vsel %vm337, %v1912, %v1916
        %v1921 = vsel %vm337, %v1913, %v1917
        %v1922 = vsel %vm337, %v1914, %v1918
        %v1923 = vsel %vm337, %v1915, %v1911
        %v1924 = vsel %vm337, %v1916, %v1912
        %v1925 = vsel %vm337, %v1917, %v1913
        %v1926 = vsel %vm337, %v1918, %v1914
        %v1927 = vsel %vm344, 0.0, %v1923
        %v1928 = vsel %vm344, 0.0, %v1924
        %v1929 = vsel %vm344, 0.0, %v1925
        %v1930 = vsel %vm344, 0.0, %v1926
        %v1931 = vsel %vm345, 0.0, %v1919
        %v1932 = vsel %vm345, 0.0, %v1920
        %v1933 = vsel %vm345, 0.0, %v1921
        %v1934 = vsel %vm345, 0.0, %v1922
        %v1935 = vpack.c.bf16 %v1928, %v1927
        %v1936 = vpack.c.bf16 %v1930, %v1929
        %v1937 = vpack.c.bf16 %v1932, %v1931
        %v1938 = vpack.c.bf16 %v1934, %v1933
        %v1939 = vrot.slane %v1899, 1
        %v1940 = vrot.slane %v1900, 1
        %v1941 = vrot.slane %v1901, 1
        %v1942 = vrot.slane %v1902, 1
        %v1943 = vrot.slane %v1903, 1
        %v1944 = vrot.slane %v1904, 1
        %v1945 = vrot.slane %v1905, 1
        %v1946 = vrot.slane %v1906, 1
        %v1947 = vsel %vm356, %v1939, %v1943
        %v1948 = vsel %vm356, %v1940, %v1944
        %v1949 = vsel %vm356, %v1941, %v1945
        %v1950 = vsel %vm356, %v1942, %v1946
        %v1951 = vsel %vm356, %v1943, %v1939
        %v1952 = vsel %vm356, %v1944, %v1940
        %v1953 = vsel %vm356, %v1945, %v1941
        %v1954 = vsel %vm356, %v1946, %v1942
        %v1955 = vsel %vm363, 0.0, %v1947
        %v1956 = vsel %vm363, 0.0, %v1948
        %v1957 = vsel %vm363, 0.0, %v1949
        %v1958 = vsel %vm363, 0.0, %v1950
        %v1959 = vsel %vm364, 0.0, %v1951
        %v1960 = vsel %vm364, 0.0, %v1952
        %v1961 = vsel %vm364, 0.0, %v1953
        %v1962 = vsel %vm364, 0.0, %v1954
        %v1963 = vpack.c.bf16 %v1956, %v1955
        %v1964 = vpack.c.bf16 %v1958, %v1957
        %v1965 = vpack.c.bf16 %v1960, %v1959
        %v1966 = vpack.c.bf16 %v1962, %v1961
        %v1971 = vunpack.c.l.b16 %v1935
        %v1972 = vunpack.c.h.b16 %v1935
        %v1973 = vunpack.c.l.b16 %v1936
        %v1974 = vunpack.c.h.b16 %v1936
        %v1975 = vunpack.c.l.b16 %v1937
        %v1976 = vunpack.c.h.b16 %v1937
        %v1977 = vunpack.c.l.b16 %v1938
        %v1978 = vunpack.c.h.b16 %v1938
        %v1979 = vpack.c.b16 %v1975, %v1971
        %v1980 = vpack.c.b16 %v1976, %v1972
        %v1981 = vpack.c.b16 %v1977, %v1973
        %v1982 = vpack.c.b16 %v1978, %v1974
        %v1991 = vunpack.c.l.b16 %v1907
        %v1992 = vunpack.c.h.b16 %v1907
        %v1993 = vunpack.c.l.b16 %v1908
        %v1994 = vunpack.c.h.b16 %v1908
        %v1995 = vunpack.c.l.b16 %v1909
        %v1996 = vunpack.c.h.b16 %v1909
        %v1997 = vunpack.c.l.b16 %v1910
        %v1998 = vunpack.c.h.b16 %v1910
        %v1999 = vpack.c.b16 %v1995, %v1991
        %v2000 = vpack.c.b16 %v1996, %v1992
        %v2001 = vpack.c.b16 %v1997, %v1993
        %v2002 = vpack.c.b16 %v1998, %v1994
        %v2011 = vunpack.c.l.b16 %v1963
        %v2012 = vunpack.c.h.b16 %v1963
        %v2013 = vunpack.c.l.b16 %v1964
        %v2014 = vunpack.c.h.b16 %v1964
        %v2015 = vunpack.c.l.b16 %v1965
        %v2016 = vunpack.c.h.b16 %v1965
        %v2017 = vunpack.c.l.b16 %v1966
        %v2018 = vunpack.c.h.b16 %v1966
        %v2019 = vpack.c.b16 %v2015, %v2011
        %v2020 = vpack.c.b16 %v2016, %v2012
        %v2021 = vpack.c.b16 %v2017, %v2013
        %v2022 = vpack.c.b16 %v2018, %v2014
        %v2027 = vld [vmem:[#allocation8] sm:$0xff]
        %v2028 = vld [vmem:[#allocation8 + $0x8] sm:$0xff]
        %v2029 = vld [vmem:[#allocation8 + $0x10] sm:$0xff]
        %v2030 = vld [vmem:[#allocation8 + $0x18] sm:$0xff]
        %v2031 = vld [vmem:[#allocation8 + $0x20] sm:$0xff]
        %v2032 = vld [vmem:[#allocation8 + $0x28] sm:$0xff]
        %v2033 = vld [vmem:[#allocation8 + $0x30] sm:$0xff]
        %v2034 = vld [vmem:[#allocation8 + $0x38] sm:$0xff]
        %v2035 = vld [vmem:[#allocation8 + $0x40] sm:$0xff]
        %v2036 = vld [vmem:[#allocation8 + $0x48] sm:$0xff]
        %v2037 = vld [vmem:[#allocation8 + $0x50] sm:$0xff]
        %v2038 = vld [vmem:[#allocation8 + $0x58] sm:$0xff]
        %v2039 = vld [vmem:[#allocation8 + $0x60] sm:$0xff]
        %v2040 = vld [vmem:[#allocation8 + $0x68] sm:$0xff]
        %v2041 = vld [vmem:[#allocation8 + $0x70] sm:$0xff]
        %v2042 = vld [vmem:[#allocation8 + $0x78] sm:$0xff]
        %v2043 = vld [vmem:[#allocation8 + $0x80] sm:$0xff]
        %v2044 = vld [vmem:[#allocation8 + $0x88] sm:$0xff]
        %v2045 = vld [vmem:[#allocation8 + $0x90] sm:$0xff]
        %v2046 = vld [vmem:[#allocation8 + $0x98] sm:$0xff]
        %v2047 = vld [vmem:[#allocation8 + $0xa0] sm:$0xff]
        %v2048 = vld [vmem:[#allocation8 + $0xa8] sm:$0xff]
        %v2049 = vld [vmem:[#allocation8 + $0xb0] sm:$0xff]
        %v2050 = vld [vmem:[#allocation8 + $0xb8] sm:$0xff]
        %v2051 = vld [vmem:[#allocation8 + $0xc0] sm:$0xff]
        %v2052 = vld [vmem:[#allocation8 + $0xc8] sm:$0xff]
        %v2053 = vld [vmem:[#allocation8 + $0xd0] sm:$0xff]
        %v2054 = vld [vmem:[#allocation8 + $0xd8] sm:$0xff]
        %v2055 = vld [vmem:[#allocation8 + $0xe0] sm:$0xff]
        %v2056 = vld [vmem:[#allocation8 + $0xe8] sm:$0xff]
        %v2057 = vld [vmem:[#allocation8 + $0xf0] sm:$0xff]
        %v2058 = vld [vmem:[#allocation8 + $0xf8] sm:$0xff]
        %v2059 = vld [vmem:[#allocation8 + $0x100] sm:$0xff]
        %v2060 = vld [vmem:[#allocation8 + $0x108] sm:$0xff]
        %v2061 = vld [vmem:[#allocation8 + $0x110] sm:$0xff]
        %v2062 = vld [vmem:[#allocation8 + $0x118] sm:$0xff]
        %v2063 = vld [vmem:[#allocation8 + $0x120] sm:$0xff]
        %v2064 = vld [vmem:[#allocation8 + $0x128] sm:$0xff]
        %v2065 = vld [vmem:[#allocation8 + $0x130] sm:$0xff]
        %v2066 = vld [vmem:[#allocation8 + $0x138] sm:$0xff]
        %v2067 = vld [vmem:[#allocation8 + $0x140] sm:$0xff]
        %v2068 = vld [vmem:[#allocation8 + $0x148] sm:$0xff]
        %v2069 = vld [vmem:[#allocation8 + $0x150] sm:$0xff]
        %v2070 = vld [vmem:[#allocation8 + $0x158] sm:$0xff]
        %v2071 = vld [vmem:[#allocation8 + $0x160] sm:$0xff]
        %v2072 = vld [vmem:[#allocation8 + $0x168] sm:$0xff]
        %v2073 = vld [vmem:[#allocation8 + $0x170] sm:$0xff]
        %v2074 = vld [vmem:[#allocation8 + $0x178] sm:$0xff]
        %v2075 = vld [vmem:[#allocation8 + $0x180] sm:$0xff]
        %v2076 = vld [vmem:[#allocation8 + $0x188] sm:$0xff]
        %v2077 = vld [vmem:[#allocation8 + $0x190] sm:$0xff]
        %v2078 = vld [vmem:[#allocation8 + $0x198] sm:$0xff]
        %v2079 = vld [vmem:[#allocation8 + $0x1a0] sm:$0xff]
        %v2080 = vld [vmem:[#allocation8 + $0x1a8] sm:$0xff]
        %v2081 = vld [vmem:[#allocation8 + $0x1b0] sm:$0xff]
        %v2082 = vld [vmem:[#allocation8 + $0x1b8] sm:$0xff]
        %v2083 = vld [vmem:[#allocation8 + $0x1c0] sm:$0xff]
        %v2084 = vld [vmem:[#allocation8 + $0x1c8] sm:$0xff]
        %v2085 = vld [vmem:[#allocation8 + $0x1d0] sm:$0xff]
        %v2086 = vld [vmem:[#allocation8 + $0x1d8] sm:$0xff]
        %v2087 = vld [vmem:[#allocation8 + $0x1e0] sm:$0xff]
        %v2088 = vld [vmem:[#allocation8 + $0x1e8] sm:$0xff]
        %v2089 = vld [vmem:[#allocation8 + $0x1f0] sm:$0xff]
        %v2090 = vld [vmem:[#allocation8 + $0x1f8] sm:$0xff]
        %v2091 = vld [vmem:[#allocation8 + $0x200] sm:$0xff]
        %v2092 = vld [vmem:[#allocation8 + $0x208] sm:$0xff]
        %v2093 = vld [vmem:[#allocation8 + $0x210] sm:$0xff]
        %v2094 = vld [vmem:[#allocation8 + $0x218] sm:$0xff]
        %v2095 = vld [vmem:[#allocation8 + $0x220] sm:$0xff]
        %v2096 = vld [vmem:[#allocation8 + $0x228] sm:$0xff]
        %v2097 = vld [vmem:[#allocation8 + $0x230] sm:$0xff]
        %v2098 = vld [vmem:[#allocation8 + $0x238] sm:$0xff]
        %v2099 = vld [vmem:[#allocation8 + $0x240] sm:$0xff]
        %v2100 = vld [vmem:[#allocation8 + $0x248] sm:$0xff]
        %v2101 = vld [vmem:[#allocation8 + $0x250] sm:$0xff]
        %v2102 = vld [vmem:[#allocation8 + $0x258] sm:$0xff]
        %v2103 = vld [vmem:[#allocation8 + $0x260] sm:$0xff]
        %v2104 = vld [vmem:[#allocation8 + $0x268] sm:$0xff]
        %v2105 = vld [vmem:[#allocation8 + $0x270] sm:$0xff]
        %v2106 = vld [vmem:[#allocation8 + $0x278] sm:$0xff]
        %v2107 = vld [vmem:[#allocation8 + $0x280] sm:$0xff]
        %v2108 = vld [vmem:[#allocation8 + $0x288] sm:$0xff]
        %v2109 = vld [vmem:[#allocation8 + $0x290] sm:$0xff]
        %v2110 = vld [vmem:[#allocation8 + $0x298] sm:$0xff]
        %v2111 = vld [vmem:[#allocation8 + $0x2a0] sm:$0xff]
        %v2112 = vld [vmem:[#allocation8 + $0x2a8] sm:$0xff]
        %v2113 = vld [vmem:[#allocation8 + $0x2b0] sm:$0xff]
        %v2114 = vld [vmem:[#allocation8 + $0x2b8] sm:$0xff]
        %v2115 = vld [vmem:[#allocation8 + $0x2c0] sm:$0xff]
        %v2116 = vld [vmem:[#allocation8 + $0x2c8] sm:$0xff]
        %v2117 = vld [vmem:[#allocation8 + $0x2d0] sm:$0xff]
        %v2118 = vld [vmem:[#allocation8 + $0x2d8] sm:$0xff]
        %v2119 = vld [vmem:[#allocation8 + $0x2e0] sm:$0xff]
        %v2120 = vld [vmem:[#allocation8 + $0x2e8] sm:$0xff]
        %v2121 = vld [vmem:[#allocation8 + $0x2f0] sm:$0xff]
        %v2122 = vld [vmem:[#allocation8 + $0x2f8] sm:$0xff]
        %v2123 = vld [vmem:[#allocation8 + $0x300] sm:$0xff]
        %v2124 = vld [vmem:[#allocation8 + $0x308] sm:$0xff]
        %v2125 = vld [vmem:[#allocation8 + $0x310] sm:$0xff]
        %v2126 = vld [vmem:[#allocation8 + $0x318] sm:$0xff]
        %v2127 = vld [vmem:[#allocation8 + $0x320] sm:$0xff]
        %v2128 = vld [vmem:[#allocation8 + $0x328] sm:$0xff]
        %v2129 = vld [vmem:[#allocation8 + $0x330] sm:$0xff]
        %v2130 = vld [vmem:[#allocation8 + $0x338] sm:$0xff]
        %v2131 = vld [vmem:[#allocation8 + $0x340] sm:$0xff]
        %v2132 = vld [vmem:[#allocation8 + $0x348] sm:$0xff]
        %v2133 = vld [vmem:[#allocation8 + $0x350] sm:$0xff]
        %v2134 = vld [vmem:[#allocation8 + $0x358] sm:$0xff]
        %v2135 = vld [vmem:[#allocation8 + $0x360] sm:$0xff]
        %v2136 = vld [vmem:[#allocation8 + $0x368] sm:$0xff]
        %v2137 = vld [vmem:[#allocation8 + $0x370] sm:$0xff]
        %v2138 = vld [vmem:[#allocation8 + $0x378] sm:$0xff]
        %v2139 = vld [vmem:[#allocation8 + $0x380] sm:$0xff]
        %v2140 = vld [vmem:[#allocation8 + $0x388] sm:$0xff]
        %v2141 = vld [vmem:[#allocation8 + $0x390] sm:$0xff]
        %v2142 = vld [vmem:[#allocation8 + $0x398] sm:$0xff]
        %v2143 = vld [vmem:[#allocation8 + $0x3a0] sm:$0xff]
        %v2144 = vld [vmem:[#allocation8 + $0x3a8] sm:$0xff]
        %v2145 = vld [vmem:[#allocation8 + $0x3b0] sm:$0xff]
        %v2146 = vld [vmem:[#allocation8 + $0x3b8] sm:$0xff]
        %v2147 = vld [vmem:[#allocation8 + $0x3c0] sm:$0xff]
        %v2148 = vld [vmem:[#allocation8 + $0x3c8] sm:$0xff]
        %v2149 = vld [vmem:[#allocation8 + $0x3d0] sm:$0xff]
        %v2150 = vld [vmem:[#allocation8 + $0x3d8] sm:$0xff]
        %v2151 = vld [vmem:[#allocation8 + $0x3e0] sm:$0xff]
        %v2152 = vld [vmem:[#allocation8 + $0x3e8] sm:$0xff]
        %v2153 = vld [vmem:[#allocation8 + $0x3f0] sm:$0xff]
        %v2154 = vld [vmem:[#allocation8 + $0x3f8] sm:$0xff]
        %v2155 = vld [vmem:[#allocation8 + $0x400] sm:$0xff]
        %v2156 = vld [vmem:[#allocation8 + $0x408] sm:$0xff]
        %v2157 = vld [vmem:[#allocation8 + $0x410] sm:$0xff]
        %v2158 = vld [vmem:[#allocation8 + $0x418] sm:$0xff]
        %v2159 = vld [vmem:[#allocation8 + $0x420] sm:$0xff]
        %v2160 = vld [vmem:[#allocation8 + $0x428] sm:$0xff]
        %v2161 = vld [vmem:[#allocation8 + $0x430] sm:$0xff]
        %v2162 = vld [vmem:[#allocation8 + $0x438] sm:$0xff]
        %v2163 = vld [vmem:[#allocation8 + $0x440] sm:$0xff]
        %v2164 = vld [vmem:[#allocation8 + $0x448] sm:$0xff]
        %v2165 = vld [vmem:[#allocation8 + $0x450] sm:$0xff]
        %v2166 = vld [vmem:[#allocation8 + $0x458] sm:$0xff]
        %v2167 = vld [vmem:[#allocation8 + $0x460] sm:$0xff]
        %v2168 = vld [vmem:[#allocation8 + $0x468] sm:$0xff]
        %v2169 = vld [vmem:[#allocation8 + $0x470] sm:$0xff]
        %v2170 = vld [vmem:[#allocation8 + $0x478] sm:$0xff]
        %v2171 = vld [vmem:[#allocation8 + $0x480] sm:$0xff]
        %v2172 = vld [vmem:[#allocation8 + $0x488] sm:$0xff]
        %v2173 = vld [vmem:[#allocation8 + $0x490] sm:$0xff]
        %v2174 = vld [vmem:[#allocation8 + $0x498] sm:$0xff]
        %v2175 = vld [vmem:[#allocation8 + $0x4a0] sm:$0xff]
        %v2176 = vld [vmem:[#allocation8 + $0x4a8] sm:$0xff]
        %v2177 = vld [vmem:[#allocation8 + $0x4b0] sm:$0xff]
        %v2178 = vld [vmem:[#allocation8 + $0x4b8] sm:$0xff]
        %v2179 = vld [vmem:[#allocation8 + $0x4c0] sm:$0xff]
        %v2180 = vld [vmem:[#allocation8 + $0x4c8] sm:$0xff]
        %v2181 = vld [vmem:[#allocation8 + $0x4d0] sm:$0xff]
        %v2182 = vld [vmem:[#allocation8 + $0x4d8] sm:$0xff]
        %v2183 = vld [vmem:[#allocation8 + $0x4e0] sm:$0xff]
        %v2184 = vld [vmem:[#allocation8 + $0x4e8] sm:$0xff]
        %v2185 = vld [vmem:[#allocation8 + $0x4f0] sm:$0xff]
        %v2186 = vld [vmem:[#allocation8 + $0x4f8] sm:$0xff]
        %v2187 = vld [vmem:[#allocation8 + $0x500] sm:$0xff]
        %v2188 = vld [vmem:[#allocation8 + $0x508] sm:$0xff]
        %v2189 = vld [vmem:[#allocation8 + $0x510] sm:$0xff]
        %v2190 = vld [vmem:[#allocation8 + $0x518] sm:$0xff]
        %v2191 = vld [vmem:[#allocation8 + $0x520] sm:$0xff]
        %v2192 = vld [vmem:[#allocation8 + $0x528] sm:$0xff]
        %v2193 = vld [vmem:[#allocation8 + $0x530] sm:$0xff]
        %v2194 = vld [vmem:[#allocation8 + $0x538] sm:$0xff]
        %v2195 = vld [vmem:[#allocation8 + $0x540] sm:$0xff]
        %v2196 = vld [vmem:[#allocation8 + $0x548] sm:$0xff]
        %v2197 = vld [vmem:[#allocation8 + $0x550] sm:$0xff]
        %v2198 = vld [vmem:[#allocation8 + $0x558] sm:$0xff]
        %v2199 = vld [vmem:[#allocation8 + $0x560] sm:$0xff]
        %v2200 = vld [vmem:[#allocation8 + $0x568] sm:$0xff]
        %v2201 = vld [vmem:[#allocation8 + $0x570] sm:$0xff]
        %v2202 = vld [vmem:[#allocation8 + $0x578] sm:$0xff]
        %v2203 = vld [vmem:[#allocation8 + $0x580] sm:$0xff]
        %v2204 = vld [vmem:[#allocation8 + $0x588] sm:$0xff]
        %v2205 = vld [vmem:[#allocation8 + $0x590] sm:$0xff]
        %v2206 = vld [vmem:[#allocation8 + $0x598] sm:$0xff]
        %v2207 = vld [vmem:[#allocation8 + $0x5a0] sm:$0xff]
        %v2208 = vld [vmem:[#allocation8 + $0x5a8] sm:$0xff]
        %v2209 = vld [vmem:[#allocation8 + $0x5b0] sm:$0xff]
        %v2210 = vld [vmem:[#allocation8 + $0x5b8] sm:$0xff]
        %v2211 = vld [vmem:[#allocation8 + $0x5c0] sm:$0xff]
        %v2212 = vld [vmem:[#allocation8 + $0x5c8] sm:$0xff]
        %v2213 = vld [vmem:[#allocation8 + $0x5d0] sm:$0xff]
        %v2214 = vld [vmem:[#allocation8 + $0x5d8] sm:$0xff]
        %v2215 = vld [vmem:[#allocation8 + $0x5e0] sm:$0xff]
        %v2216 = vld [vmem:[#allocation8 + $0x5e8] sm:$0xff]
        %v2217 = vld [vmem:[#allocation8 + $0x5f0] sm:$0xff]
        %v2218 = vld [vmem:[#allocation8 + $0x5f8] sm:$0xff]
        %v2219 = vld [vmem:[%s4] sm:$0x3]
        %v2221 = vperm.slane %v2219, 0
        %v2222 = vperm.slane %v2219, 1
        %v2417 = vunpack.c.l.b16 %v2027
        %v2418 = vunpack.c.h.b16 %v2027
        %v2419 = vunpack.c.l.b16 %v2028
        %v2420 = vunpack.c.h.b16 %v2028
        %v2421 = vunpack.c.l.b16 %v2029
        %v2422 = vunpack.c.h.b16 %v2029
        %v2423 = vunpack.c.l.b16 %v2030
        %v2424 = vunpack.c.h.b16 %v2030
        %v2425 = vunpack.c.l.b16 %v2031
        %v2426 = vunpack.c.h.b16 %v2031
        %v2427 = vunpack.c.l.b16 %v2032
        %v2428 = vunpack.c.h.b16 %v2032
        %v2429 = vunpack.c.l.b16 %v2033
        %v2430 = vunpack.c.h.b16 %v2033
        %v2431 = vunpack.c.l.b16 %v2034
        %v2432 = vunpack.c.h.b16 %v2034
        %v2433 = vunpack.c.l.b16 %v2035
        %v2434 = vunpack.c.h.b16 %v2035
        %v2435 = vunpack.c.l.b16 %v2036
        %v2436 = vunpack.c.h.b16 %v2036
        %v2437 = vunpack.c.l.b16 %v2037
        %v2438 = vunpack.c.h.b16 %v2037
        %v2439 = vunpack.c.l.b16 %v2038
        %v2440 = vunpack.c.h.b16 %v2038
        %v2441 = vunpack.c.l.b16 %v2039
        %v2442 = vunpack.c.h.b16 %v2039
        %v2443 = vunpack.c.l.b16 %v2040
        %v2444 = vunpack.c.h.b16 %v2040
        %v2445 = vunpack.c.l.b16 %v2041
        %v2446 = vunpack.c.h.b16 %v2041
        %v2447 = vunpack.c.l.b16 %v2042
        %v2448 = vunpack.c.h.b16 %v2042
        %v2449 = vunpack.c.l.b16 %v2043
        %v2450 = vunpack.c.h.b16 %v2043
        %v2451 = vunpack.c.l.b16 %v2044
        %v2452 = vunpack.c.h.b16 %v2044
        %v2453 = vunpack.c.l.b16 %v2045
        %v2454 = vunpack.c.h.b16 %v2045
        %v2455 = vunpack.c.l.b16 %v2046
        %v2456 = vunpack.c.h.b16 %v2046
        %v2457 = vunpack.c.l.b16 %v2047
        %v2458 = vunpack.c.h.b16 %v2047
        %v2459 = vunpack.c.l.b16 %v2048
        %v2460 = vunpack.c.h.b16 %v2048
        %v2461 = vunpack.c.l.b16 %v2049
        %v2462 = vunpack.c.h.b16 %v2049
        %v2463 = vunpack.c.l.b16 %v2050
        %v2464 = vunpack.c.h.b16 %v2050
        %v2465 = vunpack.c.l.b16 %v2051
        %v2466 = vunpack.c.h.b16 %v2051
        %v2467 = vunpack.c.l.b16 %v2052
        %v2468 = vunpack.c.h.b16 %v2052
        %v2469 = vunpack.c.l.b16 %v2053
        %v2470 = vunpack.c.h.b16 %v2053
        %v2471 = vunpack.c.l.b16 %v2054
        %v2472 = vunpack.c.h.b16 %v2054
        %v2473 = vunpack.c.l.b16 %v2055
        %v2474 = vunpack.c.h.b16 %v2055
        %v2475 = vunpack.c.l.b16 %v2056
        %v2476 = vunpack.c.h.b16 %v2056
        %v2477 = vunpack.c.l.b16 %v2057
        %v2478 = vunpack.c.h.b16 %v2057
        %v2479 = vunpack.c.l.b16 %v2058
        %v2480 = vunpack.c.h.b16 %v2058
        %v2481 = vunpack.c.l.b16 %v2059
        %v2482 = vunpack.c.h.b16 %v2059
        %v2483 = vunpack.c.l.b16 %v2060
        %v2484 = vunpack.c.h.b16 %v2060
        %v2485 = vunpack.c.l.b16 %v2061
        %v2486 = vunpack.c.h.b16 %v2061
        %v2487 = vunpack.c.l.b16 %v2062
        %v2488 = vunpack.c.h.b16 %v2062
        %v2489 = vunpack.c.l.b16 %v2063
        %v2490 = vunpack.c.h.b16 %v2063
        %v2491 = vunpack.c.l.b16 %v2064
        %v2492 = vunpack.c.h.b16 %v2064
        %v2493 = vunpack.c.l.b16 %v2065
        %v2494 = vunpack.c.h.b16 %v2065
        %v2495 = vunpack.c.l.b16 %v2066
        %v2496 = vunpack.c.h.b16 %v2066
        %v2497 = vunpack.c.l.b16 %v2067
        %v2498 = vunpack.c.h.b16 %v2067
        %v2499 = vunpack.c.l.b16 %v2068
        %v2500 = vunpack.c.h.b16 %v2068
        %v2501 = vunpack.c.l.b16 %v2069
        %v2502 = vunpack.c.h.b16 %v2069
        %v2503 = vunpack.c.l.b16 %v2070
        %v2504 = vunpack.c.h.b16 %v2070
        %v2505 = vunpack.c.l.b16 %v2071
        %v2506 = vunpack.c.h.b16 %v2071
        %v2507 = vunpack.c.l.b16 %v2072
        %v2508 = vunpack.c.h.b16 %v2072
        %v2509 = vunpack.c.l.b16 %v2073
        %v2510 = vunpack.c.h.b16 %v2073
        %v2511 = vunpack.c.l.b16 %v2074
        %v2512 = vunpack.c.h.b16 %v2074
        %v2513 = vunpack.c.l.b16 %v2075
        %v2514 = vunpack.c.h.b16 %v2075
        %v2515 = vunpack.c.l.b16 %v2076
        %v2516 = vunpack.c.h.b16 %v2076
        %v2517 = vunpack.c.l.b16 %v2077
        %v2518 = vunpack.c.h.b16 %v2077
        %v2519 = vunpack.c.l.b16 %v2078
        %v2520 = vunpack.c.h.b16 %v2078
        %v2521 = vunpack.c.l.b16 %v2079
        %v2522 = vunpack.c.h.b16 %v2079
        %v2523 = vunpack.c.l.b16 %v2080
        %v2524 = vunpack.c.h.b16 %v2080
        %v2525 = vunpack.c.l.b16 %v2081
        %v2526 = vunpack.c.h.b16 %v2081
        %v2527 = vunpack.c.l.b16 %v2082
        %v2528 = vunpack.c.h.b16 %v2082
        %v2529 = vunpack.c.l.b16 %v2083
        %v2530 = vunpack.c.h.b16 %v2083
        %v2531 = vunpack.c.l.b16 %v2084
        %v2532 = vunpack.c.h.b16 %v2084
        %v2533 = vunpack.c.l.b16 %v2085
        %v2534 = vunpack.c.h.b16 %v2085
        %v2535 = vunpack.c.l.b16 %v2086
        %v2536 = vunpack.c.h.b16 %v2086
        %v2537 = vunpack.c.l.b16 %v2087
        %v2538 = vunpack.c.h.b16 %v2087
        %v2539 = vunpack.c.l.b16 %v2088
        %v2540 = vunpack.c.h.b16 %v2088
        %v2541 = vunpack.c.l.b16 %v2089
        %v2542 = vunpack.c.h.b16 %v2089
        %v2543 = vunpack.c.l.b16 %v2090
        %v2544 = vunpack.c.h.b16 %v2090
        %v2545 = vunpack.c.l.b16 %v2091
        %v2546 = vunpack.c.h.b16 %v2091
        %v2547 = vunpack.c.l.b16 %v2092
        %v2548 = vunpack.c.h.b16 %v2092
        %v2549 = vunpack.c.l.b16 %v2093
        %v2550 = vunpack.c.h.b16 %v2093
        %v2551 = vunpack.c.l.b16 %v2094
        %v2552 = vunpack.c.h.b16 %v2094
        %v2553 = vunpack.c.l.b16 %v2095
        %v2554 = vunpack.c.h.b16 %v2095
        %v2555 = vunpack.c.l.b16 %v2096
        %v2556 = vunpack.c.h.b16 %v2096
        %v2557 = vunpack.c.l.b16 %v2097
        %v2558 = vunpack.c.h.b16 %v2097
        %v2559 = vunpack.c.l.b16 %v2098
        %v2560 = vunpack.c.h.b16 %v2098
        %v2561 = vunpack.c.l.b16 %v2099
        %v2562 = vunpack.c.h.b16 %v2099
        %v2563 = vunpack.c.l.b16 %v2100
        %v2564 = vunpack.c.h.b16 %v2100
        %v2565 = vunpack.c.l.b16 %v2101
        %v2566 = vunpack.c.h.b16 %v2101
        %v2567 = vunpack.c.l.b16 %v2102
        %v2568 = vunpack.c.h.b16 %v2102
        %v2569 = vunpack.c.l.b16 %v2103
        %v2570 = vunpack.c.h.b16 %v2103
        %v2571 = vunpack.c.l.b16 %v2104
        %v2572 = vunpack.c.h.b16 %v2104
        %v2573 = vunpack.c.l.b16 %v2105
        %v2574 = vunpack.c.h.b16 %v2105
        %v2575 = vunpack.c.l.b16 %v2106
        %v2576 = vunpack.c.h.b16 %v2106
        %v2577 = vunpack.c.l.b16 %v2107
        %v2578 = vunpack.c.h.b16 %v2107
        %v2579 = vunpack.c.l.b16 %v2108
        %v2580 = vunpack.c.h.b16 %v2108
        %v2581 = vunpack.c.l.b16 %v2109
        %v2582 = vunpack.c.h.b16 %v2109
        %v2583 = vunpack.c.l.b16 %v2110
        %v2584 = vunpack.c.h.b16 %v2110
        %v2585 = vunpack.c.l.b16 %v2111
        %v2586 = vunpack.c.h.b16 %v2111
        %v2587 = vunpack.c.l.b16 %v2112
        %v2588 = vunpack.c.h.b16 %v2112
        %v2589 = vunpack.c.l.b16 %v2113
        %v2590 = vunpack.c.h.b16 %v2113
        %v2591 = vunpack.c.l.b16 %v2114
        %v2592 = vunpack.c.h.b16 %v2114
        %v2593 = vunpack.c.l.b16 %v2115
        %v2594 = vunpack.c.h.b16 %v2115
        %v2595 = vunpack.c.l.b16 %v2116
        %v2596 = vunpack.c.h.b16 %v2116
        %v2597 = vunpack.c.l.b16 %v2117
        %v2598 = vunpack.c.h.b16 %v2117
        %v2599 = vunpack.c.l.b16 %v2118
        %v2600 = vunpack.c.h.b16 %v2118
        %v2601 = vunpack.c.l.b16 %v2119
        %v2602 = vunpack.c.h.b16 %v2119
        %v2603 = vunpack.c.l.b16 %v2120
        %v2604 = vunpack.c.h.b16 %v2120
        %v2605 = vunpack.c.l.b16 %v2121
        %v2606 = vunpack.c.h.b16 %v2121
        %v2607 = vunpack.c.l.b16 %v2122
        %v2608 = vunpack.c.h.b16 %v2122
        %v2609 = vunpack.c.l.b16 %v2123
        %v2610 = vunpack.c.h.b16 %v2123
        %v2611 = vunpack.c.l.b16 %v2124
        %v2612 = vunpack.c.h.b16 %v2124
        %v2613 = vunpack.c.l.b16 %v2125
        %v2614 = vunpack.c.h.b16 %v2125
        %v2615 = vunpack.c.l.b16 %v2126
        %v2616 = vunpack.c.h.b16 %v2126
        %v2617 = vunpack.c.l.b16 %v2127
        %v2618 = vunpack.c.h.b16 %v2127
        %v2619 = vunpack.c.l.b16 %v2128
        %v2620 = vunpack.c.h.b16 %v2128
        %v2621 = vunpack.c.l.b16 %v2129
        %v2622 = vunpack.c.h.b16 %v2129
        %v2623 = vunpack.c.l.b16 %v2130
        %v2624 = vunpack.c.h.b16 %v2130
        %v2625 = vunpack.c.l.b16 %v2131
        %v2626 = vunpack.c.h.b16 %v2131
        %v2627 = vunpack.c.l.b16 %v2132
        %v2628 = vunpack.c.h.b16 %v2132
        %v2629 = vunpack.c.l.b16 %v2133
        %v2630 = vunpack.c.h.b16 %v2133
        %v2631 = vunpack.c.l.b16 %v2134
        %v2632 = vunpack.c.h.b16 %v2134
        %v2633 = vunpack.c.l.b16 %v2135
        %v2634 = vunpack.c.h.b16 %v2135
        %v2635 = vunpack.c.l.b16 %v2136
        %v2636 = vunpack.c.h.b16 %v2136
        %v2637 = vunpack.c.l.b16 %v2137
        %v2638 = vunpack.c.h.b16 %v2137
        %v2639 = vunpack.c.l.b16 %v2138
        %v2640 = vunpack.c.h.b16 %v2138
        %v2641 = vunpack.c.l.b16 %v2139
        %v2642 = vunpack.c.h.b16 %v2139
        %v2643 = vunpack.c.l.b16 %v2140
        %v2644 = vunpack.c.h.b16 %v2140
        %v2645 = vunpack.c.l.b16 %v2141
        %v2646 = vunpack.c.h.b16 %v2141
        %v2647 = vunpack.c.l.b16 %v2142
        %v2648 = vunpack.c.h.b16 %v2142
        %v2649 = vunpack.c.l.b16 %v2143
        %v2650 = vunpack.c.h.b16 %v2143
        %v2651 = vunpack.c.l.b16 %v2144
        %v2652 = vunpack.c.h.b16 %v2144
        %v2653 = vunpack.c.l.b16 %v2145
        %v2654 = vunpack.c.h.b16 %v2145
        %v2655 = vunpack.c.l.b16 %v2146
        %v2656 = vunpack.c.h.b16 %v2146
        %v2657 = vunpack.c.l.b16 %v2147
        %v2658 = vunpack.c.h.b16 %v2147
        %v2659 = vunpack.c.l.b16 %v2148
        %v2660 = vunpack.c.h.b16 %v2148
        %v2661 = vunpack.c.l.b16 %v2149
        %v2662 = vunpack.c.h.b16 %v2149
        %v2663 = vunpack.c.l.b16 %v2150
        %v2664 = vunpack.c.h.b16 %v2150
        %v2665 = vunpack.c.l.b16 %v2151
        %v2666 = vunpack.c.h.b16 %v2151
        %v2667 = vunpack.c.l.b16 %v2152
        %v2668 = vunpack.c.h.b16 %v2152
        %v2669 = vunpack.c.l.b16 %v2153
        %v2670 = vunpack.c.h.b16 %v2153
        %v2671 = vunpack.c.l.b16 %v2154
        %v2672 = vunpack.c.h.b16 %v2154
        %v2673 = vunpack.c.l.b16 %v2155
        %v2674 = vunpack.c.h.b16 %v2155
        %v2675 = vunpack.c.l.b16 %v2156
        %v2676 = vunpack.c.h.b16 %v2156
        %v2677 = vunpack.c.l.b16 %v2157
        %v2678 = vunpack.c.h.b16 %v2157
        %v2679 = vunpack.c.l.b16 %v2158
        %v2680 = vunpack.c.h.b16 %v2158
        %v2681 = vunpack.c.l.b16 %v2159
        %v2682 = vunpack.c.h.b16 %v2159
        %v2683 = vunpack.c.l.b16 %v2160
        %v2684 = vunpack.c.h.b16 %v2160
        %v2685 = vunpack.c.l.b16 %v2161
        %v2686 = vunpack.c.h.b16 %v2161
        %v2687 = vunpack.c.l.b16 %v2162
        %v2688 = vunpack.c.h.b16 %v2162
        %v2689 = vunpack.c.l.b16 %v2163
        %v2690 = vunpack.c.h.b16 %v2163
        %v2691 = vunpack.c.l.b16 %v2164
        %v2692 = vunpack.c.h.b16 %v2164
        %v2693 = vunpack.c.l.b16 %v2165
        %v2694 = vunpack.c.h.b16 %v2165
        %v2695 = vunpack.c.l.b16 %v2166
        %v2696 = vunpack.c.h.b16 %v2166
        %v2697 = vunpack.c.l.b16 %v2167
        %v2698 = vunpack.c.h.b16 %v2167
        %v2699 = vunpack.c.l.b16 %v2168
        %v2700 = vunpack.c.h.b16 %v2168
        %v2701 = vunpack.c.l.b16 %v2169
        %v2702 = vunpack.c.h.b16 %v2169
        %v2703 = vunpack.c.l.b16 %v2170
        %v2704 = vunpack.c.h.b16 %v2170
        %v2705 = vunpack.c.l.b16 %v2171
        %v2706 = vunpack.c.h.b16 %v2171
        %v2707 = vunpack.c.l.b16 %v2172
        %v2708 = vunpack.c.h.b16 %v2172
        %v2709 = vunpack.c.l.b16 %v2173
        %v2710 = vunpack.c.h.b16 %v2173
        %v2711 = vunpack.c.l.b16 %v2174
        %v2712 = vunpack.c.h.b16 %v2174
        %v2713 = vunpack.c.l.b16 %v2175
        %v2714 = vunpack.c.h.b16 %v2175
        %v2715 = vunpack.c.l.b16 %v2176
        %v2716 = vunpack.c.h.b16 %v2176
        %v2717 = vunpack.c.l.b16 %v2177
        %v2718 = vunpack.c.h.b16 %v2177
        %v2719 = vunpack.c.l.b16 %v2178
        %v2720 = vunpack.c.h.b16 %v2178
        %v2721 = vunpack.c.l.b16 %v2179
        %v2722 = vunpack.c.h.b16 %v2179
        %v2723 = vunpack.c.l.b16 %v2180
        %v2724 = vunpack.c.h.b16 %v2180
        %v2725 = vunpack.c.l.b16 %v2181
        %v2726 = vunpack.c.h.b16 %v2181
        %v2727 = vunpack.c.l.b16 %v2182
        %v2728 = vunpack.c.h.b16 %v2182
        %v2729 = vunpack.c.l.b16 %v2183
        %v2730 = vunpack.c.h.b16 %v2183
        %v2731 = vunpack.c.l.b16 %v2184
        %v2732 = vunpack.c.h.b16 %v2184
        %v2733 = vunpack.c.l.b16 %v2185
        %v2734 = vunpack.c.h.b16 %v2185
        %v2735 = vunpack.c.l.b16 %v2186
        %v2736 = vunpack.c.h.b16 %v2186
        %v2737 = vunpack.c.l.b16 %v2187
        %v2738 = vunpack.c.h.b16 %v2187
        %v2739 = vunpack.c.l.b16 %v2188
        %v2740 = vunpack.c.h.b16 %v2188
        %v2741 = vunpack.c.l.b16 %v2189
        %v2742 = vunpack.c.h.b16 %v2189
        %v2743 = vunpack.c.l.b16 %v2190
        %v2744 = vunpack.c.h.b16 %v2190
        %v2745 = vunpack.c.l.b16 %v2191
        %v2746 = vunpack.c.h.b16 %v2191
        %v2747 = vunpack.c.l.b16 %v2192
        %v2748 = vunpack.c.h.b16 %v2192
        %v2749 = vunpack.c.l.b16 %v2193
        %v2750 = vunpack.c.h.b16 %v2193
        %v2751 = vunpack.c.l.b16 %v2194
        %v2752 = vunpack.c.h.b16 %v2194
        %v2753 = vunpack.c.l.b16 %v2195
        %v2754 = vunpack.c.h.b16 %v2195
        %v2755 = vunpack.c.l.b16 %v2196
        %v2756 = vunpack.c.h.b16 %v2196
        %v2757 = vunpack.c.l.b16 %v2197
        %v2758 = vunpack.c.h.b16 %v2197
        %v2759 = vunpack.c.l.b16 %v2198
        %v2760 = vunpack.c.h.b16 %v2198
        %v2761 = vunpack.c.l.b16 %v2199
        %v2762 = vunpack.c.h.b16 %v2199
        %v2763 = vunpack.c.l.b16 %v2200
        %v2764 = vunpack.c.h.b16 %v2200
        %v2765 = vunpack.c.l.b16 %v2201
        %v2766 = vunpack.c.h.b16 %v2201
        %v2767 = vunpack.c.l.b16 %v2202
        %v2768 = vunpack.c.h.b16 %v2202
        %v2769 = vunpack.c.l.b16 %v2203
        %v2770 = vunpack.c.h.b16 %v2203
        %v2771 = vunpack.c.l.b16 %v2204
        %v2772 = vunpack.c.h.b16 %v2204
        %v2773 = vunpack.c.l.b16 %v2205
        %v2774 = vunpack.c.h.b16 %v2205
        %v2775 = vunpack.c.l.b16 %v2206
        %v2776 = vunpack.c.h.b16 %v2206
        %v2777 = vunpack.c.l.b16 %v2207
        %v2778 = vunpack.c.h.b16 %v2207
        %v2779 = vunpack.c.l.b16 %v2208
        %v2780 = vunpack.c.h.b16 %v2208
        %v2781 = vunpack.c.l.b16 %v2209
        %v2782 = vunpack.c.h.b16 %v2209
        %v2783 = vunpack.c.l.b16 %v2210
        %v2784 = vunpack.c.h.b16 %v2210
        %v2785 = vunpack.c.l.b16 %v2211
        %v2786 = vunpack.c.h.b16 %v2211
        %v2787 = vunpack.c.l.b16 %v2212
        %v2788 = vunpack.c.h.b16 %v2212
        %v2789 = vunpack.c.l.b16 %v2213
        %v2790 = vunpack.c.h.b16 %v2213
        %v2791 = vunpack.c.l.b16 %v2214
        %v2792 = vunpack.c.h.b16 %v2214
        %v2793 = vunpack.c.l.b16 %v2215
        %v2794 = vunpack.c.h.b16 %v2215
        %v2795 = vunpack.c.l.b16 %v2216
        %v2796 = vunpack.c.h.b16 %v2216
        %v2797 = vunpack.c.l.b16 %v2217
        %v2798 = vunpack.c.h.b16 %v2217
        %v2799 = vunpack.c.l.b16 %v2218
        %v2800 = vunpack.c.h.b16 %v2218
        %v2801 = vpack.c.b16 %v2419, %v2417
        %v2802 = vpack.c.b16 %v2420, %v2418
        %v2803 = vpack.c.b16 %v2423, %v2421
        %v2804 = vpack.c.b16 %v2424, %v2422
        %v2805 = vpack.c.b16 %v2427, %v2425
        %v2806 = vpack.c.b16 %v2428, %v2426
        %v2807 = vpack.c.b16 %v2431, %v2429
        %v2808 = vpack.c.b16 %v2432, %v2430
        %v2809 = vpack.c.b16 %v2435, %v2433
        %v2810 = vpack.c.b16 %v2436, %v2434
        %v2811 = vpack.c.b16 %v2439, %v2437
        %v2812 = vpack.c.b16 %v2440, %v2438
        %v2813 = vpack.c.b16 %v2443, %v2441
        %v2814 = vpack.c.b16 %v2444, %v2442
        %v2815 = vpack.c.b16 %v2447, %v2445
        %v2816 = vpack.c.b16 %v2448, %v2446
        %v2817 = vpack.c.b16 %v2451, %v2449
        %v2818 = vpack.c.b16 %v2452, %v2450
        %v2819 = vpack.c.b16 %v2455, %v2453
        %v2820 = vpack.c.b16 %v2456, %v2454
        %v2821 = vpack.c.b16 %v2459, %v2457
        %v2822 = vpack.c.b16 %v2460, %v2458
        %v2823 = vpack.c.b16 %v2463, %v2461
        %v2824 = vpack.c.b16 %v2464, %v2462
        %v2825 = vpack.c.b16 %v2467, %v2465
        %v2826 = vpack.c.b16 %v2468, %v2466
        %v2827 = vpack.c.b16 %v2471, %v2469
        %v2828 = vpack.c.b16 %v2472, %v2470
        %v2829 = vpack.c.b16 %v2475, %v2473
        %v2830 = vpack.c.b16 %v2476, %v2474
        %v2831 = vpack.c.b16 %v2479, %v2477
        %v2832 = vpack.c.b16 %v2480, %v2478
        %v2833 = vpack.c.b16 %v2483, %v2481
        %v2834 = vpack.c.b16 %v2484, %v2482
        %v2835 = vpack.c.b16 %v2487, %v2485
        %v2836 = vpack.c.b16 %v2488, %v2486
        %v2837 = vpack.c.b16 %v2491, %v2489
        %v2838 = vpack.c.b16 %v2492, %v2490
        %v2839 = vpack.c.b16 %v2495, %v2493
        %v2840 = vpack.c.b16 %v2496, %v2494
        %v2841 = vpack.c.b16 %v2499, %v2497
        %v2842 = vpack.c.b16 %v2500, %v2498
        %v2843 = vpack.c.b16 %v2503, %v2501
        %v2844 = vpack.c.b16 %v2504, %v2502
        %v2845 = vpack.c.b16 %v2507, %v2505
        %v2846 = vpack.c.b16 %v2508, %v2506
        %v2847 = vpack.c.b16 %v2511, %v2509
        %v2848 = vpack.c.b16 %v2512, %v2510
        %v2849 = vpack.c.b16 %v2515, %v2513
        %v2850 = vpack.c.b16 %v2516, %v2514
        %v2851 = vpack.c.b16 %v2519, %v2517
        %v2852 = vpack.c.b16 %v2520, %v2518
        %v2853 = vpack.c.b16 %v2523, %v2521
        %v2854 = vpack.c.b16 %v2524, %v2522
        %v2855 = vpack.c.b16 %v2527, %v2525
        %v2856 = vpack.c.b16 %v2528, %v2526
        %v2857 = vpack.c.b16 %v2531, %v2529
        %v2858 = vpack.c.b16 %v2532, %v2530
        %v2859 = vpack.c.b16 %v2535, %v2533
        %v2860 = vpack.c.b16 %v2536, %v2534
        %v2861 = vpack.c.b16 %v2539, %v2537
        %v2862 = vpack.c.b16 %v2540, %v2538
        %v2863 = vpack.c.b16 %v2543, %v2541
        %v2864 = vpack.c.b16 %v2544, %v2542
        %v2865 = vpack.c.b16 %v2547, %v2545
        %v2866 = vpack.c.b16 %v2548, %v2546
        %v2867 = vpack.c.b16 %v2551, %v2549
        %v2868 = vpack.c.b16 %v2552, %v2550
        %v2869 = vpack.c.b16 %v2555, %v2553
        %v2870 = vpack.c.b16 %v2556, %v2554
        %v2871 = vpack.c.b16 %v2559, %v2557
        %v2872 = vpack.c.b16 %v2560, %v2558
        %v2873 = vpack.c.b16 %v2563, %v2561
        %v2874 = vpack.c.b16 %v2564, %v2562
        %v2875 = vpack.c.b16 %v2567, %v2565
        %v2876 = vpack.c.b16 %v2568, %v2566
        %v2877 = vpack.c.b16 %v2571, %v2569
        %v2878 = vpack.c.b16 %v2572, %v2570
        %v2879 = vpack.c.b16 %v2575, %v2573
        %v2880 = vpack.c.b16 %v2576, %v2574
        %v2881 = vpack.c.b16 %v2579, %v2577
        %v2882 = vpack.c.b16 %v2580, %v2578
        %v2883 = vpack.c.b16 %v2583, %v2581
        %v2884 = vpack.c.b16 %v2584, %v2582
        %v2885 = vpack.c.b16 %v2587, %v2585
        %v2886 = vpack.c.b16 %v2588, %v2586
        %v2887 = vpack.c.b16 %v2591, %v2589
        %v2888 = vpack.c.b16 %v2592, %v2590
        %v2889 = vpack.c.b16 %v2595, %v2593
        %v2890 = vpack.c.b16 %v2596, %v2594
        %v2891 = vpack.c.b16 %v2599, %v2597
        %v2892 = vpack.c.b16 %v2600, %v2598
        %v2893 = vpack.c.b16 %v2603, %v2601
        %v2894 = vpack.c.b16 %v2604, %v2602
        %v2895 = vpack.c.b16 %v2607, %v2605
        %v2896 = vpack.c.b16 %v2608, %v2606
        %v2897 = vpack.c.b16 %v2611, %v2609
        %v2898 = vpack.c.b16 %v2612, %v2610
        %v2899 = vpack.c.b16 %v2615, %v2613
        %v2900 = vpack.c.b16 %v2616, %v2614
        %v2901 = vpack.c.b16 %v2619, %v2617
        %v2902 = vpack.c.b16 %v2620, %v2618
        %v2903 = vpack.c.b16 %v2623, %v2621
        %v2904 = vpack.c.b16 %v2624, %v2622
        %v2905 = vpack.c.b16 %v2627, %v2625
        %v2906 = vpack.c.b16 %v2628, %v2626
        %v2907 = vpack.c.b16 %v2631, %v2629
        %v2908 = vpack.c.b16 %v2632, %v2630
        %v2909 = vpack.c.b16 %v2635, %v2633
        %v2910 = vpack.c.b16 %v2636, %v2634
        %v2911 = vpack.c.b16 %v2639, %v2637
        %v2912 = vpack.c.b16 %v2640, %v2638
        %v2913 = vpack.c.b16 %v2643, %v2641
        %v2914 = vpack.c.b16 %v2644, %v2642
        %v2915 = vpack.c.b16 %v2647, %v2645
        %v2916 = vpack.c.b16 %v2648, %v2646
        %v2917 = vpack.c.b16 %v2651, %v2649
        %v2918 = vpack.c.b16 %v2652, %v2650
        %v2919 = vpack.c.b16 %v2655, %v2653
        %v2920 = vpack.c.b16 %v2656, %v2654
        %v2921 = vpack.c.b16 %v2659, %v2657
        %v2922 = vpack.c.b16 %v2660, %v2658
        %v2923 = vpack.c.b16 %v2663, %v2661
        %v2924 = vpack.c.b16 %v2664, %v2662
        %v2925 = vpack.c.b16 %v2667, %v2665
        %v2926 = vpack.c.b16 %v2668, %v2666
        %v2927 = vpack.c.b16 %v2671, %v2669
        %v2928 = vpack.c.b16 %v2672, %v2670
        %v2929 = vpack.c.b16 %v2675, %v2673
        %v2930 = vpack.c.b16 %v2676, %v2674
        %v2931 = vpack.c.b16 %v2679, %v2677
        %v2932 = vpack.c.b16 %v2680, %v2678
        %v2933 = vpack.c.b16 %v2683, %v2681
        %v2934 = vpack.c.b16 %v2684, %v2682
        %v2935 = vpack.c.b16 %v2687, %v2685
        %v2936 = vpack.c.b16 %v2688, %v2686
        %v2937 = vpack.c.b16 %v2691, %v2689
        %v2938 = vpack.c.b16 %v2692, %v2690
        %v2939 = vpack.c.b16 %v2695, %v2693
        %v2940 = vpack.c.b16 %v2696, %v2694
        %v2941 = vpack.c.b16 %v2699, %v2697
        %v2942 = vpack.c.b16 %v2700, %v2698
        %v2943 = vpack.c.b16 %v2703, %v2701
        %v2944 = vpack.c.b16 %v2704, %v2702
        %v2945 = vpack.c.b16 %v2707, %v2705
        %v2946 = vpack.c.b16 %v2708, %v2706
        %v2947 = vpack.c.b16 %v2711, %v2709
        %v2948 = vpack.c.b16 %v2712, %v2710
        %v2949 = vpack.c.b16 %v2715, %v2713
        %v2950 = vpack.c.b16 %v2716, %v2714
        %v2951 = vpack.c.b16 %v2719, %v2717
        %v2952 = vpack.c.b16 %v2720, %v2718
        %v2953 = vpack.c.b16 %v2723, %v2721
        %v2954 = vpack.c.b16 %v2724, %v2722
        %v2955 = vpack.c.b16 %v2727, %v2725
        %v2956 = vpack.c.b16 %v2728, %v2726
        %v2957 = vpack.c.b16 %v2731, %v2729
        %v2958 = vpack.c.b16 %v2732, %v2730
        %v2959 = vpack.c.b16 %v2735, %v2733
        %v2960 = vpack.c.b16 %v2736, %v2734
        %v2961 = vpack.c.b16 %v2739, %v2737
        %v2962 = vpack.c.b16 %v2740, %v2738
        %v2963 = vpack.c.b16 %v2743, %v2741
        %v2964 = vpack.c.b16 %v2744, %v2742
        %v2965 = vpack.c.b16 %v2747, %v2745
        %v2966 = vpack.c.b16 %v2748, %v2746
        %v2967 = vpack.c.b16 %v2751, %v2749
        %v2968 = vpack.c.b16 %v2752, %v2750
        %v2969 = vpack.c.b16 %v2755, %v2753
        %v2970 = vpack.c.b16 %v2756, %v2754
        %v2971 = vpack.c.b16 %v2759, %v2757
        %v2972 = vpack.c.b16 %v2760, %v2758
        %v2973 = vpack.c.b16 %v2763, %v2761
        %v2974 = vpack.c.b16 %v2764, %v2762
        %v2975 = vpack.c.b16 %v2767, %v2765
        %v2976 = vpack.c.b16 %v2768, %v2766
        %v2977 = vpack.c.b16 %v2771, %v2769
        %v2978 = vpack.c.b16 %v2772, %v2770
        %v2979 = vpack.c.b16 %v2775, %v2773
        %v2980 = vpack.c.b16 %v2776, %v2774
        %v2981 = vpack.c.b16 %v2779, %v2777
        %v2982 = vpack.c.b16 %v2780, %v2778
        %v2983 = vpack.c.b16 %v2783, %v2781
        %v2984 = vpack.c.b16 %v2784, %v2782
        %v2985 = vpack.c.b16 %v2787, %v2785
        %v2986 = vpack.c.b16 %v2788, %v2786
        %v2987 = vpack.c.b16 %v2791, %v2789
        %v2988 = vpack.c.b16 %v2792, %v2790
        %v2989 = vpack.c.b16 %v2795, %v2793
        %v2990 = vpack.c.b16 %v2796, %v2794
        %v2991 = vpack.c.b16 %v2799, %v2797
        %v2992 = vpack.c.b16 %v2800, %v2798
        %3185 = vmatpush.bf16.msra.mxu0 %v2815
        %3186 = vmatpush.bf16.msra.mxu0 %v2813
        %3187 = vmatpush.bf16.msra.mxu0 %v2811
        %3188 = vmatpush.bf16.msra.mxu0 %v2809
        %3189 = vmatpush.bf16.msra.mxu0 %v2807
        %3190 = vmatpush.bf16.msra.mxu0 %v2805
        %3191 = vmatpush.bf16.msra.mxu0 %v2803
        %3192 = vmatpush.bf16.msra.mxu0 %v2801
        %3193 = vmatmul.bf16.gmra.mxu0 %v1979
        %v3194 = vpop.f32.mrf.mxu0
        %v3195 = vadd.f32 %v2221, %v3194
        %v3196 = vpop.f32.mrf.mxu0
        %v3197 = vadd.f32 %v2221, %v3196
        %3198 = vdwg.mxu0
        %3199 = vmatpush.bf16.msra.mxu0 %v2831
        %3200 = vmatpush.bf16.msra.mxu0 %v2829
        %3201 = vmatpush.bf16.msra.mxu0 %v2827
        %3202 = vmatpush.bf16.msra.mxu0 %v2825
        %3203 = vmatpush.bf16.msra.mxu0 %v2823
        %3204 = vmatpush.bf16.msra.mxu0 %v2821
        %3205 = vmatpush.bf16.msra.mxu0 %v2819
        %3206 = vmatpush.bf16.msra.mxu0 %v2817
        %3207 = vmatmul.bf16.gmra.mxu0 %v1980
        %v3208 = vpop.f32.mrf.mxu0
        %v3209 = vadd.f32 %v3195, %v3208
        %v3210 = vpop.f32.mrf.mxu0
        %v3211 = vadd.f32 %v3197, %v3210
        %3212 = vdwg.mxu0
        %3213 = vmatpush.bf16.msra.mxu0 %v2847
        %3214 = vmatpush.bf16.msra.mxu0 %v2845
        %3215 = vmatpush.bf16.msra.mxu0 %v2843
        %3216 = vmatpush.bf16.msra.mxu0 %v2841
        %3217 = vmatpush.bf16.msra.mxu0 %v2839
        %3218 = vmatpush.bf16.msra.mxu0 %v2837
        %3219 = vmatpush.bf16.msra.mxu0 %v2835
        %3220 = vmatpush.bf16.msra.mxu0 %v2833
        %3221 = vmatmul.bf16.gmra.mxu0 %v1981
        %v3222 = vpop.f32.mrf.mxu0
        %v3223 = vadd.f32 %v3209, %v3222
        %v3224 = vpop.f32.mrf.mxu0
        %v3225 = vadd.f32 %v3211, %v3224
        %3226 = vdwg.mxu0
        %3227 = vmatpush.bf16.msra.mxu0 %v2863
        %3228 = vmatpush.bf16.msra.mxu0 %v2861
        %3229 = vmatpush.bf16.msra.mxu0 %v2859
        %3230 = vmatpush.bf16.msra.mxu0 %v2857
        %3231 = vmatpush.bf16.msra.mxu0 %v2855
        %3232 = vmatpush.bf16.msra.mxu0 %v2853
        %3233 = vmatpush.bf16.msra.mxu0 %v2851
        %3234 = vmatpush.bf16.msra.mxu0 %v2849
        %3235 = vmatmul.bf16.gmra.mxu0 %v1982
        %v3236 = vpop.f32.mrf.mxu0
        %v3237 = vadd.f32 %v3223, %v3236
        %v3238 = vpop.f32.mrf.mxu0
        %v3239 = vadd.f32 %v3225, %v3238
        %3240 = vdwg.mxu0
        %3241 = vmatpush.bf16.msra.mxu0 %v2879
        %3242 = vmatpush.bf16.msra.mxu0 %v2877
        %3243 = vmatpush.bf16.msra.mxu0 %v2875
        %3244 = vmatpush.bf16.msra.mxu0 %v2873
        %3245 = vmatpush.bf16.msra.mxu0 %v2871
        %3246 = vmatpush.bf16.msra.mxu0 %v2869
        %3247 = vmatpush.bf16.msra.mxu0 %v2867
        %3248 = vmatpush.bf16.msra.mxu0 %v2865
        %3249 = vmatmul.bf16.gmra.mxu0 %v1999
        %v3250 = vpop.f32.mrf.mxu0
        %v3251 = vadd.f32 %v3237, %v3250
        %v3252 = vpop.f32.mrf.mxu0
        %v3253 = vadd.f32 %v3239, %v3252
        %3254 = vdwg.mxu0
        %3255 = vmatpush.bf16.msra.mxu0 %v2895
        %3256 = vmatpush.bf16.msra.mxu0 %v2893
        %3257 = vmatpush.bf16.msra.mxu0 %v2891
        %3258 = vmatpush.bf16.msra.mxu0 %v2889
        %3259 = vmatpush.bf16.msra.mxu0 %v2887
        %3260 = vmatpush.bf16.msra.mxu0 %v2885
        %3261 = vmatpush.bf16.msra.mxu0 %v2883
        %3262 = vmatpush.bf16.msra.mxu0 %v2881
        %3263 = vmatmul.bf16.gmra.mxu0 %v2000
        %v3264 = vpop.f32.mrf.mxu0
        %v3265 = vadd.f32 %v3251, %v3264
        %v3266 = vpop.f32.mrf.mxu0
        %v3267 = vadd.f32 %v3253, %v3266
        %3268 = vdwg.mxu0
        %3269 = vmatpush.bf16.msra.mxu0 %v2911
        %3270 = vmatpush.bf16.msra.mxu0 %v2909
        %3271 = vmatpush.bf16.msra.mxu0 %v2907
        %3272 = vmatpush.bf16.msra.mxu0 %v2905
        %3273 = vmatpush.bf16.msra.mxu0 %v2903
        %3274 = vmatpush.bf16.msra.mxu0 %v2901
        %3275 = vmatpush.bf16.msra.mxu0 %v2899
        %3276 = vmatpush.bf16.msra.mxu0 %v2897
        %3277 = vmatmul.bf16.gmra.mxu0 %v2001
        %v3278 = vpop.f32.mrf.mxu0
        %v3279 = vadd.f32 %v3265, %v3278
        %v3280 = vpop.f32.mrf.mxu0
        %v3281 = vadd.f32 %v3267, %v3280
        %3282 = vdwg.mxu0
        %3283 = vmatpush.bf16.msra.mxu0 %v2927
        %3284 = vmatpush.bf16.msra.mxu0 %v2925
        %3285 = vmatpush.bf16.msra.mxu0 %v2923
        %3286 = vmatpush.bf16.msra.mxu0 %v2921
        %3287 = vmatpush.bf16.msra.mxu0 %v2919
        %3288 = vmatpush.bf16.msra.mxu0 %v2917
        %3289 = vmatpush.bf16.msra.mxu0 %v2915
        %3290 = vmatpush.bf16.msra.mxu0 %v2913
        %3291 = vmatmul.bf16.gmra.mxu0 %v2002
        %v3292 = vpop.f32.mrf.mxu0
        %v3293 = vadd.f32 %v3279, %v3292
        %v3294 = vpop.f32.mrf.mxu0
        %v3295 = vadd.f32 %v3281, %v3294
        %3296 = vdwg.mxu0
        %3297 = vmatpush.bf16.msra.mxu0 %v2943
        %3298 = vmatpush.bf16.msra.mxu0 %v2941
        %3299 = vmatpush.bf16.msra.mxu0 %v2939
        %3300 = vmatpush.bf16.msra.mxu0 %v2937
        %3301 = vmatpush.bf16.msra.mxu0 %v2935
        %3302 = vmatpush.bf16.msra.mxu0 %v2933
        %3303 = vmatpush.bf16.msra.mxu0 %v2931
        %3304 = vmatpush.bf16.msra.mxu0 %v2929
        %3305 = vmatmul.bf16.gmra.mxu0 %v2019
        %v3306 = vpop.f32.mrf.mxu0
        %v3307 = vadd.f32 %v3293, %v3306
        %v3308 = vpop.f32.mrf.mxu0
        %v3309 = vadd.f32 %v3295, %v3308
        %3310 = vdwg.mxu0
        %3311 = vmatpush.bf16.msra.mxu0 %v2959
        %3312 = vmatpush.bf16.msra.mxu0 %v2957
        %3313 = vmatpush.bf16.msra.mxu0 %v2955
        %3314 = vmatpush.bf16.msra.mxu0 %v2953
        %3315 = vmatpush.bf16.msra.mxu0 %v2951
        %3316 = vmatpush.bf16.msra.mxu0 %v2949
        %3317 = vmatpush.bf16.msra.mxu0 %v2947
        %3318 = vmatpush.bf16.msra.mxu0 %v2945
        %3319 = vmatmul.bf16.gmra.mxu0 %v2020
        %v3320 = vpop.f32.mrf.mxu0
        %v3321 = vadd.f32 %v3307, %v3320
        %v3322 = vpop.f32.mrf.mxu0
        %v3323 = vadd.f32 %v3309, %v3322
        %3324 = vdwg.mxu0
        %3325 = vmatpush.bf16.msra.mxu0 %v2975
        %3326 = vmatpush.bf16.msra.mxu0 %v2973
        %3327 = vmatpush.bf16.msra.mxu0 %v2971
        %3328 = vmatpush.bf16.msra.mxu0 %v2969
        %3329 = vmatpush.bf16.msra.mxu0 %v2967
        %3330 = vmatpush.bf16.msra.mxu0 %v2965
        %3331 = vmatpush.bf16.msra.mxu0 %v2963
        %3332 = vmatpush.bf16.msra.mxu0 %v2961
        %3333 = vmatmul.bf16.gmra.mxu0 %v2021
        %v3334 = vpop.f32.mrf.mxu0
        %v3335 = vadd.f32 %v3321, %v3334
        %v3336 = vpop.f32.mrf.mxu0
        %v3337 = vadd.f32 %v3323, %v3336
        %3338 = vdwg.mxu0
        %3339 = vmatpush.bf16.msra.mxu0 %v2991
        %3340 = vmatpush.bf16.msra.mxu0 %v2989
        %3341 = vmatpush.bf16.msra.mxu0 %v2987
        %3342 = vmatpush.bf16.msra.mxu0 %v2985
        %3343 = vmatpush.bf16.msra.mxu0 %v2983
        %3344 = vmatpush.bf16.msra.mxu0 %v2981
        %3345 = vmatpush.bf16.msra.mxu0 %v2979
        %3346 = vmatpush.bf16.msra.mxu0 %v2977
        %3347 = vmatmul.bf16.gmra.mxu0 %v2022
        %v3348 = vpop.f32.mrf.mxu0
        %v3349 = vadd.f32 %v3335, %v3348
        %v3350 = vpop.f32.mrf.mxu0
        %v3351 = vadd.f32 %v3337, %v3350
        %3352 = vdwg.mxu0
        %3353 = vmatpush.bf16.msra.mxu0 %v2816
        %3354 = vmatpush.bf16.msra.mxu0 %v2814
        %3355 = vmatpush.bf16.msra.mxu0 %v2812
        %3356 = vmatpush.bf16.msra.mxu0 %v2810
        %3357 = vmatpush.bf16.msra.mxu0 %v2808
        %3358 = vmatpush.bf16.msra.mxu0 %v2806
        %3359 = vmatpush.bf16.msra.mxu0 %v2804
        %3360 = vmatpush.bf16.msra.mxu0 %v2802
        %3361 = vmatmul.bf16.gmra.mxu0 %v1979
        %v3362 = vpop.f32.mrf.mxu0
        %v3363 = vadd.f32 %v2222, %v3362
        %v3364 = vpop.f32.mrf.mxu0
        %v3365 = vadd.f32 %v2222, %v3364
        %3366 = vdwg.mxu0
        %3367 = vmatpush.bf16.msra.mxu0 %v2832
        %3368 = vmatpush.bf16.msra.mxu0 %v2830
        %3369 = vmatpush.bf16.msra.mxu0 %v2828
        %3370 = vmatpush.bf16.msra.mxu0 %v2826
        %3371 = vmatpush.bf16.msra.mxu0 %v2824
        %3372 = vmatpush.bf16.msra.mxu0 %v2822
        %3373 = vmatpush.bf16.msra.mxu0 %v2820
        %3374 = vmatpush.bf16.msra.mxu0 %v2818
        %3375 = vmatmul.bf16.gmra.mxu0 %v1980
        %v3376 = vpop.f32.mrf.mxu0
        %v3377 = vadd.f32 %v3363, %v3376
        %v3378 = vpop.f32.mrf.mxu0
        %v3379 = vadd.f32 %v3365, %v3378
        %3380 = vdwg.mxu0
        %3381 = vmatpush.bf16.msra.mxu0 %v2848
        %3382 = vmatpush.bf16.msra.mxu0 %v2846
        %3383 = vmatpush.bf16.msra.mxu0 %v2844
        %3384 = vmatpush.bf16.msra.mxu0 %v2842
        %3385 = vmatpush.bf16.msra.mxu0 %v2840
        %3386 = vmatpush.bf16.msra.mxu0 %v2838
        %3387 = vmatpush.bf16.msra.mxu0 %v2836
        %3388 = vmatpush.bf16.msra.mxu0 %v2834
        %3389 = vmatmul.bf16.gmra.mxu0 %v1981
        %v3390 = vpop.f32.mrf.mxu0
        %v3391 = vadd.f32 %v3377, %v3390
        %v3392 = vpop.f32.mrf.mxu0
        %v3393 = vadd.f32 %v3379, %v3392
        %3394 = vdwg.mxu0
        %3395 = vmatpush.bf16.msra.mxu0 %v2864
        %3396 = vmatpush.bf16.msra.mxu0 %v2862
        %3397 = vmatpush.bf16.msra.mxu0 %v2860
        %3398 = vmatpush.bf16.msra.mxu0 %v2858
        %3399 = vmatpush.bf16.msra.mxu0 %v2856
        %3400 = vmatpush.bf16.msra.mxu0 %v2854
        %3401 = vmatpush.bf16.msra.mxu0 %v2852
        %3402 = vmatpush.bf16.msra.mxu0 %v2850
        %3403 = vmatmul.bf16.gmra.mxu0 %v1982
        %v3404 = vpop.f32.mrf.mxu0
        %v3405 = vadd.f32 %v3391, %v3404
        %v3406 = vpop.f32.mrf.mxu0
        %v3407 = vadd.f32 %v3393, %v3406
        %3408 = vdwg.mxu0
        %3409 = vmatpush.bf16.msra.mxu0 %v2880
        %3410 = vmatpush.bf16.msra.mxu0 %v2878
        %3411 = vmatpush.bf16.msra.mxu0 %v2876
        %3412 = vmatpush.bf16.msra.mxu0 %v2874
        %3413 = vmatpush.bf16.msra.mxu0 %v2872
        %3414 = vmatpush.bf16.msra.mxu0 %v2870
        %3415 = vmatpush.bf16.msra.mxu0 %v2868
        %3416 = vmatpush.bf16.msra.mxu0 %v2866
        %3417 = vmatmul.bf16.gmra.mxu0 %v1999
        %v3418 = vpop.f32.mrf.mxu0
        %v3419 = vadd.f32 %v3405, %v3418
        %v3420 = vpop.f32.mrf.mxu0
        %v3421 = vadd.f32 %v3407, %v3420
        %3422 = vdwg.mxu0
        %3423 = vmatpush.bf16.msra.mxu0 %v2896
        %3424 = vmatpush.bf16.msra.mxu0 %v2894
        %3425 = vmatpush.bf16.msra.mxu0 %v2892
        %3426 = vmatpush.bf16.msra.mxu0 %v2890
        %3427 = vmatpush.bf16.msra.mxu0 %v2888
        %3428 = vmatpush.bf16.msra.mxu0 %v2886
        %3429 = vmatpush.bf16.msra.mxu0 %v2884
        %3430 = vmatpush.bf16.msra.mxu0 %v2882
        %3431 = vmatmul.bf16.gmra.mxu0 %v2000
        %v3432 = vpop.f32.mrf.mxu0
        %v3433 = vadd.f32 %v3419, %v3432
        %v3434 = vpop.f32.mrf.mxu0
        %v3435 = vadd.f32 %v3421, %v3434
        %3436 = vdwg.mxu0
        %3437 = vmatpush.bf16.msra.mxu0 %v2912
        %3438 = vmatpush.bf16.msra.mxu0 %v2910
        %3439 = vmatpush.bf16.msra.mxu0 %v2908
        %3440 = vmatpush.bf16.msra.mxu0 %v2906
        %3441 = vmatpush.bf16.msra.mxu0 %v2904
        %3442 = vmatpush.bf16.msra.mxu0 %v2902
        %3443 = vmatpush.bf16.msra.mxu0 %v2900
        %3444 = vmatpush.bf16.msra.mxu0 %v2898
        %3445 = vmatmul.bf16.gmra.mxu0 %v2001
        %v3446 = vpop.f32.mrf.mxu0
        %v3447 = vadd.f32 %v3433, %v3446
        %v3448 = vpop.f32.mrf.mxu0
        %v3449 = vadd.f32 %v3435, %v3448
        %3450 = vdwg.mxu0
        %3451 = vmatpush.bf16.msra.mxu0 %v2928
        %3452 = vmatpush.bf16.msra.mxu0 %v2926
        %3453 = vmatpush.bf16.msra.mxu0 %v2924
        %3454 = vmatpush.bf16.msra.mxu0 %v2922
        %3455 = vmatpush.bf16.msra.mxu0 %v2920
        %3456 = vmatpush.bf16.msra.mxu0 %v2918
        %3457 = vmatpush.bf16.msra.mxu0 %v2916
        %3458 = vmatpush.bf16.msra.mxu0 %v2914
        %3459 = vmatmul.bf16.gmra.mxu0 %v2002
        %v3460 = vpop.f32.mrf.mxu0
        %v3461 = vadd.f32 %v3447, %v3460
        %v3462 = vpop.f32.mrf.mxu0
        %v3463 = vadd.f32 %v3449, %v3462
        %3464 = vdwg.mxu0
        %3465 = vmatpush.bf16.msra.mxu0 %v2944
        %3466 = vmatpush.bf16.msra.mxu0 %v2942
        %3467 = vmatpush.bf16.msra.mxu0 %v2940
        %3468 = vmatpush.bf16.msra.mxu0 %v2938
        %3469 = vmatpush.bf16.msra.mxu0 %v2936
        %3470 = vmatpush.bf16.msra.mxu0 %v2934
        %3471 = vmatpush.bf16.msra.mxu0 %v2932
        %3472 = vmatpush.bf16.msra.mxu0 %v2930
        %3473 = vmatmul.bf16.gmra.mxu0 %v2019
        %v3474 = vpop.f32.mrf.mxu0
        %v3475 = vadd.f32 %v3461, %v3474
        %v3476 = vpop.f32.mrf.mxu0
        %v3477 = vadd.f32 %v3463, %v3476
        %3478 = vdwg.mxu0
        %3479 = vmatpush.bf16.msra.mxu0 %v2960
        %3480 = vmatpush.bf16.msra.mxu0 %v2958
        %3481 = vmatpush.bf16.msra.mxu0 %v2956
        %3482 = vmatpush.bf16.msra.mxu0 %v2954
        %3483 = vmatpush.bf16.msra.mxu0 %v2952
        %3484 = vmatpush.bf16.msra.mxu0 %v2950
        %3485 = vmatpush.bf16.msra.mxu0 %v2948
        %3486 = vmatpush.bf16.msra.mxu0 %v2946
        %3487 = vmatmul.bf16.gmra.mxu0 %v2020
        %v3488 = vpop.f32.mrf.mxu0
        %v3489 = vadd.f32 %v3475, %v3488
        %v3490 = vpop.f32.mrf.mxu0
        %v3491 = vadd.f32 %v3477, %v3490
        %3492 = vdwg.mxu0
        %3493 = vmatpush.bf16.msra.mxu0 %v2976
        %3494 = vmatpush.bf16.msra.mxu0 %v2974
        %3495 = vmatpush.bf16.msra.mxu0 %v2972
        %3496 = vmatpush.bf16.msra.mxu0 %v2970
        %3497 = vmatpush.bf16.msra.mxu0 %v2968
        %3498 = vmatpush.bf16.msra.mxu0 %v2966
        %3499 = vmatpush.bf16.msra.mxu0 %v2964
        %3500 = vmatpush.bf16.msra.mxu0 %v2962
        %3501 = vmatmul.bf16.gmra.mxu0 %v2021
        %v3502 = vpop.f32.mrf.mxu0
        %v3503 = vadd.f32 %v3489, %v3502
        %v3504 = vpop.f32.mrf.mxu0
        %v3505 = vadd.f32 %v3491, %v3504
        %3506 = vdwg.mxu0
        %3507 = vmatpush.bf16.msra.mxu0 %v2992
        %3508 = vmatpush.bf16.msra.mxu0 %v2990
        %3509 = vmatpush.bf16.msra.mxu0 %v2988
        %3510 = vmatpush.bf16.msra.mxu0 %v2986
        %3511 = vmatpush.bf16.msra.mxu0 %v2984
        %3512 = vmatpush.bf16.msra.mxu0 %v2982
        %3513 = vmatpush.bf16.msra.mxu0 %v2980
        %3514 = vmatpush.bf16.msra.mxu0 %v2978
        %3515 = vmatmul.bf16.gmra.mxu0 %v2022
        %v3516 = vpop.f32.mrf.mxu0
        %v3517 = vadd.f32 %v3503, %v3516
        %v3518 = vpop.f32.mrf.mxu0
        %v3519 = vadd.f32 %v3505, %v3518
        %3520 = vdwg.mxu0
        %3521 = vst [vmem:[%s293] sm:$0xff] %v3349
        %3522 = vst [vmem:[%s293 + $0x8] sm:$0xff] %v3517
        %3523 = vst [vmem:[%s293 + $0x10] sm:$0xff] %v3351
        %3524 = vst [vmem:[%s293 + $0x18] sm:$0xff] %v3519
        %s3525 = sand.u32 %s142, 1
        %s3526 = scalar_lea.sflag [#allocation4], %s3525
        %s3527 = sand.u32 %s142, 1
        %s3528 = smul.addr %s3527, 32
        %s3529 = scalar_lea.vmem [#allocation10], %s3528
        // Predicated region
        $region57: #{tpu_custom_call.1} parent=39 // pred_check
          %p3530 = pneg %p152
        $region58: #{tpu_custom_call.1} parent=39 // pred_check_branch
          %3532 = sbr.rel (%p3530) target = $region60
        $region59: #{tpu_custom_call.1} parent=39 // pred_region
          %s3533 = smul.u32 2, %s24
          %3535 = vsyncadd %s3526, 0
          %s3536 = smul.addr %s3533, 2
          %s3537 = smul.addr %s3536, 8
          %s3538 = scalar_lea.hbm %s5, %s3537
          %s3539 = sshll.u32 %s3529, 4
          %s3540 = int_to_ptr.vmem [resolvable:$true] %s3539
          %s3541 = sshll.u32 %s3538, 4
          %s3542 = int_to_ptr.hbm [resolvable:$true] %s3541
          %3547 = dma.vmem_to_hbm [thread:$0]  %s3540, 512, %s3542, %s3526, 256, 256, 16
        $region60: #{tpu_custom_call.1} parent=39 // pred_fallthru
          _
      $region40: #{tpu_custom_call.1} parent=5 // pred_fallthru
        _
      %p3548 = scmp.le.s32.totalorder 2, %s19
      // Predicated region
      $region61: #{tpu_custom_call.1} parent=5 // pred_check
        %p3549 = pneg %p3548
      $region62: #{tpu_custom_call.1} parent=5 // pred_check_branch
        %3551 = sbr.rel (%p3549) target = $region64
      $region63: #{tpu_custom_call.1} parent=5 // pred_region
        %s3552 = ssub.s32 %s19, 2
        // Predicated region
        $region65: #{tpu_custom_call.1} parent=63 // pred_check
          %p3553 = pneg %p158
        $region66: #{tpu_custom_call.1} parent=63 // pred_check_branch
          %3555 = sbr.rel (%p3553) target = $region68
        $region67: #{tpu_custom_call.1} parent=63 // pred_region
          %s3556 = sand.u32 %s143, 1
          %s3557 = scalar_lea.sflag [#allocation4], %s3556
          %s3558 = sand.u32 %s143, 1
          %s3559 = smul.addr %s3558, 32
          %s3560 = scalar_lea.vmem [#allocation10], %s3559
          %3562 = dma.done %s3557, 512
        $region68: #{tpu_custom_call.1} parent=63 // pred_fallthru
          _
      $region64: #{tpu_custom_call.1} parent=5 // pred_fallthru
        _
    $region6: #{tpu_custom_call.1} parent=1 // loop_footer
      %s23 = sadd.s32 1, %s19
    $region7: #{tpu_custom_call.1} parent=1 // loop_footer_branch
      %18 = sbr.rel target = $region3
    $region8: #{tpu_custom_call.1} parent=1 // loop_exit
      _
    %3563 = vsyncpa [#allocation3], 1
    %s3564 = scalar_lea.sflag [#allocation3], 1
    %3565 = vsyncpa %s3564, 1
    %3566 = vsyncpa [#allocation6], 1
    %3567 = vsyncpa [#allocation9], 1
    %3568 = vsyncpa [#allocation4], 1
    %s3569 = scalar_lea.sflag [#allocation4], 1
    %3570 = vsyncpa %s3569, 1

</llo_original>
